<compile_context>
chip_gen: v7x
topology: tpu7x:2x2x1
jax: 0.10.0
libtpu: 0.0.40
codegen_flags: <defaults>
</compile_context>

<pallas_src>
import jax
import jax.numpy as jnp
from jax.experimental import pallas as pl
from jax.experimental.pallas import tpu as pltpu


def _round_up(x, m):
    return ((x + m - 1) // m) * m


# ----------------------------------------------------------------------------
# One fused kernel per batch-block of B samples:
#   y_b    = ReLU(patches_b @ W_conv + b_conv)          (HW, Ep)  backbone "conv"
#   emb_b  = mean over HW                               (1, Ep)   global avg pool
#   logits = [emb_0 .. emb_{B-1}] @ W_heads + b_heads   (B, Cp)   all heads fused
# ----------------------------------------------------------------------------
def _fused_kernel(patches_ref, wconv_ref, bconv_ref, wheads_ref, bheads_ref,
                  logits_ref):
    B = patches_ref.shape[0]
    w_conv = wconv_ref[...]          # (Kp, Ep)  hoisted: loaded once per step
    b_conv = bconv_ref[...]          # (1, Ep)
    embs = []
    for b in range(B):               # B is small & static -> unrolled at trace time
        y = jnp.dot(patches_ref[b], w_conv,
                    preferred_element_type=jnp.float32)      # (HW, Ep) MXU
        y = jnp.maximum(y + b_conv, 0.0)                      # bias + ReLU
        embs.append(jnp.mean(y, axis=0, keepdims=True))       # GAP -> (1, Ep)
    emb = jnp.concatenate(embs, axis=0)                       # (B, Ep)
    # Fused, lane-dense classifier heads (Dropout is identity in eval).
    logits_ref[...] = (
        jnp.dot(emb, wheads_ref[...], preferred_element_type=jnp.float32)
        + bheads_ref[...]
    )


def fused_forward(patches, w_conv, b_conv, w_heads, b_heads, *, block_b=8):
    Np, HW, Kp = patches.shape
    Ep = w_conv.shape[1]
    Cp = w_heads.shape[1]
    B = min(block_b, Np)
    assert Np % B == 0, (Np, B)
    return pl.pallas_call(
        _fused_kernel,
        out_shape=jax.ShapeDtypeStruct((Np, Cp), jnp.float32),
        grid_spec=pltpu.PrefetchScalarGridSpec(
            num_scalar_prefetch=0,
            grid=(Np // B,),
            in_specs=[
                pl.BlockSpec((B, HW, Kp), lambda i: (i, 0, 0)),
                pl.BlockSpec((Kp, Ep), lambda i: (0, 0)),
                pl.BlockSpec((1, Ep), lambda i: (0, 0)),
                pl.BlockSpec((Ep, Cp), lambda i: (0, 0)),
                pl.BlockSpec((1, Cp), lambda i: (0, 0)),
            ],
            out_specs=pl.BlockSpec((B, Cp), lambda i: (i, 0)),
        ),
        compiler_params=pltpu.CompilerParams(
            # Batch-block axis is fully independent -> megacore split on v7x.
            dimension_semantics=("parallel",),
        ),
    )(patches, w_conv, b_conv, w_heads, b_heads)


# ----------------------------------------------------------------------------
# Glue: im2col (3x3 same padding, stride 1) in NHWC, with the lane pad to Kp
# and the batch pad to Np fused into the single patch materialization.
# ----------------------------------------------------------------------------
def im2col_3x3_padded(x_nhwc, k_pad, n_pad):
    N, H, W, C = x_nhwc.shape
    xp = jnp.pad(x_nhwc, ((0, 0), (1, 1), (1, 1), (0, 0)))
    cols = [xp[:, dh:dh + H, dw:dw + W, :] for dh in range(3) for dw in range(3)]
    if k_pad > 9 * C:
        cols.append(jnp.zeros((N, H, W, k_pad - 9 * C), x_nhwc.dtype))
    patches = jnp.concatenate(cols, axis=-1).reshape(N, H * W, k_pad)
    if n_pad > N:
        patches = jnp.pad(patches, ((0, n_pad - N), (0, 0), (0, 0)))
    return patches


# ----------------------------------------------------------------------------
# Parameter init (deterministic), padded to lane-dense shapes.
# Linear heads use kaiming_normal_(nonlinearity='relu'):
#   std = sqrt(2 / fan_in), bias = 0   (matches initialize_classifiers)
# ----------------------------------------------------------------------------
def init_params(key, c_in, emb_size, classes):
    task_names = list(classes.keys())
    task_sizes = [len(classes[t]) for t in task_names]

    k_fanin = c_in * 9
    k_pad = _round_up(k_fanin, 128)
    e_pad = _round_up(emb_size, 128)
    c_pad = _round_up(sum(task_sizes), 128)

    k_conv, k_heads = jax.random.split(key)
    # TODO(synk): backbone is a synthetic stand-in for the timm/unicom model;
    # real conv weights (out, in, kh, kw) would need permuting to this
    # (kh, kw, cin)-major im2col layout.
    w_conv = jax.random.normal(k_conv, (k_fanin, emb_size), jnp.float32) * jnp.sqrt(
        2.0 / k_fanin
    )
    w_conv = jnp.pad(w_conv, ((0, k_pad - k_fanin), (0, e_pad - emb_size)))
    b_conv = jnp.zeros((1, e_pad), jnp.float32)

    ws = []
    for k, n_cls in zip(jax.random.split(k_heads, len(task_names)), task_sizes):
        ws.append(
            jax.random.normal(k, (emb_size, n_cls), jnp.float32)
            * jnp.sqrt(2.0 / emb_size)
        )
    w_heads = jnp.concatenate(ws, axis=1)                      # (E, sum_C) fused heads
    w_heads = jnp.pad(
        w_heads, ((0, e_pad - emb_size), (0, c_pad - sum(task_sizes)))
    )
    b_heads = jnp.zeros((1, c_pad), jnp.float32)
    return (w_conv, b_conv, w_heads, b_heads), (task_names, task_sizes)


# ----------------------------------------------------------------------------
# Full forward: MultitaskClassifier.forward
# ----------------------------------------------------------------------------
def multitask_forward(x_nchw, params, tasks):
    w_conv, b_conv, w_heads, b_heads = params
    task_names, task_sizes = tasks
    N = x_nchw.shape[0]
    k_pad = w_conv.shape[0]
    n_pad = _round_up(N, 8)                          # sublane-full batch block
    x_nhwc = jnp.transpose(x_nchw, (0, 2, 3, 1))     # channels on the lane axis
    patches = im2col_3x3_padded(x_nhwc, k_pad, n_pad)
    logits = fused_forward(patches, w_conv, b_conv, w_heads, b_heads, block_b=8)
    out, off = {}, 0
    for t, c in zip(task_names, task_sizes):
        out[t] = logits[:N, off:off + c]
        off += c
    return out


if __name__ == "__main__":
    N, C_IN, H, W = 2, 4, 16, 16
    EMB_SIZE = 32
    classes = {
        "color": ["red", "green", "blue"],      # 3 classes
        "shape": ["a", "b", "c", "d", "e"],     # 5 classes
        "size": ["small", "large"],             # 2 classes
    }

    key = jax.random.PRNGKey(0)
    k_x, k_p = jax.random.split(key)
    x = jax.random.normal(k_x, (N, C_IN, H, W), jnp.float32)  # NCHW input
    params, tasks = init_params(k_p, C_IN, EMB_SIZE, classes)

    out = multitask_forward(x, params, tasks)
    out = jax.tree_util.tree_map(jax.block_until_ready, out)

    # Pure-jnp reference of the same (padded) math for a correctness check.
    w_conv, b_conv, w_heads, b_heads = params
    x_nhwc = jnp.transpose(x, (0, 2, 3, 1))
    p_ref = im2col_3x3_padded(x_nhwc, w_conv.shape[0], N)
    y_ref = jnp.maximum(jnp.einsum("nhk,ke->nhe", p_ref, w_conv) + b_conv, 0.0)
    emb_ref = jnp.mean(y_ref, axis=1)
    logits_ref = emb_ref @ w_heads + b_heads

    off = 0
    for task, cls_list in classes.items():
        c = len(cls_list)
        assert out[task].shape == (N, c), out[task].shape
        assert out[task].dtype == jnp.float32
        assert jnp.allclose(out[task], logits_ref[:, off:off + c],
                            rtol=1e-3, atol=1e-3), task
        off += c

    print("KERNEL_OK")
</pallas_src>

<mosaic_0001>
module attributes {stable_mosaic.version = 11 : i64} {
  func.func @_fused_kernel(%arg0: i32, %arg1: memref<8x256x128xf32, #tpu.memory_space<vmem>>, %arg2: memref<128x128xf32, #tpu.memory_space<vmem>>, %arg3: memref<1x128xf32, #tpu.memory_space<vmem>>, %arg4: memref<128x128xf32, #tpu.memory_space<vmem>>, %arg5: memref<1x128xf32, #tpu.memory_space<vmem>>, %arg6: memref<8x128xf32, #tpu.memory_space<vmem>>) attributes {dimension_semantics = [#tpu.dimension_semantics<parallel>], iteration_bounds = array<i64: 1>, scalar_prefetch = 0 : i64, scratch_operands = 0 : i64, tpu.core_type = #tpu.core_type<tc>, window_params = [{transform_indices = @transform_0, window_bounds = array<i64: 8, 256, 128>}, {pipeline_mode = #tpu.pipeline_mode<synchronous>, transform_indices = @transform_1, window_bounds = array<i64: 128, 128>}, {pipeline_mode = #tpu.pipeline_mode<synchronous>, transform_indices = @transform_2, window_bounds = array<i64: 1, 128>}, {pipeline_mode = #tpu.pipeline_mode<synchronous>, transform_indices = @transform_3, window_bounds = array<i64: 128, 128>}, {pipeline_mode = #tpu.pipeline_mode<synchronous>, transform_indices = @transform_4, window_bounds = array<i64: 1, 128>}, {transform_indices = @transform_5, window_bounds = array<i64: 8, 128>}]} {
    %c0 = arith.constant 0 : index
    %c0_0 = arith.constant 0 : index
    %0 = vector.load %arg2[%c0, %c0_0] : memref<128x128xf32, #tpu.memory_space<vmem>>, vector<128x128xf32>
    %c0_1 = arith.constant 0 : index
    %c0_2 = arith.constant 0 : index
    %1 = vector.load %arg3[%c0_1, %c0_2] : memref<1x128xf32, #tpu.memory_space<vmem>>, vector<1x128xf32>
    %c0_3 = arith.constant 0 : index
    %c0_4 = arith.constant 0 : index
    %c0_5 = arith.constant 0 : index
    %2 = vector.load %arg1[%c0_3, %c0_4, %c0_5] : memref<8x256x128xf32, #tpu.memory_space<vmem>>, vector<1x256x128xf32>
    %3 = vector.shape_cast %2 : vector<1x256x128xf32> to vector<256x128xf32>
    %cst = arith.constant dense<0.000000e+00> : vector<256x128xf32>
    %4 = tpu.matmul %3, %0, %cst {dimension_numbers = #tpu.dot_dimension_numbers<[1], [0], [0], [1], [0, 0, 1, 1], [], []>} : vector<256x128xf32>, vector<128x128xf32>, vector<256x128xf32> -> vector<256x128xf32>
    %5 = vector.broadcast %1 : vector<1x128xf32> to vector<256x128xf32>
    %6 = arith.addf %4, %5 : vector<256x128xf32>
    %cst_6 = arith.constant 0.000000e+00 : f32
    %7 = vector.broadcast %cst_6 : f32 to vector<256x128xf32>
    %8 = arith.maximumf %6, %7 : vector<256x128xf32>
    %cst_7 = arith.constant dense<0.000000e+00> : vector<128xf32>
    %9 = vector.multi_reduction <add>, %8, %cst_7 [0] : vector<256x128xf32> to vector<128xf32>
    %10 = vector.shape_cast %9 : vector<128xf32> to vector<1x128xf32>
    %cst_8 = arith.constant 2.560000e+02 : f32
    %11 = vector.broadcast %cst_8 : f32 to vector<1x128xf32>
    %12 = arith.divf %10, %11 : vector<1x128xf32>
    %c1 = arith.constant 1 : index
    %c0_9 = arith.constant 0 : index
    %c0_10 = arith.constant 0 : index
    %13 = vector.load %arg1[%c1, %c0_9, %c0_10] : memref<8x256x128xf32, #tpu.memory_space<vmem>>, vector<1x256x128xf32>
    %14 = vector.shape_cast %13 : vector<1x256x128xf32> to vector<256x128xf32>
    %cst_11 = arith.constant dense<0.000000e+00> : vector<256x128xf32>
    %15 = tpu.matmul %14, %0, %cst_11 {dimension_numbers = #tpu.dot_dimension_numbers<[1], [0], [0], [1], [0, 0, 1, 1], [], []>} : vector<256x128xf32>, vector<128x128xf32>, vector<256x128xf32> -> vector<256x128xf32>
    %16 = vector.broadcast %1 : vector<1x128xf32> to vector<256x128xf32>
    %17 = arith.addf %15, %16 : vector<256x128xf32>
    %cst_12 = arith.constant 0.000000e+00 : f32
    %18 = vector.broadcast %cst_12 : f32 to vector<256x128xf32>
    %19 = arith.maximumf %17, %18 : vector<256x128xf32>
    %cst_13 = arith.constant dense<0.000000e+00> : vector<128xf32>
    %20 = vector.multi_reduction <add>, %19, %cst_13 [0] : vector<256x128xf32> to vector<128xf32>
    %21 = vector.shape_cast %20 : vector<128xf32> to vector<1x128xf32>
    %cst_14 = arith.constant 2.560000e+02 : f32
    %22 = vector.broadcast %cst_14 : f32 to vector<1x128xf32>
    %23 = arith.divf %21, %22 : vector<1x128xf32>
    %c2 = arith.constant 2 : index
    %c0_15 = arith.constant 0 : index
    %c0_16 = arith.constant 0 : index
    %24 = vector.load %arg1[%c2, %c0_15, %c0_16] : memref<8x256x128xf32, #tpu.memory_space<vmem>>, vector<1x256x128xf32>
    %25 = vector.shape_cast %24 : vector<1x256x128xf32> to vector<256x128xf32>
    %cst_17 = arith.constant dense<0.000000e+00> : vector<256x128xf32>
    %26 = tpu.matmul %25, %0, %cst_17 {dimension_numbers = #tpu.dot_dimension_numbers<[1], [0], [0], [1], [0, 0, 1, 1], [], []>} : vector<256x128xf32>, vector<128x128xf32>, vector<256x128xf32> -> vector<256x128xf32>
    %27 = vector.broadcast %1 : vector<1x128xf32> to vector<256x128xf32>
    %28 = arith.addf %26, %27 : vector<256x128xf32>
    %cst_18 = arith.constant 0.000000e+00 : f32
    %29 = vector.broadcast %cst_18 : f32 to vector<256x128xf32>
    %30 = arith.maximumf %28, %29 : vector<256x128xf32>
    %cst_19 = arith.constant dense<0.000000e+00> : vector<128xf32>
    %31 = vector.multi_reduction <add>, %30, %cst_19 [0] : vector<256x128xf32> to vector<128xf32>
    %32 = vector.shape_cast %31 : vector<128xf32> to vector<1x128xf32>
    %cst_20 = arith.constant 2.560000e+02 : f32
    %33 = vector.broadcast %cst_20 : f32 to vector<1x128xf32>
    %34 = arith.divf %32, %33 : vector<1x128xf32>
    %c3 = arith.constant 3 : index
    %c0_21 = arith.constant 0 : index
    %c0_22 = arith.constant 0 : index
    %35 = vector.load %arg1[%c3, %c0_21, %c0_22] : memref<8x256x128xf32, #tpu.memory_space<vmem>>, vector<1x256x128xf32>
    %36 = vector.shape_cast %35 : vector<1x256x128xf32> to vector<256x128xf32>
    %cst_23 = arith.constant dense<0.000000e+00> : vector<256x128xf32>
    %37 = tpu.matmul %36, %0, %cst_23 {dimension_numbers = #tpu.dot_dimension_numbers<[1], [0], [0], [1], [0, 0, 1, 1], [], []>} : vector<256x128xf32>, vector<128x128xf32>, vector<256x128xf32> -> vector<256x128xf32>
    %38 = vector.broadcast %1 : vector<1x128xf32> to vector<256x128xf32>
    %39 = arith.addf %37, %38 : vector<256x128xf32>
    %cst_24 = arith.constant 0.000000e+00 : f32
    %40 = vector.broadcast %cst_24 : f32 to vector<256x128xf32>
    %41 = arith.maximumf %39, %40 : vector<256x128xf32>
    %cst_25 = arith.constant dense<0.000000e+00> : vector<128xf32>
    %42 = vector.multi_reduction <add>, %41, %cst_25 [0] : vector<256x128xf32> to vector<128xf32>
    %43 = vector.shape_cast %42 : vector<128xf32> to vector<1x128xf32>
    %cst_26 = arith.constant 2.560000e+02 : f32
    %44 = vector.broadcast %cst_26 : f32 to vector<1x128xf32>
    %45 = arith.divf %43, %44 : vector<1x128xf32>
    %c4 = arith.constant 4 : index
    %c0_27 = arith.constant 0 : index
    %c0_28 = arith.constant 0 : index
    %46 = vector.load %arg1[%c4, %c0_27, %c0_28] : memref<8x256x128xf32, #tpu.memory_space<vmem>>, vector<1x256x128xf32>
    %47 = vector.shape_cast %46 : vector<1x256x128xf32> to vector<256x128xf32>
    %cst_29 = arith.constant dense<0.000000e+00> : vector<256x128xf32>
    %48 = tpu.matmul %47, %0, %cst_29 {dimension_numbers = #tpu.dot_dimension_numbers<[1], [0], [0], [1], [0, 0, 1, 1], [], []>} : vector<256x128xf32>, vector<128x128xf32>, vector<256x128xf32> -> vector<256x128xf32>
    %49 = vector.broadcast %1 : vector<1x128xf32> to vector<256x128xf32>
    %50 = arith.addf %48, %49 : vector<256x128xf32>
    %cst_30 = arith.constant 0.000000e+00 : f32
    %51 = vector.broadcast %cst_30 : f32 to vector<256x128xf32>
    %52 = arith.maximumf %50, %51 : vector<256x128xf32>
    %cst_31 = arith.constant dense<0.000000e+00> : vector<128xf32>
    %53 = vector.multi_reduction <add>, %52, %cst_31 [0] : vector<256x128xf32> to vector<128xf32>
    %54 = vector.shape_cast %53 : vector<128xf32> to vector<1x128xf32>
    %cst_32 = arith.constant 2.560000e+02 : f32
    %55 = vector.broadcast %cst_32 : f32 to vector<1x128xf32>
    %56 = arith.divf %54, %55 : vector<1x128xf32>
    %c5 = arith.constant 5 : index
    %c0_33 = arith.constant 0 : index
    %c0_34 = arith.constant 0 : index
    %57 = vector.load %arg1[%c5, %c0_33, %c0_34] : memref<8x256x128xf32, #tpu.memory_space<vmem>>, vector<1x256x128xf32>
    %58 = vector.shape_cast %57 : vector<1x256x128xf32> to vector<256x128xf32>
    %cst_35 = arith.constant dense<0.000000e+00> : vector<256x128xf32>
    %59 = tpu.matmul %58, %0, %cst_35 {dimension_numbers = #tpu.dot_dimension_numbers<[1], [0], [0], [1], [0, 0, 1, 1], [], []>} : vector<256x128xf32>, vector<128x128xf32>, vector<256x128xf32> -> vector<256x128xf32>
    %60 = vector.broadcast %1 : vector<1x128xf32> to vector<256x128xf32>
    %61 = arith.addf %59, %60 : vector<256x128xf32>
    %cst_36 = arith.constant 0.000000e+00 : f32
    %62 = vector.broadcast %cst_36 : f32 to vector<256x128xf32>
    %63 = arith.maximumf %61, %62 : vector<256x128xf32>
    %cst_37 = arith.constant dense<0.000000e+00> : vector<128xf32>
    %64 = vector.multi_reduction <add>, %63, %cst_37 [0] : vector<256x128xf32> to vector<128xf32>
    %65 = vector.shape_cast %64 : vector<128xf32> to vector<1x128xf32>
    %cst_38 = arith.constant 2.560000e+02 : f32
    %66 = vector.broadcast %cst_38 : f32 to vector<1x128xf32>
    %67 = arith.divf %65, %66 : vector<1x128xf32>
    %c6 = arith.constant 6 : index
    %c0_39 = arith.constant 0 : index
    %c0_40 = arith.constant 0 : index
    %68 = vector.load %arg1[%c6, %c0_39, %c0_40] : memref<8x256x128xf32, #tpu.memory_space<vmem>>, vector<1x256x128xf32>
    %69 = vector.shape_cast %68 : vector<1x256x128xf32> to vector<256x128xf32>
    %cst_41 = arith.constant dense<0.000000e+00> : vector<256x128xf32>
    %70 = tpu.matmul %69, %0, %cst_41 {dimension_numbers = #tpu.dot_dimension_numbers<[1], [0], [0], [1], [0, 0, 1, 1], [], []>} : vector<256x128xf32>, vector<128x128xf32>, vector<256x128xf32> -> vector<256x128xf32>
    %71 = vector.broadcast %1 : vector<1x128xf32> to vector<256x128xf32>
    %72 = arith.addf %70, %71 : vector<256x128xf32>
    %cst_42 = arith.constant 0.000000e+00 : f32
    %73 = vector.broadcast %cst_42 : f32 to vector<256x128xf32>
    %74 = arith.maximumf %72, %73 : vector<256x128xf32>
    %cst_43 = arith.constant dense<0.000000e+00> : vector<128xf32>
    %75 = vector.multi_reduction <add>, %74, %cst_43 [0] : vector<256x128xf32> to vector<128xf32>
    %76 = vector.shape_cast %75 : vector<128xf32> to vector<1x128xf32>
    %cst_44 = arith.constant 2.560000e+02 : f32
    %77 = vector.broadcast %cst_44 : f32 to vector<1x128xf32>
    %78 = arith.divf %76, %77 : vector<1x128xf32>
    %c7 = arith.constant 7 : index
    %c0_45 = arith.constant 0 : index
    %c0_46 = arith.constant 0 : index
    %79 = vector.load %arg1[%c7, %c0_45, %c0_46] : memref<8x256x128xf32, #tpu.memory_space<vmem>>, vector<1x256x128xf32>
    %80 = vector.shape_cast %79 : vector<1x256x128xf32> to vector<256x128xf32>
    %cst_47 = arith.constant dense<0.000000e+00> : vector<256x128xf32>
    %81 = tpu.matmul %80, %0, %cst_47 {dimension_numbers = #tpu.dot_dimension_numbers<[1], [0], [0], [1], [0, 0, 1, 1], [], []>} : vector<256x128xf32>, vector<128x128xf32>, vector<256x128xf32> -> vector<256x128xf32>
    %82 = vector.broadcast %1 : vector<1x128xf32> to vector<256x128xf32>
    %83 = arith.addf %81, %82 : vector<256x128xf32>
    %cst_48 = arith.constant 0.000000e+00 : f32
    %84 = vector.broadcast %cst_48 : f32 to vector<256x128xf32>
    %85 = arith.maximumf %83, %84 : vector<256x128xf32>
    %cst_49 = arith.constant dense<0.000000e+00> : vector<128xf32>
    %86 = vector.multi_reduction <add>, %85, %cst_49 [0] : vector<256x128xf32> to vector<128xf32>
    %87 = vector.shape_cast %86 : vector<128xf32> to vector<1x128xf32>
    %cst_50 = arith.constant 2.560000e+02 : f32
    %88 = vector.broadcast %cst_50 : f32 to vector<1x128xf32>
    %89 = arith.divf %87, %88 : vector<1x128xf32>
    %90 = tpu.concatenate %12, %23, %34, %45, %56, %67, %78, %89 in 0 : vector<1x128xf32>, vector<1x128xf32>, vector<1x128xf32>, vector<1x128xf32>, vector<1x128xf32>, vector<1x128xf32>, vector<1x128xf32>, vector<1x128xf32> -> vector<8x128xf32>
    %c0_51 = arith.constant 0 : index
    %c0_52 = arith.constant 0 : index
    %91 = vector.load %arg4[%c0_51, %c0_52] : memref<128x128xf32, #tpu.memory_space<vmem>>, vector<128x128xf32>
    %cst_53 = arith.constant dense<0.000000e+00> : vector<8x128xf32>
    %92 = tpu.matmul %90, %91, %cst_53 {dimension_numbers = #tpu.dot_dimension_numbers<[1], [0], [0], [1], [0, 0, 1, 1], [], []>} : vector<8x128xf32>, vector<128x128xf32>, vector<8x128xf32> -> vector<8x128xf32>
    %c0_54 = arith.constant 0 : index
    %c0_55 = arith.constant 0 : index
    %93 = vector.load %arg5[%c0_54, %c0_55] : memref<1x128xf32, #tpu.memory_space<vmem>>, vector<1x128xf32>
    %94 = vector.broadcast %93 : vector<1x128xf32> to vector<8x128xf32>
    %95 = arith.addf %92, %94 : vector<8x128xf32>
    %c0_56 = arith.constant 0 : index
    %c0_57 = arith.constant 0 : index
    %96 = vector.load %arg6[%c0_56, %c0_57] : memref<8x128xf32, #tpu.memory_space<vmem>>, vector<8x128xf32>
    tpu.vector_store %arg6[%c0_56, %c0_57], %95 {strides = array<i32>} : memref<8x128xf32, #tpu.memory_space<vmem>>, vector<8x128xf32>,
    return
  }
  func.func @transform_0(%arg0: i32) -> (i32, i32, i32) {
    %c0_i32 = arith.constant 0 : i32
    %c0_i32_0 = arith.constant 0 : i32
    %c0_i32_1 = arith.constant 0 : i32
    return %arg0, %c0_i32, %c0_i32_0 : i32, i32, i32
  }
  func.func @transform_1(%arg0: i32) -> (i32, i32) {
    %c0_i32 = arith.constant 0 : i32
    %c0_i32_0 = arith.constant 0 : i32
    %c0_i32_1 = arith.constant 0 : i32
    return %c0_i32, %c0_i32_0 : i32, i32
  }
  func.func @transform_2(%arg0: i32) -> (i32, i32) {
    %c0_i32 = arith.constant 0 : i32
    %c0_i32_0 = arith.constant 0 : i32
    %c0_i32_1 = arith.constant 0 : i32
    return %c0_i32, %c0_i32_0 : i32, i32
  }
  func.func @transform_3(%arg0: i32) -> (i32, i32) {
    %c0_i32 = arith.constant 0 : i32
    %c0_i32_0 = arith.constant 0 : i32
    %c0_i32_1 = arith.constant 0 : i32
    return %c0_i32, %c0_i32_0 : i32, i32
  }
  func.func @transform_4(%arg0: i32) -> (i32, i32) {
    %c0_i32 = arith.constant 0 : i32
    %c0_i32_0 = arith.constant 0 : i32
    %c0_i32_1 = arith.constant 0 : i32
    return %c0_i32, %c0_i32_0 : i32, i32
  }
  func.func @transform_5(%arg0: i32) -> (i32, i32) {
    %c0_i32 = arith.constant 0 : i32
    %c0_i32_0 = arith.constant 0 : i32
    return %arg0, %c0_i32 : i32, i32
  }
}

</mosaic_0001>

<llo_original>
// kernel: tpu_custom_call.1
$region0: #{tpu_custom_call.1}
  #allocation0 [shape = 'u32[]', space=smem, size = 0x4, offset = 0x4, fixed_abs, tag = 'smem constant byte address 0x4 - core index']
  #allocation1 [shape = 'u32[144,128]{1,0:T(1,128)}', space=vmem, size = 0x12000, scoped, tag = 'internal scratch']
  %s0 = inlined_call_operand.hbm [shape: f32[8,256,128], index: 0, kind: input, shape index: {}]
  %s1 = inlined_call_operand.hbm [shape: f32[128,128], index: 1, kind: input, shape index: {}]
  %s2 = inlined_call_operand.vmem [shape: f32[1,128], index: 2, kind: input, shape index: {}]
  %s3 = inlined_call_operand.hbm [shape: f32[128,128], index: 3, kind: input, shape index: {}]
  %s4 = inlined_call_operand.vmem [shape: f32[1,128], index: 4, kind: input, shape index: {}]
  %s5 = inlined_call_operand.hbm [shape: f32[8,128], index: 5, kind: output, shape index: {}]
  %s6 = sld [smem:[#allocation0]]
  $region42: #{tpu_custom_call.1} parent=0
    _
  %s8 = ssub.s32 1, %s6
  %s9 = scalar_select 0, %s8, %s6
  $region1: #{tpu_custom_call.1} parent=0
    #allocation2 [shape = 'u8[1048576]{0}', space=vmem, size = 0x100000, scoped, tag = 'input window, operand 0, single buffered']
    #allocation3 [shape = 's32[1]{0}', space=sflag, size = 0x4, scoped, tag = 'scoped memory for tpu_custom_call.1']
    #allocation4 [shape = 's32[1]{0}', space=sflag, size = 0x4, scoped, tag = 'scoped memory for tpu_custom_call.1']
    #allocation5 [shape = 'u8[65536]{0}', space=vmem, size = 0x10000, scoped, tag = 'input window, operand 1, single buffered']
    #allocation6 [shape = 's32[1]{0}', space=sflag, size = 0x4, scoped, tag = 'scoped memory for tpu_custom_call.1']
    #allocation7 [shape = 'u8[65536]{0}', space=vmem, size = 0x10000, scoped, tag = 'input window, operand 3, single buffered']
    #allocation8 [shape = 'u8[4096]{0}', space=vmem, size = 0x1000, scoped, tag = 'output window, operand 0, single buffered']
    %10 = vsyncpa [#allocation3], 0
    %11 = vsyncpa [#allocation6], 0
    %12 = vsyncpa [#allocation4], 0
    // Predicated region
    $region2: #{tpu_custom_call.1} parent=1 // pred_check
      _
    $region3: #{tpu_custom_call.1} parent=1 // pred_check_branch
      %14 = sbr.rel (0) target = $region5
    $region4: #{tpu_custom_call.1} parent=1 // pred_region
      %s16 = ssub.s32 32768, 32768
      %17 = vsyncadd [#allocation3], %s16
      %s18 = sshll.u32 [#allocation2], 4
      %s19 = int_to_ptr.vmem [resolvable:$true] %s18
      %24 = dma.hbm_to_vmem [thread:$0]  %s0, 32768, %s19, [#allocation3], 128, 128, 8
    $region5: #{tpu_custom_call.1} parent=1 // pred_fallthru
      _
    // Predicated region
    $region6: #{tpu_custom_call.1} parent=1 // pred_check
      _
    $region7: #{tpu_custom_call.1} parent=1 // pred_check_branch
      %26 = sbr.rel (0) target = $region9
    $region8: #{tpu_custom_call.1} parent=1 // pred_region
      %s28 = ssub.s32 2048, 2048
      %29 = vsyncadd [#allocation6], %s28
      %s30 = sshll.u32 [#allocation5], 4
      %s31 = int_to_ptr.vmem [resolvable:$true] %s30
      %36 = dma.hbm_to_vmem [thread:$0]  %s1, 2048, %s31, [#allocation6], 128, 128, 8
    $region9: #{tpu_custom_call.1} parent=1 // pred_fallthru
      _
    // Predicated region
    $region10: #{tpu_custom_call.1} parent=1 // pred_check
      _
    $region11: #{tpu_custom_call.1} parent=1 // pred_check_branch
      %38 = sbr.rel (0) target = $region13
    $region12: #{tpu_custom_call.1} parent=1 // pred_region
      _
    $region13: #{tpu_custom_call.1} parent=1 // pred_fallthru
      _
    // Predicated region
    $region14: #{tpu_custom_call.1} parent=1 // pred_check
      _
    $region15: #{tpu_custom_call.1} parent=1 // pred_check_branch
      %40 = sbr.rel (0) target = $region17
    $region16: #{tpu_custom_call.1} parent=1 // pred_region
      %s42 = ssub.s32 2048, 2048
      %43 = vsyncadd [#allocation6], %s42
      %s44 = sshll.u32 [#allocation7], 4
      %s45 = int_to_ptr.vmem [resolvable:$true] %s44
      %50 = dma.hbm_to_vmem [thread:$0]  %s3, 2048, %s45, [#allocation6], 128, 128, 8
    $region17: #{tpu_custom_call.1} parent=1 // pred_fallthru
      _
    // Predicated region
    $region18: #{tpu_custom_call.1} parent=1 // pred_check
      _
    $region19: #{tpu_custom_call.1} parent=1 // pred_check_branch
      %52 = sbr.rel (0) target = $region21
    $region20: #{tpu_custom_call.1} parent=1 // pred_region
      _
    $region21: #{tpu_custom_call.1} parent=1 // pred_fallthru
      _
    // Predicated region
    $region22: #{tpu_custom_call.1} parent=1 // pred_check
      _
    $region23: #{tpu_custom_call.1} parent=1 // pred_check_branch
      %54 = sbr.rel (0) target = $region25
    $region24: #{tpu_custom_call.1} parent=1 // pred_region
      %55 = dma.done [#allocation3], 32768
    $region25: #{tpu_custom_call.1} parent=1 // pred_fallthru
      _
    // Predicated region
    $region26: #{tpu_custom_call.1} parent=1 // pred_check
      _
    $region27: #{tpu_custom_call.1} parent=1 // pred_check_branch
      %57 = sbr.rel (0) target = $region29
    $region28: #{tpu_custom_call.1} parent=1 // pred_region
      %58 = dma.done [#allocation6], 2048
    $region29: #{tpu_custom_call.1} parent=1 // pred_fallthru
      _
    // Predicated region
    $region30: #{tpu_custom_call.1} parent=1 // pred_check
      _
    $region31: #{tpu_custom_call.1} parent=1 // pred_check_branch
      %60 = sbr.rel (0) target = $region33
    $region32: #{tpu_custom_call.1} parent=1 // pred_region
      %61 = dma.done [#allocation6], 2048
    $region33: #{tpu_custom_call.1} parent=1 // pred_fallthru
      _
    %v62 = vld [vmem:[#allocation5] sm:$0xff]
    %v63 = vld [vmem:[#allocation5 + $0x8] sm:$0xff]
    %v64 = vld [vmem:[#allocation5 + $0x10] sm:$0xff]
    %v65 = vld [vmem:[#allocation5 + $0x18] sm:$0xff]
    %v66 = vld [vmem:[#allocation5 + $0x20] sm:$0xff]
    %v67 = vld [vmem:[#allocation5 + $0x28] sm:$0xff]
    %v68 = vld [vmem:[#allocation5 + $0x30] sm:$0xff]
    %v69 = vld [vmem:[#allocation5 + $0x38] sm:$0xff]
    %v70 = vld [vmem:[#allocation5 + $0x40] sm:$0xff]
    %v71 = vld [vmem:[#allocation5 + $0x48] sm:$0xff]
    %v72 = vld [vmem:[#allocation5 + $0x50] sm:$0xff]
    %v73 = vld [vmem:[#allocation5 + $0x58] sm:$0xff]
    %v74 = vld [vmem:[#allocation5 + $0x60] sm:$0xff]
    %v75 = vld [vmem:[#allocation5 + $0x68] sm:$0xff]
    %v76 = vld [vmem:[#allocation5 + $0x70] sm:$0xff]
    %v77 = vld [vmem:[#allocation5 + $0x78] sm:$0xff]
    %v78 = vld [vmem:[%s2] sm:$0x1]
    %v79 = vld [vmem:[#allocation2] sm:$0xff]
    %v80 = vld [vmem:[#allocation2 + $0x8] sm:$0xff]
    %v81 = vld [vmem:[#allocation2 + $0x10] sm:$0xff]
    %v82 = vld [vmem:[#allocation2 + $0x18] sm:$0xff]
    %v83 = vld [vmem:[#allocation2 + $0x20] sm:$0xff]
    %v84 = vld [vmem:[#allocation2 + $0x28] sm:$0xff]
    %v85 = vld [vmem:[#allocation2 + $0x30] sm:$0xff]
    %v86 = vld [vmem:[#allocation2 + $0x38] sm:$0xff]
    %v87 = vld [vmem:[#allocation2 + $0x40] sm:$0xff]
    %v88 = vld [vmem:[#allocation2 + $0x48] sm:$0xff]
    %v89 = vld [vmem:[#allocation2 + $0x50] sm:$0xff]
    %v90 = vld [vmem:[#allocation2 + $0x58] sm:$0xff]
    %v91 = vld [vmem:[#allocation2 + $0x60] sm:$0xff]
    %v92 = vld [vmem:[#allocation2 + $0x68] sm:$0xff]
    %v93 = vld [vmem:[#allocation2 + $0x70] sm:$0xff]
    %v94 = vld [vmem:[#allocation2 + $0x78] sm:$0xff]
    %v95 = vld [vmem:[#allocation2 + $0x80] sm:$0xff]
    %v96 = vld [vmem:[#allocation2 + $0x88] sm:$0xff]
    %v97 = vld [vmem:[#allocation2 + $0x90] sm:$0xff]
    %v98 = vld [vmem:[#allocation2 + $0x98] sm:$0xff]
    %v99 = vld [vmem:[#allocation2 + $0xa0] sm:$0xff]
    %v100 = vld [vmem:[#allocation2 + $0xa8] sm:$0xff]
    %v101 = vld [vmem:[#allocation2 + $0xb0] sm:$0xff]
    %v102 = vld [vmem:[#allocation2 + $0xb8] sm:$0xff]
    %v103 = vld [vmem:[#allocation2 + $0xc0] sm:$0xff]
    %v104 = vld [vmem:[#allocation2 + $0xc8] sm:$0xff]
    %v105 = vld [vmem:[#allocation2 + $0xd0] sm:$0xff]
    %v106 = vld [vmem:[#allocation2 + $0xd8] sm:$0xff]
    %v107 = vld [vmem:[#allocation2 + $0xe0] sm:$0xff]
    %v108 = vld [vmem:[#allocation2 + $0xe8] sm:$0xff]
    %v109 = vld [vmem:[#allocation2 + $0xf0] sm:$0xff]
    %v110 = vld [vmem:[#allocation2 + $0xf8] sm:$0xff]
    %v112 = vlaneseq
    %v113 = vshrl.u32 %v112, 7
    %v114 = vsub.s32 0, %v113
    %v115 = vrot.slane %v78, %v114
    %117 = vmatprep.subr.mxu0 0.0
    %118 = vmatpush1.msra.mxu0 %v62
    %119 = vmatprep.subr.mxu0 0.0
    %120 = vmatpush1.msra.mxu0 %v63
    %121 = vmatprep.subr.mxu0 0.0
    %122 = vmatpush1.msra.mxu0 %v64
    %123 = vmatprep.subr.mxu0 0.0
    %124 = vmatpush1.msra.mxu0 %v65
    %125 = vmatprep.subr.mxu0 0.0
    %126 = vmatpush1.msra.mxu0 %v66
    %127 = vmatprep.subr.mxu0 0.0
    %128 = vmatpush1.msra.mxu0 %v67
    %129 = vmatprep.subr.mxu0 0.0
    %130 = vmatpush1.msra.mxu0 %v68
    %131 = vmatprep.subr.mxu0 0.0
    %132 = vmatpush1.msra.mxu0 %v69
    %133 = vmatprep.subr.mxu0 0.0
    %134 = vmatpush1.msra.mxu0 %v70
    %135 = vmatprep.subr.mxu0 0.0
    %136 = vmatpush1.msra.mxu0 %v71
    %137 = vmatprep.subr.mxu0 0.0
    %138 = vmatpush1.msra.mxu0 %v72
    %139 = vmatprep.subr.mxu0 0.0
    %140 = vmatpush1.msra.mxu0 %v73
    %141 = vmatprep.subr.mxu0 0.0
    %142 = vmatpush1.msra.mxu0 %v74
    %143 = vmatprep.subr.mxu0 0.0
    %144 = vmatpush1.msra.mxu0 %v75
    %145 = vmatprep.subr.mxu0 0.0
    %146 = vmatpush1.msra.mxu0 %v76
    %147 = vmatprep.subr.mxu0 0.0
    %148 = vmatpush1.msra.mxu0 %v77
    %149 = vmatprep.subr.mxu0 0.0
    %150 = vmatpush1.msra.mxu0 0.0
    %151 = vmatprep.subr.mxu0 0.0
    %152 = vmatpush1.msra.mxu0 0.0
    %153 = vmatprep.subr.mxu0 0.0
    %154 = vmatpush1.msra.mxu0 0.0
    %155 = vmatprep.subr.mxu0 0.0
    %156 = vmatpush1.msra.mxu0 0.0
    %157 = vmatprep.subr.mxu0 0.0
    %158 = vmatpush1.msra.mxu0 0.0
    %159 = vmatprep.subr.mxu0 0.0
    %160 = vmatpush1.msra.mxu0 0.0
    %161 = vmatprep.subr.mxu0 0.0
    %162 = vmatpush1.msra.mxu0 0.0
    %163 = vmatprep.subr.mxu0 0.0
    %164 = vmatpush1.msra.mxu0 0.0
    %165 = vmatprep.subr.mxu0 0.0
    %166 = vmatpush1.msra.mxu0 0.0
    %167 = vmatprep.subr.mxu0 0.0
    %168 = vmatpush1.msra.mxu0 0.0
    %169 = vmatprep.subr.mxu0 0.0
    %170 = vmatpush1.msra.mxu0 0.0
    %171 = vmatprep.subr.mxu0 0.0
    %172 = vmatpush1.msra.mxu0 0.0
    %173 = vmatprep.subr.mxu0 0.0
    %174 = vmatpush1.msra.mxu0 0.0
    %175 = vmatprep.subr.mxu0 0.0
    %176 = vmatpush1.msra.mxu0 0.0
    %177 = vmatprep.subr.mxu0 0.0
    %178 = vmatpush1.msra.mxu0 0.0
    %179 = vmatprep.subr.mxu0 0.0
    %180 = vmatpush1.msra.mxu0 0.0
    %181 = vmatprep.mubr.f32.mxu0 0.0
    %182 = vmatmul.mubr.f32.gmra.mrb[0].mxu0 %v79
    %v183 = vpop.f32.mrb[0].mxu0
    %v184 = vadd.f32 %v115, %v183
    %v185 = vpop.f32.mrb[0].mxu0
    %186 = vmatprep.mubr.f32.mxu0 0.0
    %187 = vmatmul.mubr.f32.gmra.mrb[0].mxu0 %v80
    %v188 = vpop.f32.mrb[0].mxu0
    %v189 = vadd.f32 %v115, %v188
    %v190 = vpop.f32.mrb[0].mxu0
    %191 = vmatprep.mubr.f32.mxu0 0.0
    %192 = vmatmul.mubr.f32.gmra.mrb[0].mxu0 %v81
    %v193 = vpop.f32.mrb[0].mxu0
    %v194 = vadd.f32 %v115, %v193
    %v195 = vpop.f32.mrb[0].mxu0
    %196 = vmatprep.mubr.f32.mxu0 0.0
    %197 = vmatmul.mubr.f32.gmra.mrb[0].mxu0 %v82
    %v198 = vpop.f32.mrb[0].mxu0
    %v199 = vadd.f32 %v115, %v198
    %v200 = vpop.f32.mrb[0].mxu0
    %201 = vmatprep.mubr.f32.mxu0 0.0
    %202 = vmatmul.mubr.f32.gmra.mrb[0].mxu0 %v83
    %v203 = vpop.f32.mrb[0].mxu0
    %v204 = vadd.f32 %v115, %v203
    %v205 = vpop.f32.mrb[0].mxu0
    %206 = vmatprep.mubr.f32.mxu0 0.0
    %207 = vmatmul.mubr.f32.gmra.mrb[0].mxu0 %v84
    %v208 = vpop.f32.mrb[0].mxu0
    %v209 = vadd.f32 %v115, %v208
    %v210 = vpop.f32.mrb[0].mxu0
    %211 = vmatprep.mubr.f32.mxu0 0.0
    %212 = vmatmul.mubr.f32.gmra.mrb[0].mxu0 %v85
    %v213 = vpop.f32.mrb[0].mxu0
    %v214 = vadd.f32 %v115, %v213
    %v215 = vpop.f32.mrb[0].mxu0
    %216 = vmatprep.mubr.f32.mxu0 0.0
    %217 = vmatmul.mubr.f32.gmra.mrb[0].mxu0 %v86
    %v218 = vpop.f32.mrb[0].mxu0
    %v219 = vadd.f32 %v115, %v218
    %v220 = vpop.f32.mrb[0].mxu0
    %221 = vmatprep.mubr.f32.mxu0 0.0
    %222 = vmatmul.mubr.f32.gmra.mrb[0].mxu0 %v87
    %v223 = vpop.f32.mrb[0].mxu0
    %v224 = vadd.f32 %v115, %v223
    %v225 = vpop.f32.mrb[0].mxu0
    %226 = vmatprep.mubr.f32.mxu0 0.0
    %227 = vmatmul.mubr.f32.gmra.mrb[0].mxu0 %v88
    %v228 = vpop.f32.mrb[0].mxu0
    %v229 = vadd.f32 %v115, %v228
    %v230 = vpop.f32.mrb[0].mxu0
    %231 = vmatprep.mubr.f32.mxu0 0.0
    %232 = vmatmul.mubr.f32.gmra.mrb[0].mxu0 %v89
    %v233 = vpop.f32.mrb[0].mxu0
    %v234 = vadd.f32 %v115, %v233
    %v235 = vpop.f32.mrb[0].mxu0
    %236 = vmatprep.mubr.f32.mxu0 0.0
    %237 = vmatmul.mubr.f32.gmra.mrb[0].mxu0 %v90
    %v238 = vpop.f32.mrb[0].mxu0
    %v239 = vadd.f32 %v115, %v238
    %v240 = vpop.f32.mrb[0].mxu0
    %241 = vmatprep.mubr.f32.mxu0 0.0
    %242 = vmatmul.mubr.f32.gmra.mrb[0].mxu0 %v91
    %v243 = vpop.f32.mrb[0].mxu0
    %v244 = vadd.f32 %v115, %v243
    %v245 = vpop.f32.mrb[0].mxu0
    %246 = vmatprep.mubr.f32.mxu0 0.0
    %247 = vmatmul.mubr.f32.gmra.mrb[0].mxu0 %v92
    %v248 = vpop.f32.mrb[0].mxu0
    %v249 = vadd.f32 %v115, %v248
    %v250 = vpop.f32.mrb[0].mxu0
    %251 = vmatprep.mubr.f32.mxu0 0.0
    %252 = vmatmul.mubr.f32.gmra.mrb[0].mxu0 %v93
    %v253 = vpop.f32.mrb[0].mxu0
    %v254 = vadd.f32 %v115, %v253
    %v255 = vpop.f32.mrb[0].mxu0
    %256 = vmatprep.mubr.f32.mxu0 0.0
    %257 = vmatmul.mubr.f32.gmra.mrb[0].mxu0 %v94
    %v258 = vpop.f32.mrb[0].mxu0
    %v259 = vadd.f32 %v115, %v258
    %v260 = vpop.f32.mrb[0].mxu0
    %261 = vmatprep.mubr.f32.mxu0 0.0
    %262 = vmatmul.mubr.f32.gmra.mrb[0].mxu0 %v95
    %v263 = vpop.f32.mrb[0].mxu0
    %v264 = vadd.f32 %v115, %v263
    %v265 = vpop.f32.mrb[0].mxu0
    %266 = vmatprep.mubr.f32.mxu0 0.0
    %267 = vmatmul.mubr.f32.gmra.mrb[0].mxu0 %v96
    %v268 = vpop.f32.mrb[0].mxu0
    %v269 = vadd.f32 %v115, %v268
    %v270 = vpop.f32.mrb[0].mxu0
    %271 = vmatprep.mubr.f32.mxu0 0.0
    %272 = vmatmul.mubr.f32.gmra.mrb[0].mxu0 %v97
    %v273 = vpop.f32.mrb[0].mxu0
    %v274 = vadd.f32 %v115, %v273
    %v275 = vpop.f32.mrb[0].mxu0
    %276 = vmatprep.mubr.f32.mxu0 0.0
    %277 = vmatmul.mubr.f32.gmra.mrb[0].mxu0 %v98
    %v278 = vpop.f32.mrb[0].mxu0
    %v279 = vadd.f32 %v115, %v278
    %v280 = vpop.f32.mrb[0].mxu0
    %281 = vmatprep.mubr.f32.mxu0 0.0
    %282 = vmatmul.mubr.f32.gmra.mrb[0].mxu0 %v99
    %v283 = vpop.f32.mrb[0].mxu0
    %v284 = vadd.f32 %v115, %v283
    %v285 = vpop.f32.mrb[0].mxu0
    %286 = vmatprep.mubr.f32.mxu0 0.0
    %287 = vmatmul.mubr.f32.gmra.mrb[0].mxu0 %v100
    %v288 = vpop.f32.mrb[0].mxu0
    %v289 = vadd.f32 %v115, %v288
    %v290 = vpop.f32.mrb[0].mxu0
    %291 = vmatprep.mubr.f32.mxu0 0.0
    %292 = vmatmul.mubr.f32.gmra.mrb[0].mxu0 %v101
    %v293 = vpop.f32.mrb[0].mxu0
    %v294 = vadd.f32 %v115, %v293
    %v295 = vpop.f32.mrb[0].mxu0
    %296 = vmatprep.mubr.f32.mxu0 0.0
    %297 = vmatmul.mubr.f32.gmra.mrb[0].mxu0 %v102
    %v298 = vpop.f32.mrb[0].mxu0
    %v299 = vadd.f32 %v115, %v298
    %v300 = vpop.f32.mrb[0].mxu0
    %301 = vmatprep.mubr.f32.mxu0 0.0
    %302 = vmatmul.mubr.f32.gmra.mrb[0].mxu0 %v103
    %v303 = vpop.f32.mrb[0].mxu0
    %v304 = vadd.f32 %v115, %v303
    %v305 = vpop.f32.mrb[0].mxu0
    %306 = vmatprep.mubr.f32.mxu0 0.0
    %307 = vmatmul.mubr.f32.gmra.mrb[0].mxu0 %v104
    %v308 = vpop.f32.mrb[0].mxu0
    %v309 = vadd.f32 %v115, %v308
    %v310 = vpop.f32.mrb[0].mxu0
    %311 = vmatprep.mubr.f32.mxu0 0.0
    %312 = vmatmul.mubr.f32.gmra.mrb[0].mxu0 %v105
    %v313 = vpop.f32.mrb[0].mxu0
    %v314 = vadd.f32 %v115, %v313
    %v315 = vpop.f32.mrb[0].mxu0
    %316 = vmatprep.mubr.f32.mxu0 0.0
    %317 = vmatmul.mubr.f32.gmra.mrb[0].mxu0 %v106
    %v318 = vpop.f32.mrb[0].mxu0
    %v319 = vadd.f32 %v115, %v318
    %v320 = vpop.f32.mrb[0].mxu0
    %321 = vmatprep.mubr.f32.mxu0 0.0
    %322 = vmatmul.mubr.f32.gmra.mrb[0].mxu0 %v107
    %v323 = vpop.f32.mrb[0].mxu0
    %v324 = vadd.f32 %v115, %v323
    %v325 = vpop.f32.mrb[0].mxu0
    %326 = vmatprep.mubr.f32.mxu0 0.0
    %327 = vmatmul.mubr.f32.gmra.mrb[0].mxu0 %v108
    %v328 = vpop.f32.mrb[0].mxu0
    %v329 = vadd.f32 %v115, %v328
    %v330 = vpop.f32.mrb[0].mxu0
    %331 = vmatprep.mubr.f32.mxu0 0.0
    %332 = vmatmul.mubr.f32.gmra.mrb[0].mxu0 %v109
    %v333 = vpop.f32.mrb[0].mxu0
    %v334 = vadd.f32 %v115, %v333
    %v335 = vpop.f32.mrb[0].mxu0
    %336 = vmatprep.mubr.f32.mxu0 0.0
    %337 = vmatmul.mubr.f32.gmra.mrb[0].mxu0 %v110
    %v338 = vpop.f32.mrb[0].mxu0
    %v339 = vadd.f32 %v115, %v338
    %v340 = vpop.f32.mrb[0].mxu0
    %341 = vdwg.mxu0
    %v342 = vmax.f32 %v184, 0.0
    %v343 = vmax.f32 %v189, 0.0
    %v344 = vmax.f32 %v194, 0.0
    %v345 = vmax.f32 %v199, 0.0
    %v346 = vmax.f32 %v204, 0.0
    %v347 = vmax.f32 %v209, 0.0
    %v348 = vmax.f32 %v214, 0.0
    %v349 = vmax.f32 %v219, 0.0
    %v350 = vmax.f32 %v224, 0.0
    %v351 = vmax.f32 %v229, 0.0
    %v352 = vmax.f32 %v234, 0.0
    %v353 = vmax.f32 %v239, 0.0
    %v354 = vmax.f32 %v244, 0.0
    %v355 = vmax.f32 %v249, 0.0
    %v356 = vmax.f32 %v254, 0.0
    %v357 = vmax.f32 %v259, 0.0
    %v358 = vmax.f32 %v264, 0.0
    %v359 = vmax.f32 %v269, 0.0
    %v360 = vmax.f32 %v274, 0.0
    %v361 = vmax.f32 %v279, 0.0
    %v362 = vmax.f32 %v284, 0.0
    %v363 = vmax.f32 %v289, 0.0
    %v364 = vmax.f32 %v294, 0.0
    %v365 = vmax.f32 %v299, 0.0
    %v366 = vmax.f32 %v304, 0.0
    %v367 = vmax.f32 %v309, 0.0
    %v368 = vmax.f32 %v314, 0.0
    %v369 = vmax.f32 %v319, 0.0
    %v370 = vmax.f32 %v324, 0.0
    %v371 = vmax.f32 %v329, 0.0
    %v372 = vmax.f32 %v334, 0.0
    %v373 = vmax.f32 %v339, 0.0
    %v374 = vadd.f32 %v342, %v343
    %v375 = vadd.f32 %v374, %v344
    %v376 = vadd.f32 %v375, %v345
    %v377 = vadd.f32 %v376, %v346
    %v378 = vadd.f32 %v377, %v347
    %v379 = vadd.f32 %v378, %v348
    %v380 = vadd.f32 %v379, %v349
    %v381 = vadd.f32 %v380, %v350
    %v382 = vadd.f32 %v381, %v351
    %v383 = vadd.f32 %v382, %v352
    %v384 = vadd.f32 %v383, %v353
    %v385 = vadd.f32 %v384, %v354
    %v386 = vadd.f32 %v385, %v355
    %v387 = vadd.f32 %v386, %v356
    %v388 = vadd.f32 %v387, %v357
    %v389 = vadd.f32 %v388, %v358
    %v390 = vadd.f32 %v389, %v359
    %v391 = vadd.f32 %v390, %v360
    %v392 = vadd.f32 %v391, %v361
    %v393 = vadd.f32 %v392, %v362
    %v394 = vadd.f32 %v393, %v363
    %v395 = vadd.f32 %v394, %v364
    %v396 = vadd.f32 %v395, %v365
    %v397 = vadd.f32 %v396, %v366
    %v398 = vadd.f32 %v397, %v367
    %v399 = vadd.f32 %v398, %v368
    %v400 = vadd.f32 %v399, %v369
    %v401 = vadd.f32 %v400, %v370
    %v402 = vadd.f32 %v401, %v371
    %v403 = vadd.f32 %v402, %v372
    %v404 = vadd.f32 %v403, %v373
    %v405 = vrot.slane %v404, 4
    %v406 = vadd.f32 %v404, %v405
    %v407 = vrot.slane %v406, 2
    %v408 = vadd.f32 %v406, %v407
    %v409 = vrot.slane %v408, 1
    %v410 = vadd.f32 %v408, %v409
    %v411 = vrcp.pop 256.0
    %v412 = vmul.f32 %v410, %v411
    %s413 = scalar_lea.vmem [#allocation2], 256
    %v414 = vld [vmem:[%s413] sm:$0xff]
    %v415 = vld [vmem:[%s413 + $0x8] sm:$0xff]
    %v416 = vld [vmem:[%s413 + $0x10] sm:$0xff]
    %v417 = vld [vmem:[%s413 + $0x18] sm:$0xff]
    %v418 = vld [vmem:[%s413 + $0x20] sm:$0xff]
    %v419 = vld [vmem:[%s413 + $0x28] sm:$0xff]
    %v420 = vld [vmem:[%s413 + $0x30] sm:$0xff]
    %v421 = vld [vmem:[%s413 + $0x38] sm:$0xff]
    %v422 = vld [vmem:[%s413 + $0x40] sm:$0xff]
    %v423 = vld [vmem:[%s413 + $0x48] sm:$0xff]
    %v424 = vld [vmem:[%s413 + $0x50] sm:$0xff]
    %v425 = vld [vmem:[%s413 + $0x58] sm:$0xff]
    %v426 = vld [vmem:[%s413 + $0x60] sm:$0xff]
    %v427 = vld [vmem:[%s413 + $0x68] sm:$0xff]
    %v428 = vld [vmem:[%s413 + $0x70] sm:$0xff]
    %v429 = vld [vmem:[%s413 + $0x78] sm:$0xff]
    %v430 = vld [vmem:[%s413 + $0x80] sm:$0xff]
    %v431 = vld [vmem:[%s413 + $0x88] sm:$0xff]
    %v432 = vld [vmem:[%s413 + $0x90] sm:$0xff]
    %v433 = vld [vmem:[%s413 + $0x98] sm:$0xff]
    %v434 = vld [vmem:[%s413 + $0xa0] sm:$0xff]
    %v435 = vld [vmem:[%s413 + $0xa8] sm:$0xff]
    %v436 = vld [vmem:[%s413 + $0xb0] sm:$0xff]
    %v437 = vld [vmem:[%s413 + $0xb8] sm:$0xff]
    %v438 = vld [vmem:[%s413 + $0xc0] sm:$0xff]
    %v439 = vld [vmem:[%s413 + $0xc8] sm:$0xff]
    %v440 = vld [vmem:[%s413 + $0xd0] sm:$0xff]
    %v441 = vld [vmem:[%s413 + $0xd8] sm:$0xff]
    %v442 = vld [vmem:[%s413 + $0xe0] sm:$0xff]
    %v443 = vld [vmem:[%s413 + $0xe8] sm:$0xff]
    %v444 = vld [vmem:[%s413 + $0xf0] sm:$0xff]
    %v445 = vld [vmem:[%s413 + $0xf8] sm:$0xff]
    %446 = vmatprep.subr.mxu0 0.0
    %447 = vmatpush1.msra.mxu0 %v62
    %448 = vmatprep.subr.mxu0 0.0
    %449 = vmatpush1.msra.mxu0 %v63
    %450 = vmatprep.subr.mxu0 0.0
    %451 = vmatpush1.msra.mxu0 %v64
    %452 = vmatprep.subr.mxu0 0.0
    %453 = vmatpush1.msra.mxu0 %v65
    %454 = vmatprep.subr.mxu0 0.0
    %455 = vmatpush1.msra.mxu0 %v66
    %456 = vmatprep.subr.mxu0 0.0
    %457 = vmatpush1.msra.mxu0 %v67
    %458 = vmatprep.subr.mxu0 0.0
    %459 = vmatpush1.msra.mxu0 %v68
    %460 = vmatprep.subr.mxu0 0.0
    %461 = vmatpush1.msra.mxu0 %v69
    %462 = vmatprep.subr.mxu0 0.0
    %463 = vmatpush1.msra.mxu0 %v70
    %464 = vmatprep.subr.mxu0 0.0
    %465 = vmatpush1.msra.mxu0 %v71
    %466 = vmatprep.subr.mxu0 0.0
    %467 = vmatpush1.msra.mxu0 %v72
    %468 = vmatprep.subr.mxu0 0.0
    %469 = vmatpush1.msra.mxu0 %v73
    %470 = vmatprep.subr.mxu0 0.0
    %471 = vmatpush1.msra.mxu0 %v74
    %472 = vmatprep.subr.mxu0 0.0
    %473 = vmatpush1.msra.mxu0 %v75
    %474 = vmatprep.subr.mxu0 0.0
    %475 = vmatpush1.msra.mxu0 %v76
    %476 = vmatprep.subr.mxu0 0.0
    %477 = vmatpush1.msra.mxu0 %v77
    %478 = vmatprep.subr.mxu0 0.0
    %479 = vmatpush1.msra.mxu0 0.0
    %480 = vmatprep.subr.mxu0 0.0
    %481 = vmatpush1.msra.mxu0 0.0
    %482 = vmatprep.subr.mxu0 0.0
    %483 = vmatpush1.msra.mxu0 0.0
    %484 = vmatprep.subr.mxu0 0.0
    %485 = vmatpush1.msra.mxu0 0.0
    %486 = vmatprep.subr.mxu0 0.0
    %487 = vmatpush1.msra.mxu0 0.0
    %488 = vmatprep.subr.mxu0 0.0
    %489 = vmatpush1.msra.mxu0 0.0
    %490 = vmatprep.subr.mxu0 0.0
    %491 = vmatpush1.msra.mxu0 0.0
    %492 = vmatprep.subr.mxu0 0.0
    %493 = vmatpush1.msra.mxu0 0.0
    %494 = vmatprep.subr.mxu0 0.0
    %495 = vmatpush1.msra.mxu0 0.0
    %496 = vmatprep.subr.mxu0 0.0
    %497 = vmatpush1.msra.mxu0 0.0
    %498 = vmatprep.subr.mxu0 0.0
    %499 = vmatpush1.msra.mxu0 0.0
    %500 = vmatprep.subr.mxu0 0.0
    %501 = vmatpush1.msra.mxu0 0.0
    %502 = vmatprep.subr.mxu0 0.0
    %503 = vmatpush1.msra.mxu0 0.0
    %504 = vmatprep.subr.mxu0 0.0
    %505 = vmatpush1.msra.mxu0 0.0
    %506 = vmatprep.subr.mxu0 0.0
    %507 = vmatpush1.msra.mxu0 0.0
    %508 = vmatprep.subr.mxu0 0.0
    %509 = vmatpush1.msra.mxu0 0.0
    %510 = vmatprep.mubr.f32.mxu0 0.0
    %511 = vmatmul.mubr.f32.gmra.mrb[0].mxu0 %v414
    %v512 = vpop.f32.mrb[0].mxu0
    %v513 = vadd.f32 %v115, %v512
    %v514 = vpop.f32.mrb[0].mxu0
    %515 = vmatprep.mubr.f32.mxu0 0.0
    %516 = vmatmul.mubr.f32.gmra.mrb[0].mxu0 %v415
    %v517 = vpop.f32.mrb[0].mxu0
    %v518 = vadd.f32 %v115, %v517
    %v519 = vpop.f32.mrb[0].mxu0
    %520 = vmatprep.mubr.f32.mxu0 0.0
    %521 = vmatmul.mubr.f32.gmra.mrb[0].mxu0 %v416
    %v522 = vpop.f32.mrb[0].mxu0
    %v523 = vadd.f32 %v115, %v522
    %v524 = vpop.f32.mrb[0].mxu0
    %525 = vmatprep.mubr.f32.mxu0 0.0
    %526 = vmatmul.mubr.f32.gmra.mrb[0].mxu0 %v417
    %v527 = vpop.f32.mrb[0].mxu0
    %v528 = vadd.f32 %v115, %v527
    %v529 = vpop.f32.mrb[0].mxu0
    %530 = vmatprep.mubr.f32.mxu0 0.0
    %531 = vmatmul.mubr.f32.gmra.mrb[0].mxu0 %v418
    %v532 = vpop.f32.mrb[0].mxu0
    %v533 = vadd.f32 %v115, %v532
    %v534 = vpop.f32.mrb[0].mxu0
    %535 = vmatprep.mubr.f32.mxu0 0.0
    %536 = vmatmul.mubr.f32.gmra.mrb[0].mxu0 %v419
    %v537 = vpop.f32.mrb[0].mxu0
    %v538 = vadd.f32 %v115, %v537
    %v539 = vpop.f32.mrb[0].mxu0
    %540 = vmatprep.mubr.f32.mxu0 0.0
    %541 = vmatmul.mubr.f32.gmra.mrb[0].mxu0 %v420
    %v542 = vpop.f32.mrb[0].mxu0
    %v543 = vadd.f32 %v115, %v542
    %v544 = vpop.f32.mrb[0].mxu0
    %545 = vmatprep.mubr.f32.mxu0 0.0
    %546 = vmatmul.mubr.f32.gmra.mrb[0].mxu0 %v421
    %v547 = vpop.f32.mrb[0].mxu0
    %v548 = vadd.f32 %v115, %v547
    %v549 = vpop.f32.mrb[0].mxu0
    %550 = vmatprep.mubr.f32.mxu0 0.0
    %551 = vmatmul.mubr.f32.gmra.mrb[0].mxu0 %v422
    %v552 = vpop.f32.mrb[0].mxu0
    %v553 = vadd.f32 %v115, %v552
    %v554 = vpop.f32.mrb[0].mxu0
    %555 = vmatprep.mubr.f32.mxu0 0.0
    %556 = vmatmul.mubr.f32.gmra.mrb[0].mxu0 %v423
    %v557 = vpop.f32.mrb[0].mxu0
    %v558 = vadd.f32 %v115, %v557
    %v559 = vpop.f32.mrb[0].mxu0
    %560 = vmatprep.mubr.f32.mxu0 0.0
    %561 = vmatmul.mubr.f32.gmra.mrb[0].mxu0 %v424
    %v562 = vpop.f32.mrb[0].mxu0
    %v563 = vadd.f32 %v115, %v562
    %v564 = vpop.f32.mrb[0].mxu0
    %565 = vmatprep.mubr.f32.mxu0 0.0
    %566 = vmatmul.mubr.f32.gmra.mrb[0].mxu0 %v425
    %v567 = vpop.f32.mrb[0].mxu0
    %v568 = vadd.f32 %v115, %v567
    %v569 = vpop.f32.mrb[0].mxu0
    %570 = vmatprep.mubr.f32.mxu0 0.0
    %571 = vmatmul.mubr.f32.gmra.mrb[0].mxu0 %v426
    %v572 = vpop.f32.mrb[0].mxu0
    %v573 = vadd.f32 %v115, %v572
    %v574 = vpop.f32.mrb[0].mxu0
    %575 = vmatprep.mubr.f32.mxu0 0.0
    %576 = vmatmul.mubr.f32.gmra.mrb[0].mxu0 %v427
    %v577 = vpop.f32.mrb[0].mxu0
    %v578 = vadd.f32 %v115, %v577
    %v579 = vpop.f32.mrb[0].mxu0
    %580 = vmatprep.mubr.f32.mxu0 0.0
    %581 = vmatmul.mubr.f32.gmra.mrb[0].mxu0 %v428
    %v582 = vpop.f32.mrb[0].mxu0
    %v583 = vadd.f32 %v115, %v582
    %v584 = vpop.f32.mrb[0].mxu0
    %585 = vmatprep.mubr.f32.mxu0 0.0
    %586 = vmatmul.mubr.f32.gmra.mrb[0].mxu0 %v429
    %v587 = vpop.f32.mrb[0].mxu0
    %v588 = vadd.f32 %v115, %v587
    %v589 = vpop.f32.mrb[0].mxu0
    %590 = vmatprep.mubr.f32.mxu0 0.0
    %591 = vmatmul.mubr.f32.gmra.mrb[0].mxu0 %v430
    %v592 = vpop.f32.mrb[0].mxu0
    %v593 = vadd.f32 %v115, %v592
    %v594 = vpop.f32.mrb[0].mxu0
    %595 = vmatprep.mubr.f32.mxu0 0.0
    %596 = vmatmul.mubr.f32.gmra.mrb[0].mxu0 %v431
    %v597 = vpop.f32.mrb[0].mxu0
    %v598 = vadd.f32 %v115, %v597
    %v599 = vpop.f32.mrb[0].mxu0
    %600 = vmatprep.mubr.f32.mxu0 0.0
    %601 = vmatmul.mubr.f32.gmra.mrb[0].mxu0 %v432
    %v602 = vpop.f32.mrb[0].mxu0
    %v603 = vadd.f32 %v115, %v602
    %v604 = vpop.f32.mrb[0].mxu0
    %605 = vmatprep.mubr.f32.mxu0 0.0
    %606 = vmatmul.mubr.f32.gmra.mrb[0].mxu0 %v433
    %v607 = vpop.f32.mrb[0].mxu0
    %v608 = vadd.f32 %v115, %v607
    %v609 = vpop.f32.mrb[0].mxu0
    %610 = vmatprep.mubr.f32.mxu0 0.0
    %611 = vmatmul.mubr.f32.gmra.mrb[0].mxu0 %v434
    %v612 = vpop.f32.mrb[0].mxu0
    %v613 = vadd.f32 %v115, %v612
    %v614 = vpop.f32.mrb[0].mxu0
    %615 = vmatprep.mubr.f32.mxu0 0.0
    %616 = vmatmul.mubr.f32.gmra.mrb[0].mxu0 %v435
    %v617 = vpop.f32.mrb[0].mxu0
    %v618 = vadd.f32 %v115, %v617
    %v619 = vpop.f32.mrb[0].mxu0
    %620 = vmatprep.mubr.f32.mxu0 0.0
    %621 = vmatmul.mubr.f32.gmra.mrb[0].mxu0 %v436
    %v622 = vpop.f32.mrb[0].mxu0
    %v623 = vadd.f32 %v115, %v622
    %v624 = vpop.f32.mrb[0].mxu0
    %625 = vmatprep.mubr.f32.mxu0 0.0
    %626 = vmatmul.mubr.f32.gmra.mrb[0].mxu0 %v437
    %v627 = vpop.f32.mrb[0].mxu0
    %v628 = vadd.f32 %v115, %v627
    %v629 = vpop.f32.mrb[0].mxu0
    %630 = vmatprep.mubr.f32.mxu0 0.0
    %631 = vmatmul.mubr.f32.gmra.mrb[0].mxu0 %v438
    %v632 = vpop.f32.mrb[0].mxu0
    %v633 = vadd.f32 %v115, %v632
    %v634 = vpop.f32.mrb[0].mxu0
    %635 = vmatprep.mubr.f32.mxu0 0.0
    %636 = vmatmul.mubr.f32.gmra.mrb[0].mxu0 %v439
    %v637 = vpop.f32.mrb[0].mxu0
    %v638 = vadd.f32 %v115, %v637
    %v639 = vpop.f32.mrb[0].mxu0
    %640 = vmatprep.mubr.f32.mxu0 0.0
    %641 = vmatmul.mubr.f32.gmra.mrb[0].mxu0 %v440
    %v642 = vpop.f32.mrb[0].mxu0
    %v643 = vadd.f32 %v115, %v642
    %v644 = vpop.f32.mrb[0].mxu0
    %645 = vmatprep.mubr.f32.mxu0 0.0
    %646 = vmatmul.mubr.f32.gmra.mrb[0].mxu0 %v441
    %v647 = vpop.f32.mrb[0].mxu0
    %v648 = vadd.f32 %v115, %v647
    %v649 = vpop.f32.mrb[0].mxu0
    %650 = vmatprep.mubr.f32.mxu0 0.0
    %651 = vmatmul.mubr.f32.gmra.mrb[0].mxu0 %v442
    %v652 = vpop.f32.mrb[0].mxu0
    %v653 = vadd.f32 %v115, %v652
    %v654 = vpop.f32.mrb[0].mxu0
    %655 = vmatprep.mubr.f32.mxu0 0.0
    %656 = vmatmul.mubr.f32.gmra.mrb[0].mxu0 %v443
    %v657 = vpop.f32.mrb[0].mxu0
    %v658 = vadd.f32 %v115, %v657
    %v659 = vpop.f32.mrb[0].mxu0
    %660 = vmatprep.mubr.f32.mxu0 0.0
    %661 = vmatmul.mubr.f32.gmra.mrb[0].mxu0 %v444
    %v662 = vpop.f32.mrb[0].mxu0
    %v663 = vadd.f32 %v115, %v662
    %v664 = vpop.f32.mrb[0].mxu0
    %665 = vmatprep.mubr.f32.mxu0 0.0
    %666 = vmatmul.mubr.f32.gmra.mrb[0].mxu0 %v445
    %v667 = vpop.f32.mrb[0].mxu0
    %v668 = vadd.f32 %v115, %v667
    %v669 = vpop.f32.mrb[0].mxu0
    %670 = vdwg.mxu0
    %v671 = vmax.f32 %v513, 0.0
    %v672 = vmax.f32 %v518, 0.0
    %v673 = vmax.f32 %v523, 0.0
    %v674 = vmax.f32 %v528, 0.0
    %v675 = vmax.f32 %v533, 0.0
    %v676 = vmax.f32 %v538, 0.0
    %v677 = vmax.f32 %v543, 0.0
    %v678 = vmax.f32 %v548, 0.0
    %v679 = vmax.f32 %v553, 0.0
    %v680 = vmax.f32 %v558, 0.0
    %v681 = vmax.f32 %v563, 0.0
    %v682 = vmax.f32 %v568, 0.0
    %v683 = vmax.f32 %v573, 0.0
    %v684 = vmax.f32 %v578, 0.0
    %v685 = vmax.f32 %v583, 0.0
    %v686 = vmax.f32 %v588, 0.0
    %v687 = vmax.f32 %v593, 0.0
    %v688 = vmax.f32 %v598, 0.0
    %v689 = vmax.f32 %v603, 0.0
    %v690 = vmax.f32 %v608, 0.0
    %v691 = vmax.f32 %v613, 0.0
    %v692 = vmax.f32 %v618, 0.0
    %v693 = vmax.f32 %v623, 0.0
    %v694 = vmax.f32 %v628, 0.0
    %v695 = vmax.f32 %v633, 0.0
    %v696 = vmax.f32 %v638, 0.0
    %v697 = vmax.f32 %v643, 0.0
    %v698 = vmax.f32 %v648, 0.0
    %v699 = vmax.f32 %v653, 0.0
    %v700 = vmax.f32 %v658, 0.0
    %v701 = vmax.f32 %v663, 0.0
    %v702 = vmax.f32 %v668, 0.0
    %v703 = vadd.f32 %v671, %v672
    %v704 = vadd.f32 %v703, %v673
    %v705 = vadd.f32 %v704, %v674
    %v706 = vadd.f32 %v705, %v675
    %v707 = vadd.f32 %v706, %v676
    %v708 = vadd.f32 %v707, %v677
    %v709 = vadd.f32 %v708, %v678
    %v710 = vadd.f32 %v709, %v679
    %v711 = vadd.f32 %v710, %v680
    %v712 = vadd.f32 %v711, %v681
    %v713 = vadd.f32 %v712, %v682
    %v714 = vadd.f32 %v713, %v683
    %v715 = vadd.f32 %v714, %v684
    %v716 = vadd.f32 %v715, %v685
    %v717 = vadd.f32 %v716, %v686
    %v718 = vadd.f32 %v717, %v687
    %v719 = vadd.f32 %v718, %v688
    %v720 = vadd.f32 %v719, %v689
    %v721 = vadd.f32 %v720, %v690
    %v722 = vadd.f32 %v721, %v691
    %v723 = vadd.f32 %v722, %v692
    %v724 = vadd.f32 %v723, %v693
    %v725 = vadd.f32 %v724, %v694
    %v726 = vadd.f32 %v725, %v695
    %v727 = vadd.f32 %v726, %v696
    %v728 = vadd.f32 %v727, %v697
    %v729 = vadd.f32 %v728, %v698
    %v730 = vadd.f32 %v729, %v699
    %v731 = vadd.f32 %v730, %v700
    %v732 = vadd.f32 %v731, %v701
    %v733 = vadd.f32 %v732, %v702
    %v734 = vrot.slane %v733, 4
    %v735 = vadd.f32 %v733, %v734
    %v736 = vrot.slane %v735, 2
    %v737 = vadd.f32 %v735, %v736
    %v738 = vrot.slane %v737, 1
    %v739 = vadd.f32 %v737, %v738
    %v740 = vmul.f32 %v739, %v411
    %s741 = scalar_lea.vmem [#allocation2], 512
    %v742 = vld [vmem:[%s741] sm:$0xff]
    %v743 = vld [vmem:[%s741 + $0x8] sm:$0xff]
    %v744 = vld [vmem:[%s741 + $0x10] sm:$0xff]
    %v745 = vld [vmem:[%s741 + $0x18] sm:$0xff]
    %v746 = vld [vmem:[%s741 + $0x20] sm:$0xff]
    %v747 = vld [vmem:[%s741 + $0x28] sm:$0xff]
    %v748 = vld [vmem:[%s741 + $0x30] sm:$0xff]
    %v749 = vld [vmem:[%s741 + $0x38] sm:$0xff]
    %v750 = vld [vmem:[%s741 + $0x40] sm:$0xff]
    %v751 = vld [vmem:[%s741 + $0x48] sm:$0xff]
    %v752 = vld [vmem:[%s741 + $0x50] sm:$0xff]
    %v753 = vld [vmem:[%s741 + $0x58] sm:$0xff]
    %v754 = vld [vmem:[%s741 + $0x60] sm:$0xff]
    %v755 = vld [vmem:[%s741 + $0x68] sm:$0xff]
    %v756 = vld [vmem:[%s741 + $0x70] sm:$0xff]
    %v757 = vld [vmem:[%s741 + $0x78] sm:$0xff]
    %v758 = vld [vmem:[%s741 + $0x80] sm:$0xff]
    %v759 = vld [vmem:[%s741 + $0x88] sm:$0xff]
    %v760 = vld [vmem:[%s741 + $0x90] sm:$0xff]
    %v761 = vld [vmem:[%s741 + $0x98] sm:$0xff]
    %v762 = vld [vmem:[%s741 + $0xa0] sm:$0xff]
    %v763 = vld [vmem:[%s741 + $0xa8] sm:$0xff]
    %v764 = vld [vmem:[%s741 + $0xb0] sm:$0xff]
    %v765 = vld [vmem:[%s741 + $0xb8] sm:$0xff]
    %v766 = vld [vmem:[%s741 + $0xc0] sm:$0xff]
    %v767 = vld [vmem:[%s741 + $0xc8] sm:$0xff]
    %v768 = vld [vmem:[%s741 + $0xd0] sm:$0xff]
    %v769 = vld [vmem:[%s741 + $0xd8] sm:$0xff]
    %v770 = vld [vmem:[%s741 + $0xe0] sm:$0xff]
    %v771 = vld [vmem:[%s741 + $0xe8] sm:$0xff]
    %v772 = vld [vmem:[%s741 + $0xf0] sm:$0xff]
    %v773 = vld [vmem:[%s741 + $0xf8] sm:$0xff]
    %774 = vmatprep.subr.mxu0 0.0
    %775 = vmatpush1.msra.mxu0 %v62
    %776 = vmatprep.subr.mxu0 0.0
    %777 = vmatpush1.msra.mxu0 %v63
    %778 = vmatprep.subr.mxu0 0.0
    %779 = vmatpush1.msra.mxu0 %v64
    %780 = vmatprep.subr.mxu0 0.0
    %781 = vmatpush1.msra.mxu0 %v65
    %782 = vmatprep.subr.mxu0 0.0
    %783 = vmatpush1.msra.mxu0 %v66
    %784 = vmatprep.subr.mxu0 0.0
    %785 = vmatpush1.msra.mxu0 %v67
    %786 = vmatprep.subr.mxu0 0.0
    %787 = vmatpush1.msra.mxu0 %v68
    %788 = vmatprep.subr.mxu0 0.0
    %789 = vmatpush1.msra.mxu0 %v69
    %790 = vmatprep.subr.mxu0 0.0
    %791 = vmatpush1.msra.mxu0 %v70
    %792 = vmatprep.subr.mxu0 0.0
    %793 = vmatpush1.msra.mxu0 %v71
    %794 = vmatprep.subr.mxu0 0.0
    %795 = vmatpush1.msra.mxu0 %v72
    %796 = vmatprep.subr.mxu0 0.0
    %797 = vmatpush1.msra.mxu0 %v73
    %798 = vmatprep.subr.mxu0 0.0
    %799 = vmatpush1.msra.mxu0 %v74
    %800 = vmatprep.subr.mxu0 0.0
    %801 = vmatpush1.msra.mxu0 %v75
    %802 = vmatprep.subr.mxu0 0.0
    %803 = vmatpush1.msra.mxu0 %v76
    %804 = vmatprep.subr.mxu0 0.0
    %805 = vmatpush1.msra.mxu0 %v77
    %806 = vmatprep.subr.mxu0 0.0
    %807 = vmatpush1.msra.mxu0 0.0
    %808 = vmatprep.subr.mxu0 0.0
    %809 = vmatpush1.msra.mxu0 0.0
    %810 = vmatprep.subr.mxu0 0.0
    %811 = vmatpush1.msra.mxu0 0.0
    %812 = vmatprep.subr.mxu0 0.0
    %813 = vmatpush1.msra.mxu0 0.0
    %814 = vmatprep.subr.mxu0 0.0
    %815 = vmatpush1.msra.mxu0 0.0
    %816 = vmatprep.subr.mxu0 0.0
    %817 = vmatpush1.msra.mxu0 0.0
    %818 = vmatprep.subr.mxu0 0.0
    %819 = vmatpush1.msra.mxu0 0.0
    %820 = vmatprep.subr.mxu0 0.0
    %821 = vmatpush1.msra.mxu0 0.0
    %822 = vmatprep.subr.mxu0 0.0
    %823 = vmatpush1.msra.mxu0 0.0
    %824 = vmatprep.subr.mxu0 0.0
    %825 = vmatpush1.msra.mxu0 0.0
    %826 = vmatprep.subr.mxu0 0.0
    %827 = vmatpush1.msra.mxu0 0.0
    %828 = vmatprep.subr.mxu0 0.0
    %829 = vmatpush1.msra.mxu0 0.0
    %830 = vmatprep.subr.mxu0 0.0
    %831 = vmatpush1.msra.mxu0 0.0
    %832 = vmatprep.subr.mxu0 0.0
    %833 = vmatpush1.msra.mxu0 0.0
    %834 = vmatprep.subr.mxu0 0.0
    %835 = vmatpush1.msra.mxu0 0.0
    %836 = vmatprep.subr.mxu0 0.0
    %837 = vmatpush1.msra.mxu0 0.0
    %838 = vmatprep.mubr.f32.mxu0 0.0
    %839 = vmatmul.mubr.f32.gmra.mrb[0].mxu0 %v742
    %v840 = vpop.f32.mrb[0].mxu0
    %v841 = vadd.f32 %v115, %v840
    %v842 = vpop.f32.mrb[0].mxu0
    %843 = vmatprep.mubr.f32.mxu0 0.0
    %844 = vmatmul.mubr.f32.gmra.mrb[0].mxu0 %v743
    %v845 = vpop.f32.mrb[0].mxu0
    %v846 = vadd.f32 %v115, %v845
    %v847 = vpop.f32.mrb[0].mxu0
    %848 = vmatprep.mubr.f32.mxu0 0.0
    %849 = vmatmul.mubr.f32.gmra.mrb[0].mxu0 %v744
    %v850 = vpop.f32.mrb[0].mxu0
    %v851 = vadd.f32 %v115, %v850
    %v852 = vpop.f32.mrb[0].mxu0
    %853 = vmatprep.mubr.f32.mxu0 0.0
    %854 = vmatmul.mubr.f32.gmra.mrb[0].mxu0 %v745
    %v855 = vpop.f32.mrb[0].mxu0
    %v856 = vadd.f32 %v115, %v855
    %v857 = vpop.f32.mrb[0].mxu0
    %858 = vmatprep.mubr.f32.mxu0 0.0
    %859 = vmatmul.mubr.f32.gmra.mrb[0].mxu0 %v746
    %v860 = vpop.f32.mrb[0].mxu0
    %v861 = vadd.f32 %v115, %v860
    %v862 = vpop.f32.mrb[0].mxu0
    %863 = vmatprep.mubr.f32.mxu0 0.0
    %864 = vmatmul.mubr.f32.gmra.mrb[0].mxu0 %v747
    %v865 = vpop.f32.mrb[0].mxu0
    %v866 = vadd.f32 %v115, %v865
    %v867 = vpop.f32.mrb[0].mxu0
    %868 = vmatprep.mubr.f32.mxu0 0.0
    %869 = vmatmul.mubr.f32.gmra.mrb[0].mxu0 %v748
    %v870 = vpop.f32.mrb[0].mxu0
    %v871 = vadd.f32 %v115, %v870
    %v872 = vpop.f32.mrb[0].mxu0
    %873 = vmatprep.mubr.f32.mxu0 0.0
    %874 = vmatmul.mubr.f32.gmra.mrb[0].mxu0 %v749
    %v875 = vpop.f32.mrb[0].mxu0
    %v876 = vadd.f32 %v115, %v875
    %v877 = vpop.f32.mrb[0].mxu0
    %878 = vmatprep.mubr.f32.mxu0 0.0
    %879 = vmatmul.mubr.f32.gmra.mrb[0].mxu0 %v750
    %v880 = vpop.f32.mrb[0].mxu0
    %v881 = vadd.f32 %v115, %v880
    %v882 = vpop.f32.mrb[0].mxu0
    %883 = vmatprep.mubr.f32.mxu0 0.0
    %884 = vmatmul.mubr.f32.gmra.mrb[0].mxu0 %v751
    %v885 = vpop.f32.mrb[0].mxu0
    %v886 = vadd.f32 %v115, %v885
    %v887 = vpop.f32.mrb[0].mxu0
    %888 = vmatprep.mubr.f32.mxu0 0.0
    %889 = vmatmul.mubr.f32.gmra.mrb[0].mxu0 %v752
    %v890 = vpop.f32.mrb[0].mxu0
    %v891 = vadd.f32 %v115, %v890
    %v892 = vpop.f32.mrb[0].mxu0
    %893 = vmatprep.mubr.f32.mxu0 0.0
    %894 = vmatmul.mubr.f32.gmra.mrb[0].mxu0 %v753
    %v895 = vpop.f32.mrb[0].mxu0
    %v896 = vadd.f32 %v115, %v895
    %v897 = vpop.f32.mrb[0].mxu0
    %898 = vmatprep.mubr.f32.mxu0 0.0
    %899 = vmatmul.mubr.f32.gmra.mrb[0].mxu0 %v754
    %v900 = vpop.f32.mrb[0].mxu0
    %v901 = vadd.f32 %v115, %v900
    %v902 = vpop.f32.mrb[0].mxu0
    %903 = vmatprep.mubr.f32.mxu0 0.0
    %904 = vmatmul.mubr.f32.gmra.mrb[0].mxu0 %v755
    %v905 = vpop.f32.mrb[0].mxu0
    %v906 = vadd.f32 %v115, %v905
    %v907 = vpop.f32.mrb[0].mxu0
    %908 = vmatprep.mubr.f32.mxu0 0.0
    %909 = vmatmul.mubr.f32.gmra.mrb[0].mxu0 %v756
    %v910 = vpop.f32.mrb[0].mxu0
    %v911 = vadd.f32 %v115, %v910
    %v912 = vpop.f32.mrb[0].mxu0
    %913 = vmatprep.mubr.f32.mxu0 0.0
    %914 = vmatmul.mubr.f32.gmra.mrb[0].mxu0 %v757
    %v915 = vpop.f32.mrb[0].mxu0
    %v916 = vadd.f32 %v115, %v915
    %v917 = vpop.f32.mrb[0].mxu0
    %918 = vmatprep.mubr.f32.mxu0 0.0
    %919 = vmatmul.mubr.f32.gmra.mrb[0].mxu0 %v758
    %v920 = vpop.f32.mrb[0].mxu0
    %v921 = vadd.f32 %v115, %v920
    %v922 = vpop.f32.mrb[0].mxu0
    %923 = vmatprep.mubr.f32.mxu0 0.0
    %924 = vmatmul.mubr.f32.gmra.mrb[0].mxu0 %v759
    %v925 = vpop.f32.mrb[0].mxu0
    %v926 = vadd.f32 %v115, %v925
    %v927 = vpop.f32.mrb[0].mxu0
    %928 = vmatprep.mubr.f32.mxu0 0.0
    %929 = vmatmul.mubr.f32.gmra.mrb[0].mxu0 %v760
    %v930 = vpop.f32.mrb[0].mxu0
    %v931 = vadd.f32 %v115, %v930
    %v932 = vpop.f32.mrb[0].mxu0
    %933 = vmatprep.mubr.f32.mxu0 0.0
    %934 = vmatmul.mubr.f32.gmra.mrb[0].mxu0 %v761
    %v935 = vpop.f32.mrb[0].mxu0
    %v936 = vadd.f32 %v115, %v935
    %v937 = vpop.f32.mrb[0].mxu0
    %938 = vmatprep.mubr.f32.mxu0 0.0
    %939 = vmatmul.mubr.f32.gmra.mrb[0].mxu0 %v762
    %v940 = vpop.f32.mrb[0].mxu0
    %v941 = vadd.f32 %v115, %v940
    %v942 = vpop.f32.mrb[0].mxu0
    %943 = vmatprep.mubr.f32.mxu0 0.0
    %944 = vmatmul.mubr.f32.gmra.mrb[0].mxu0 %v763
    %v945 = vpop.f32.mrb[0].mxu0
    %v946 = vadd.f32 %v115, %v945
    %v947 = vpop.f32.mrb[0].mxu0
    %948 = vmatprep.mubr.f32.mxu0 0.0
    %949 = vmatmul.mubr.f32.gmra.mrb[0].mxu0 %v764
    %v950 = vpop.f32.mrb[0].mxu0
    %v951 = vadd.f32 %v115, %v950
    %v952 = vpop.f32.mrb[0].mxu0
    %953 = vmatprep.mubr.f32.mxu0 0.0
    %954 = vmatmul.mubr.f32.gmra.mrb[0].mxu0 %v765
    %v955 = vpop.f32.mrb[0].mxu0
    %v956 = vadd.f32 %v115, %v955
    %v957 = vpop.f32.mrb[0].mxu0
    %958 = vmatprep.mubr.f32.mxu0 0.0
    %959 = vmatmul.mubr.f32.gmra.mrb[0].mxu0 %v766
    %v960 = vpop.f32.mrb[0].mxu0
    %v961 = vadd.f32 %v115, %v960
    %v962 = vpop.f32.mrb[0].mxu0
    %963 = vmatprep.mubr.f32.mxu0 0.0
    %964 = vmatmul.mubr.f32.gmra.mrb[0].mxu0 %v767
    %v965 = vpop.f32.mrb[0].mxu0
    %v966 = vadd.f32 %v115, %v965
    %v967 = vpop.f32.mrb[0].mxu0
    %968 = vmatprep.mubr.f32.mxu0 0.0
    %969 = vmatmul.mubr.f32.gmra.mrb[0].mxu0 %v768
    %v970 = vpop.f32.mrb[0].mxu0
    %v971 = vadd.f32 %v115, %v970
    %v972 = vpop.f32.mrb[0].mxu0
    %973 = vmatprep.mubr.f32.mxu0 0.0
    %974 = vmatmul.mubr.f32.gmra.mrb[0].mxu0 %v769
    %v975 = vpop.f32.mrb[0].mxu0
    %v976 = vadd.f32 %v115, %v975
    %v977 = vpop.f32.mrb[0].mxu0
    %978 = vmatprep.mubr.f32.mxu0 0.0
    %979 = vmatmul.mubr.f32.gmra.mrb[0].mxu0 %v770
    %v980 = vpop.f32.mrb[0].mxu0
    %v981 = vadd.f32 %v115, %v980
    %v982 = vpop.f32.mrb[0].mxu0
    %983 = vmatprep.mubr.f32.mxu0 0.0
    %984 = vmatmul.mubr.f32.gmra.mrb[0].mxu0 %v771
    %v985 = vpop.f32.mrb[0].mxu0
    %v986 = vadd.f32 %v115, %v985
    %v987 = vpop.f32.mrb[0].mxu0
    %988 = vmatprep.mubr.f32.mxu0 0.0
    %989 = vmatmul.mubr.f32.gmra.mrb[0].mxu0 %v772
    %v990 = vpop.f32.mrb[0].mxu0
    %v991 = vadd.f32 %v115, %v990
    %v992 = vpop.f32.mrb[0].mxu0
    %993 = vmatprep.mubr.f32.mxu0 0.0
    %994 = vmatmul.mubr.f32.gmra.mrb[0].mxu0 %v773
    %v995 = vpop.f32.mrb[0].mxu0
    %v996 = vadd.f32 %v115, %v995
    %v997 = vpop.f32.mrb[0].mxu0
    %998 = vdwg.mxu0
    %v999 = vmax.f32 %v841, 0.0
    %v1000 = vmax.f32 %v846, 0.0
    %v1001 = vmax.f32 %v851, 0.0
    %v1002 = vmax.f32 %v856, 0.0
    %v1003 = vmax.f32 %v861, 0.0
    %v1004 = vmax.f32 %v866, 0.0
    %v1005 = vmax.f32 %v871, 0.0
    %v1006 = vmax.f32 %v876, 0.0
    %v1007 = vmax.f32 %v881, 0.0
    %v1008 = vmax.f32 %v886, 0.0
    %v1009 = vmax.f32 %v891, 0.0
    %v1010 = vmax.f32 %v896, 0.0
    %v1011 = vmax.f32 %v901, 0.0
    %v1012 = vmax.f32 %v906, 0.0
    %v1013 = vmax.f32 %v911, 0.0
    %v1014 = vmax.f32 %v916, 0.0
    %v1015 = vmax.f32 %v921, 0.0
    %v1016 = vmax.f32 %v926, 0.0
    %v1017 = vmax.f32 %v931, 0.0
    %v1018 = vmax.f32 %v936, 0.0
    %v1019 = vmax.f32 %v941, 0.0
    %v1020 = vmax.f32 %v946, 0.0
    %v1021 = vmax.f32 %v951, 0.0
    %v1022 = vmax.f32 %v956, 0.0
    %v1023 = vmax.f32 %v961, 0.0
    %v1024 = vmax.f32 %v966, 0.0
    %v1025 = vmax.f32 %v971, 0.0
    %v1026 = vmax.f32 %v976, 0.0
    %v1027 = vmax.f32 %v981, 0.0
    %v1028 = vmax.f32 %v986, 0.0
    %v1029 = vmax.f32 %v991, 0.0
    %v1030 = vmax.f32 %v996, 0.0
    %v1031 = vadd.f32 %v999, %v1000
    %v1032 = vadd.f32 %v1031, %v1001
    %v1033 = vadd.f32 %v1032, %v1002
    %v1034 = vadd.f32 %v1033, %v1003
    %v1035 = vadd.f32 %v1034, %v1004
    %v1036 = vadd.f32 %v1035, %v1005
    %v1037 = vadd.f32 %v1036, %v1006
    %v1038 = vadd.f32 %v1037, %v1007
    %v1039 = vadd.f32 %v1038, %v1008
    %v1040 = vadd.f32 %v1039, %v1009
    %v1041 = vadd.f32 %v1040, %v1010
    %v1042 = vadd.f32 %v1041, %v1011
    %v1043 = vadd.f32 %v1042, %v1012
    %v1044 = vadd.f32 %v1043, %v1013
    %v1045 = vadd.f32 %v1044, %v1014
    %v1046 = vadd.f32 %v1045, %v1015
    %v1047 = vadd.f32 %v1046, %v1016
    %v1048 = vadd.f32 %v1047, %v1017
    %v1049 = vadd.f32 %v1048, %v1018
    %v1050 = vadd.f32 %v1049, %v1019
    %v1051 = vadd.f32 %v1050, %v1020
    %v1052 = vadd.f32 %v1051, %v1021
    %v1053 = vadd.f32 %v1052, %v1022
    %v1054 = vadd.f32 %v1053, %v1023
    %v1055 = vadd.f32 %v1054, %v1024
    %v1056 = vadd.f32 %v1055, %v1025
    %v1057 = vadd.f32 %v1056, %v1026
    %v1058 = vadd.f32 %v1057, %v1027
    %v1059 = vadd.f32 %v1058, %v1028
    %v1060 = vadd.f32 %v1059, %v1029
    %v1061 = vadd.f32 %v1060, %v1030
    %v1062 = vrot.slane %v1061, 4
    %v1063 = vadd.f32 %v1061, %v1062
    %v1064 = vrot.slane %v1063, 2
    %v1065 = vadd.f32 %v1063, %v1064
    %v1066 = vrot.slane %v1065, 1
    %v1067 = vadd.f32 %v1065, %v1066
    %v1068 = vmul.f32 %v1067, %v411
    %s1069 = scalar_lea.vmem [#allocation2], 768
    %v1070 = vld [vmem:[%s1069] sm:$0xff]
    %v1071 = vld [vmem:[%s1069 + $0x8] sm:$0xff]
    %v1072 = vld [vmem:[%s1069 + $0x10] sm:$0xff]
    %v1073 = vld [vmem:[%s1069 + $0x18] sm:$0xff]
    %v1074 = vld [vmem:[%s1069 + $0x20] sm:$0xff]
    %v1075 = vld [vmem:[%s1069 + $0x28] sm:$0xff]
    %v1076 = vld [vmem:[%s1069 + $0x30] sm:$0xff]
    %v1077 = vld [vmem:[%s1069 + $0x38] sm:$0xff]
    %v1078 = vld [vmem:[%s1069 + $0x40] sm:$0xff]
    %v1079 = vld [vmem:[%s1069 + $0x48] sm:$0xff]
    %v1080 = vld [vmem:[%s1069 + $0x50] sm:$0xff]
    %v1081 = vld [vmem:[%s1069 + $0x58] sm:$0xff]
    %v1082 = vld [vmem:[%s1069 + $0x60] sm:$0xff]
    %v1083 = vld [vmem:[%s1069 + $0x68] sm:$0xff]
    %v1084 = vld [vmem:[%s1069 + $0x70] sm:$0xff]
    %v1085 = vld [vmem:[%s1069 + $0x78] sm:$0xff]
    %v1086 = vld [vmem:[%s1069 + $0x80] sm:$0xff]
    %v1087 = vld [vmem:[%s1069 + $0x88] sm:$0xff]
    %v1088 = vld [vmem:[%s1069 + $0x90] sm:$0xff]
    %v1089 = vld [vmem:[%s1069 + $0x98] sm:$0xff]
    %v1090 = vld [vmem:[%s1069 + $0xa0] sm:$0xff]
    %v1091 = vld [vmem:[%s1069 + $0xa8] sm:$0xff]
    %v1092 = vld [vmem:[%s1069 + $0xb0] sm:$0xff]
    %v1093 = vld [vmem:[%s1069 + $0xb8] sm:$0xff]
    %v1094 = vld [vmem:[%s1069 + $0xc0] sm:$0xff]
    %v1095 = vld [vmem:[%s1069 + $0xc8] sm:$0xff]
    %v1096 = vld [vmem:[%s1069 + $0xd0] sm:$0xff]
    %v1097 = vld [vmem:[%s1069 + $0xd8] sm:$0xff]
    %v1098 = vld [vmem:[%s1069 + $0xe0] sm:$0xff]
    %v1099 = vld [vmem:[%s1069 + $0xe8] sm:$0xff]
    %v1100 = vld [vmem:[%s1069 + $0xf0] sm:$0xff]
    %v1101 = vld [vmem:[%s1069 + $0xf8] sm:$0xff]
    %1102 = vmatprep.subr.mxu0 0.0
    %1103 = vmatpush1.msra.mxu0 %v62
    %1104 = vmatprep.subr.mxu0 0.0
    %1105 = vmatpush1.msra.mxu0 %v63
    %1106 = vmatprep.subr.mxu0 0.0
    %1107 = vmatpush1.msra.mxu0 %v64
    %1108 = vmatprep.subr.mxu0 0.0
    %1109 = vmatpush1.msra.mxu0 %v65
    %1110 = vmatprep.subr.mxu0 0.0
    %1111 = vmatpush1.msra.mxu0 %v66
    %1112 = vmatprep.subr.mxu0 0.0
    %1113 = vmatpush1.msra.mxu0 %v67
    %1114 = vmatprep.subr.mxu0 0.0
    %1115 = vmatpush1.msra.mxu0 %v68
    %1116 = vmatprep.subr.mxu0 0.0
    %1117 = vmatpush1.msra.mxu0 %v69
    %1118 = vmatprep.subr.mxu0 0.0
    %1119 = vmatpush1.msra.mxu0 %v70
    %1120 = vmatprep.subr.mxu0 0.0
    %1121 = vmatpush1.msra.mxu0 %v71
    %1122 = vmatprep.subr.mxu0 0.0
    %1123 = vmatpush1.msra.mxu0 %v72
    %1124 = vmatprep.subr.mxu0 0.0
    %1125 = vmatpush1.msra.mxu0 %v73
    %1126 = vmatprep.subr.mxu0 0.0
    %1127 = vmatpush1.msra.mxu0 %v74
    %1128 = vmatprep.subr.mxu0 0.0
    %1129 = vmatpush1.msra.mxu0 %v75
    %1130 = vmatprep.subr.mxu0 0.0
    %1131 = vmatpush1.msra.mxu0 %v76
    %1132 = vmatprep.subr.mxu0 0.0
    %1133 = vmatpush1.msra.mxu0 %v77
    %1134 = vmatprep.subr.mxu0 0.0
    %1135 = vmatpush1.msra.mxu0 0.0
    %1136 = vmatprep.subr.mxu0 0.0
    %1137 = vmatpush1.msra.mxu0 0.0
    %1138 = vmatprep.subr.mxu0 0.0
    %1139 = vmatpush1.msra.mxu0 0.0
    %1140 = vmatprep.subr.mxu0 0.0
    %1141 = vmatpush1.msra.mxu0 0.0
    %1142 = vmatprep.subr.mxu0 0.0
    %1143 = vmatpush1.msra.mxu0 0.0
    %1144 = vmatprep.subr.mxu0 0.0
    %1145 = vmatpush1.msra.mxu0 0.0
    %1146 = vmatprep.subr.mxu0 0.0
    %1147 = vmatpush1.msra.mxu0 0.0
    %1148 = vmatprep.subr.mxu0 0.0
    %1149 = vmatpush1.msra.mxu0 0.0
    %1150 = vmatprep.subr.mxu0 0.0
    %1151 = vmatpush1.msra.mxu0 0.0
    %1152 = vmatprep.subr.mxu0 0.0
    %1153 = vmatpush1.msra.mxu0 0.0
    %1154 = vmatprep.subr.mxu0 0.0
    %1155 = vmatpush1.msra.mxu0 0.0
    %1156 = vmatprep.subr.mxu0 0.0
    %1157 = vmatpush1.msra.mxu0 0.0
    %1158 = vmatprep.subr.mxu0 0.0
    %1159 = vmatpush1.msra.mxu0 0.0
    %1160 = vmatprep.subr.mxu0 0.0
    %1161 = vmatpush1.msra.mxu0 0.0
    %1162 = vmatprep.subr.mxu0 0.0
    %1163 = vmatpush1.msra.mxu0 0.0
    %1164 = vmatprep.subr.mxu0 0.0
    %1165 = vmatpush1.msra.mxu0 0.0
    %1166 = vmatprep.mubr.f32.mxu0 0.0
    %1167 = vmatmul.mubr.f32.gmra.mrb[0].mxu0 %v1070
    %v1168 = vpop.f32.mrb[0].mxu0
    %v1169 = vadd.f32 %v115, %v1168
    %v1170 = vpop.f32.mrb[0].mxu0
    %1171 = vmatprep.mubr.f32.mxu0 0.0
    %1172 = vmatmul.mubr.f32.gmra.mrb[0].mxu0 %v1071
    %v1173 = vpop.f32.mrb[0].mxu0
    %v1174 = vadd.f32 %v115, %v1173
    %v1175 = vpop.f32.mrb[0].mxu0
    %1176 = vmatprep.mubr.f32.mxu0 0.0
    %1177 = vmatmul.mubr.f32.gmra.mrb[0].mxu0 %v1072
    %v1178 = vpop.f32.mrb[0].mxu0
    %v1179 = vadd.f32 %v115, %v1178
    %v1180 = vpop.f32.mrb[0].mxu0
    %1181 = vmatprep.mubr.f32.mxu0 0.0
    %1182 = vmatmul.mubr.f32.gmra.mrb[0].mxu0 %v1073
    %v1183 = vpop.f32.mrb[0].mxu0
    %v1184 = vadd.f32 %v115, %v1183
    %v1185 = vpop.f32.mrb[0].mxu0
    %1186 = vmatprep.mubr.f32.mxu0 0.0
    %1187 = vmatmul.mubr.f32.gmra.mrb[0].mxu0 %v1074
    %v1188 = vpop.f32.mrb[0].mxu0
    %v1189 = vadd.f32 %v115, %v1188
    %v1190 = vpop.f32.mrb[0].mxu0
    %1191 = vmatprep.mubr.f32.mxu0 0.0
    %1192 = vmatmul.mubr.f32.gmra.mrb[0].mxu0 %v1075
    %v1193 = vpop.f32.mrb[0].mxu0
    %v1194 = vadd.f32 %v115, %v1193
    %v1195 = vpop.f32.mrb[0].mxu0
    %1196 = vmatprep.mubr.f32.mxu0 0.0
    %1197 = vmatmul.mubr.f32.gmra.mrb[0].mxu0 %v1076
    %v1198 = vpop.f32.mrb[0].mxu0
    %v1199 = vadd.f32 %v115, %v1198
    %v1200 = vpop.f32.mrb[0].mxu0
    %1201 = vmatprep.mubr.f32.mxu0 0.0
    %1202 = vmatmul.mubr.f32.gmra.mrb[0].mxu0 %v1077
    %v1203 = vpop.f32.mrb[0].mxu0
    %v1204 = vadd.f32 %v115, %v1203
    %v1205 = vpop.f32.mrb[0].mxu0
    %1206 = vmatprep.mubr.f32.mxu0 0.0
    %1207 = vmatmul.mubr.f32.gmra.mrb[0].mxu0 %v1078
    %v1208 = vpop.f32.mrb[0].mxu0
    %v1209 = vadd.f32 %v115, %v1208
    %v1210 = vpop.f32.mrb[0].mxu0
    %1211 = vmatprep.mubr.f32.mxu0 0.0
    %1212 = vmatmul.mubr.f32.gmra.mrb[0].mxu0 %v1079
    %v1213 = vpop.f32.mrb[0].mxu0
    %v1214 = vadd.f32 %v115, %v1213
    %v1215 = vpop.f32.mrb[0].mxu0
    %1216 = vmatprep.mubr.f32.mxu0 0.0
    %1217 = vmatmul.mubr.f32.gmra.mrb[0].mxu0 %v1080
    %v1218 = vpop.f32.mrb[0].mxu0
    %v1219 = vadd.f32 %v115, %v1218
    %v1220 = vpop.f32.mrb[0].mxu0
    %1221 = vmatprep.mubr.f32.mxu0 0.0
    %1222 = vmatmul.mubr.f32.gmra.mrb[0].mxu0 %v1081
    %v1223 = vpop.f32.mrb[0].mxu0
    %v1224 = vadd.f32 %v115, %v1223
    %v1225 = vpop.f32.mrb[0].mxu0
    %1226 = vmatprep.mubr.f32.mxu0 0.0
    %1227 = vmatmul.mubr.f32.gmra.mrb[0].mxu0 %v1082
    %v1228 = vpop.f32.mrb[0].mxu0
    %v1229 = vadd.f32 %v115, %v1228
    %v1230 = vpop.f32.mrb[0].mxu0
    %1231 = vmatprep.mubr.f32.mxu0 0.0
    %1232 = vmatmul.mubr.f32.gmra.mrb[0].mxu0 %v1083
    %v1233 = vpop.f32.mrb[0].mxu0
    %v1234 = vadd.f32 %v115, %v1233
    %v1235 = vpop.f32.mrb[0].mxu0
    %1236 = vmatprep.mubr.f32.mxu0 0.0
    %1237 = vmatmul.mubr.f32.gmra.mrb[0].mxu0 %v1084
    %v1238 = vpop.f32.mrb[0].mxu0
    %v1239 = vadd.f32 %v115, %v1238
    %v1240 = vpop.f32.mrb[0].mxu0
    %1241 = vmatprep.mubr.f32.mxu0 0.0
    %1242 = vmatmul.mubr.f32.gmra.mrb[0].mxu0 %v1085
    %v1243 = vpop.f32.mrb[0].mxu0
    %v1244 = vadd.f32 %v115, %v1243
    %v1245 = vpop.f32.mrb[0].mxu0
    %1246 = vmatprep.mubr.f32.mxu0 0.0
    %1247 = vmatmul.mubr.f32.gmra.mrb[0].mxu0 %v1086
    %v1248 = vpop.f32.mrb[0].mxu0
    %v1249 = vadd.f32 %v115, %v1248
    %v1250 = vpop.f32.mrb[0].mxu0
    %1251 = vmatprep.mubr.f32.mxu0 0.0
    %1252 = vmatmul.mubr.f32.gmra.mrb[0].mxu0 %v1087
    %v1253 = vpop.f32.mrb[0].mxu0
    %v1254 = vadd.f32 %v115, %v1253
    %v1255 = vpop.f32.mrb[0].mxu0
    %1256 = vmatprep.mubr.f32.mxu0 0.0
    %1257 = vmatmul.mubr.f32.gmra.mrb[0].mxu0 %v1088
    %v1258 = vpop.f32.mrb[0].mxu0
    %v1259 = vadd.f32 %v115, %v1258
    %v1260 = vpop.f32.mrb[0].mxu0
    %1261 = vmatprep.mubr.f32.mxu0 0.0
    %1262 = vmatmul.mubr.f32.gmra.mrb[0].mxu0 %v1089
    %v1263 = vpop.f32.mrb[0].mxu0
    %v1264 = vadd.f32 %v115, %v1263
    %v1265 = vpop.f32.mrb[0].mxu0
    %1266 = vmatprep.mubr.f32.mxu0 0.0
    %1267 = vmatmul.mubr.f32.gmra.mrb[0].mxu0 %v1090
    %v1268 = vpop.f32.mrb[0].mxu0
    %v1269 = vadd.f32 %v115, %v1268
    %v1270 = vpop.f32.mrb[0].mxu0
    %1271 = vmatprep.mubr.f32.mxu0 0.0
    %1272 = vmatmul.mubr.f32.gmra.mrb[0].mxu0 %v1091
    %v1273 = vpop.f32.mrb[0].mxu0
    %v1274 = vadd.f32 %v115, %v1273
    %v1275 = vpop.f32.mrb[0].mxu0
    %1276 = vmatprep.mubr.f32.mxu0 0.0
    %1277 = vmatmul.mubr.f32.gmra.mrb[0].mxu0 %v1092
    %v1278 = vpop.f32.mrb[0].mxu0
    %v1279 = vadd.f32 %v115, %v1278
    %v1280 = vpop.f32.mrb[0].mxu0
    %1281 = vmatprep.mubr.f32.mxu0 0.0
    %1282 = vmatmul.mubr.f32.gmra.mrb[0].mxu0 %v1093
    %v1283 = vpop.f32.mrb[0].mxu0
    %v1284 = vadd.f32 %v115, %v1283
    %v1285 = vpop.f32.mrb[0].mxu0
    %1286 = vmatprep.mubr.f32.mxu0 0.0
    %1287 = vmatmul.mubr.f32.gmra.mrb[0].mxu0 %v1094
    %v1288 = vpop.f32.mrb[0].mxu0
    %v1289 = vadd.f32 %v115, %v1288
    %v1290 = vpop.f32.mrb[0].mxu0
    %1291 = vmatprep.mubr.f32.mxu0 0.0
    %1292 = vmatmul.mubr.f32.gmra.mrb[0].mxu0 %v1095
    %v1293 = vpop.f32.mrb[0].mxu0
    %v1294 = vadd.f32 %v115, %v1293
    %v1295 = vpop.f32.mrb[0].mxu0
    %1296 = vmatprep.mubr.f32.mxu0 0.0
    %1297 = vmatmul.mubr.f32.gmra.mrb[0].mxu0 %v1096
    %v1298 = vpop.f32.mrb[0].mxu0
    %v1299 = vadd.f32 %v115, %v1298
    %v1300 = vpop.f32.mrb[0].mxu0
    %1301 = vmatprep.mubr.f32.mxu0 0.0
    %1302 = vmatmul.mubr.f32.gmra.mrb[0].mxu0 %v1097
    %v1303 = vpop.f32.mrb[0].mxu0
    %v1304 = vadd.f32 %v115, %v1303
    %v1305 = vpop.f32.mrb[0].mxu0
    %1306 = vmatprep.mubr.f32.mxu0 0.0
    %1307 = vmatmul.mubr.f32.gmra.mrb[0].mxu0 %v1098
    %v1308 = vpop.f32.mrb[0].mxu0
    %v1309 = vadd.f32 %v115, %v1308
    %v1310 = vpop.f32.mrb[0].mxu0
    %1311 = vmatprep.mubr.f32.mxu0 0.0
    %1312 = vmatmul.mubr.f32.gmra.mrb[0].mxu0 %v1099
    %v1313 = vpop.f32.mrb[0].mxu0
    %v1314 = vadd.f32 %v115, %v1313
    %v1315 = vpop.f32.mrb[0].mxu0
    %1316 = vmatprep.mubr.f32.mxu0 0.0
    %1317 = vmatmul.mubr.f32.gmra.mrb[0].mxu0 %v1100
    %v1318 = vpop.f32.mrb[0].mxu0
    %v1319 = vadd.f32 %v115, %v1318
    %v1320 = vpop.f32.mrb[0].mxu0
    %1321 = vmatprep.mubr.f32.mxu0 0.0
    %1322 = vmatmul.mubr.f32.gmra.mrb[0].mxu0 %v1101
    %v1323 = vpop.f32.mrb[0].mxu0
    %v1324 = vadd.f32 %v115, %v1323
    %v1325 = vpop.f32.mrb[0].mxu0
    %1326 = vdwg.mxu0
    %v1327 = vmax.f32 %v1169, 0.0
    %v1328 = vmax.f32 %v1174, 0.0
    %v1329 = vmax.f32 %v1179, 0.0
    %v1330 = vmax.f32 %v1184, 0.0
    %v1331 = vmax.f32 %v1189, 0.0
    %v1332 = vmax.f32 %v1194, 0.0
    %v1333 = vmax.f32 %v1199, 0.0
    %v1334 = vmax.f32 %v1204, 0.0
    %v1335 = vmax.f32 %v1209, 0.0
    %v1336 = vmax.f32 %v1214, 0.0
    %v1337 = vmax.f32 %v1219, 0.0
    %v1338 = vmax.f32 %v1224, 0.0
    %v1339 = vmax.f32 %v1229, 0.0
    %v1340 = vmax.f32 %v1234, 0.0
    %v1341 = vmax.f32 %v1239, 0.0
    %v1342 = vmax.f32 %v1244, 0.0
    %v1343 = vmax.f32 %v1249, 0.0
    %v1344 = vmax.f32 %v1254, 0.0
    %v1345 = vmax.f32 %v1259, 0.0
    %v1346 = vmax.f32 %v1264, 0.0
    %v1347 = vmax.f32 %v1269, 0.0
    %v1348 = vmax.f32 %v1274, 0.0
    %v1349 = vmax.f32 %v1279, 0.0
    %v1350 = vmax.f32 %v1284, 0.0
    %v1351 = vmax.f32 %v1289, 0.0
    %v1352 = vmax.f32 %v1294, 0.0
    %v1353 = vmax.f32 %v1299, 0.0
    %v1354 = vmax.f32 %v1304, 0.0
    %v1355 = vmax.f32 %v1309, 0.0
    %v1356 = vmax.f32 %v1314, 0.0
    %v1357 = vmax.f32 %v1319, 0.0
    %v1358 = vmax.f32 %v1324, 0.0
    %v1359 = vadd.f32 %v1327, %v1328
    %v1360 = vadd.f32 %v1359, %v1329
    %v1361 = vadd.f32 %v1360, %v1330
    %v1362 = vadd.f32 %v1361, %v1331
    %v1363 = vadd.f32 %v1362, %v1332
    %v1364 = vadd.f32 %v1363, %v1333
    %v1365 = vadd.f32 %v1364, %v1334
    %v1366 = vadd.f32 %v1365, %v1335
    %v1367 = vadd.f32 %v1366, %v1336
    %v1368 = vadd.f32 %v1367, %v1337
    %v1369 = vadd.f32 %v1368, %v1338
    %v1370 = vadd.f32 %v1369, %v1339
    %v1371 = vadd.f32 %v1370, %v1340
    %v1372 = vadd.f32 %v1371, %v1341
    %v1373 = vadd.f32 %v1372, %v1342
    %v1374 = vadd.f32 %v1373, %v1343
    %v1375 = vadd.f32 %v1374, %v1344
    %v1376 = vadd.f32 %v1375, %v1345
    %v1377 = vadd.f32 %v1376, %v1346
    %v1378 = vadd.f32 %v1377, %v1347
    %v1379 = vadd.f32 %v1378, %v1348
    %v1380 = vadd.f32 %v1379, %v1349
    %v1381 = vadd.f32 %v1380, %v1350
    %v1382 = vadd.f32 %v1381, %v1351
    %v1383 = vadd.f32 %v1382, %v1352
    %v1384 = vadd.f32 %v1383, %v1353
    %v1385 = vadd.f32 %v1384, %v1354
    %v1386 = vadd.f32 %v1385, %v1355
    %v1387 = vadd.f32 %v1386, %v1356
    %v1388 = vadd.f32 %v1387, %v1357
    %v1389 = vadd.f32 %v1388, %v1358
    %v1390 = vrot.slane %v1389, 4
    %v1391 = vadd.f32 %v1389, %v1390
    %v1392 = vrot.slane %v1391, 2
    %v1393 = vadd.f32 %v1391, %v1392
    %v1394 = vrot.slane %v1393, 1
    %v1395 = vadd.f32 %v1393, %v1394
    %v1396 = vmul.f32 %v1395, %v411
    %s1397 = scalar_lea.vmem [#allocation2], 1024
    %v1398 = vld [vmem:[%s1397] sm:$0xff]
    %v1399 = vld [vmem:[%s1397 + $0x8] sm:$0xff]
    %v1400 = vld [vmem:[%s1397 + $0x10] sm:$0xff]
    %v1401 = vld [vmem:[%s1397 + $0x18] sm:$0xff]
    %v1402 = vld [vmem:[%s1397 + $0x20] sm:$0xff]
    %v1403 = vld [vmem:[%s1397 + $0x28] sm:$0xff]
    %v1404 = vld [vmem:[%s1397 + $0x30] sm:$0xff]
    %v1405 = vld [vmem:[%s1397 + $0x38] sm:$0xff]
    %v1406 = vld [vmem:[%s1397 + $0x40] sm:$0xff]
    %v1407 = vld [vmem:[%s1397 + $0x48] sm:$0xff]
    %v1408 = vld [vmem:[%s1397 + $0x50] sm:$0xff]
    %v1409 = vld [vmem:[%s1397 + $0x58] sm:$0xff]
    %v1410 = vld [vmem:[%s1397 + $0x60] sm:$0xff]
    %v1411 = vld [vmem:[%s1397 + $0x68] sm:$0xff]
    %v1412 = vld [vmem:[%s1397 + $0x70] sm:$0xff]
    %v1413 = vld [vmem:[%s1397 + $0x78] sm:$0xff]
    %v1414 = vld [vmem:[%s1397 + $0x80] sm:$0xff]
    %v1415 = vld [vmem:[%s1397 + $0x88] sm:$0xff]
    %v1416 = vld [vmem:[%s1397 + $0x90] sm:$0xff]
    %v1417 = vld [vmem:[%s1397 + $0x98] sm:$0xff]
    %v1418 = vld [vmem:[%s1397 + $0xa0] sm:$0xff]
    %v1419 = vld [vmem:[%s1397 + $0xa8] sm:$0xff]
    %v1420 = vld [vmem:[%s1397 + $0xb0] sm:$0xff]
    %v1421 = vld [vmem:[%s1397 + $0xb8] sm:$0xff]
    %v1422 = vld [vmem:[%s1397 + $0xc0] sm:$0xff]
    %v1423 = vld [vmem:[%s1397 + $0xc8] sm:$0xff]
    %v1424 = vld [vmem:[%s1397 + $0xd0] sm:$0xff]
    %v1425 = vld [vmem:[%s1397 + $0xd8] sm:$0xff]
    %v1426 = vld [vmem:[%s1397 + $0xe0] sm:$0xff]
    %v1427 = vld [vmem:[%s1397 + $0xe8] sm:$0xff]
    %v1428 = vld [vmem:[%s1397 + $0xf0] sm:$0xff]
    %v1429 = vld [vmem:[%s1397 + $0xf8] sm:$0xff]
    %1430 = vmatprep.subr.mxu0 0.0
    %1431 = vmatpush1.msra.mxu0 %v62
    %1432 = vmatprep.subr.mxu0 0.0
    %1433 = vmatpush1.msra.mxu0 %v63
    %1434 = vmatprep.subr.mxu0 0.0
    %1435 = vmatpush1.msra.mxu0 %v64
    %1436 = vmatprep.subr.mxu0 0.0
    %1437 = vmatpush1.msra.mxu0 %v65
    %1438 = vmatprep.subr.mxu0 0.0
    %1439 = vmatpush1.msra.mxu0 %v66
    %1440 = vmatprep.subr.mxu0 0.0
    %1441 = vmatpush1.msra.mxu0 %v67
    %1442 = vmatprep.subr.mxu0 0.0
    %1443 = vmatpush1.msra.mxu0 %v68
    %1444 = vmatprep.subr.mxu0 0.0
    %1445 = vmatpush1.msra.mxu0 %v69
    %1446 = vmatprep.subr.mxu0 0.0
    %1447 = vmatpush1.msra.mxu0 %v70
    %1448 = vmatprep.subr.mxu0 0.0
    %1449 = vmatpush1.msra.mxu0 %v71
    %1450 = vmatprep.subr.mxu0 0.0
    %1451 = vmatpush1.msra.mxu0 %v72
    %1452 = vmatprep.subr.mxu0 0.0
    %1453 = vmatpush1.msra.mxu0 %v73
    %1454 = vmatprep.subr.mxu0 0.0
    %1455 = vmatpush1.msra.mxu0 %v74
    %1456 = vmatprep.subr.mxu0 0.0
    %1457 = vmatpush1.msra.mxu0 %v75
    %1458 = vmatprep.subr.mxu0 0.0
    %1459 = vmatpush1.msra.mxu0 %v76
    %1460 = vmatprep.subr.mxu0 0.0
    %1461 = vmatpush1.msra.mxu0 %v77
    %1462 = vmatprep.subr.mxu0 0.0
    %1463 = vmatpush1.msra.mxu0 0.0
    %1464 = vmatprep.subr.mxu0 0.0
    %1465 = vmatpush1.msra.mxu0 0.0
    %1466 = vmatprep.subr.mxu0 0.0
    %1467 = vmatpush1.msra.mxu0 0.0
    %1468 = vmatprep.subr.mxu0 0.0
    %1469 = vmatpush1.msra.mxu0 0.0
    %1470 = vmatprep.subr.mxu0 0.0
    %1471 = vmatpush1.msra.mxu0 0.0
    %1472 = vmatprep.subr.mxu0 0.0
    %1473 = vmatpush1.msra.mxu0 0.0
    %1474 = vmatprep.subr.mxu0 0.0
    %1475 = vmatpush1.msra.mxu0 0.0
    %1476 = vmatprep.subr.mxu0 0.0
    %1477 = vmatpush1.msra.mxu0 0.0
    %1478 = vmatprep.subr.mxu0 0.0
    %1479 = vmatpush1.msra.mxu0 0.0
    %1480 = vmatprep.subr.mxu0 0.0
    %1481 = vmatpush1.msra.mxu0 0.0
    %1482 = vmatprep.subr.mxu0 0.0
    %1483 = vmatpush1.msra.mxu0 0.0
    %1484 = vmatprep.subr.mxu0 0.0
    %1485 = vmatpush1.msra.mxu0 0.0
    %1486 = vmatprep.subr.mxu0 0.0
    %1487 = vmatpush1.msra.mxu0 0.0
    %1488 = vmatprep.subr.mxu0 0.0
    %1489 = vmatpush1.msra.mxu0 0.0
    %1490 = vmatprep.subr.mxu0 0.0
    %1491 = vmatpush1.msra.mxu0 0.0
    %1492 = vmatprep.subr.mxu0 0.0
    %1493 = vmatpush1.msra.mxu0 0.0
    %1494 = vmatprep.mubr.f32.mxu0 0.0
    %1495 = vmatmul.mubr.f32.gmra.mrb[0].mxu0 %v1398
    %v1496 = vpop.f32.mrb[0].mxu0
    %v1497 = vadd.f32 %v115, %v1496
    %v1498 = vpop.f32.mrb[0].mxu0
    %1499 = vmatprep.mubr.f32.mxu0 0.0
    %1500 = vmatmul.mubr.f32.gmra.mrb[0].mxu0 %v1399
    %v1501 = vpop.f32.mrb[0].mxu0
    %v1502 = vadd.f32 %v115, %v1501
    %v1503 = vpop.f32.mrb[0].mxu0
    %1504 = vmatprep.mubr.f32.mxu0 0.0
    %1505 = vmatmul.mubr.f32.gmra.mrb[0].mxu0 %v1400
    %v1506 = vpop.f32.mrb[0].mxu0
    %v1507 = vadd.f32 %v115, %v1506
    %v1508 = vpop.f32.mrb[0].mxu0
    %1509 = vmatprep.mubr.f32.mxu0 0.0
    %1510 = vmatmul.mubr.f32.gmra.mrb[0].mxu0 %v1401
    %v1511 = vpop.f32.mrb[0].mxu0
    %v1512 = vadd.f32 %v115, %v1511
    %v1513 = vpop.f32.mrb[0].mxu0
    %1514 = vmatprep.mubr.f32.mxu0 0.0
    %1515 = vmatmul.mubr.f32.gmra.mrb[0].mxu0 %v1402
    %v1516 = vpop.f32.mrb[0].mxu0
    %v1517 = vadd.f32 %v115, %v1516
    %v1518 = vpop.f32.mrb[0].mxu0
    %1519 = vmatprep.mubr.f32.mxu0 0.0
    %1520 = vmatmul.mubr.f32.gmra.mrb[0].mxu0 %v1403
    %v1521 = vpop.f32.mrb[0].mxu0
    %v1522 = vadd.f32 %v115, %v1521
    %v1523 = vpop.f32.mrb[0].mxu0
    %1524 = vmatprep.mubr.f32.mxu0 0.0
    %1525 = vmatmul.mubr.f32.gmra.mrb[0].mxu0 %v1404
    %v1526 = vpop.f32.mrb[0].mxu0
    %v1527 = vadd.f32 %v115, %v1526
    %v1528 = vpop.f32.mrb[0].mxu0
    %1529 = vmatprep.mubr.f32.mxu0 0.0
    %1530 = vmatmul.mubr.f32.gmra.mrb[0].mxu0 %v1405
    %v1531 = vpop.f32.mrb[0].mxu0
    %v1532 = vadd.f32 %v115, %v1531
    %v1533 = vpop.f32.mrb[0].mxu0
    %1534 = vmatprep.mubr.f32.mxu0 0.0
    %1535 = vmatmul.mubr.f32.gmra.mrb[0].mxu0 %v1406
    %v1536 = vpop.f32.mrb[0].mxu0
    %v1537 = vadd.f32 %v115, %v1536
    %v1538 = vpop.f32.mrb[0].mxu0
    %1539 = vmatprep.mubr.f32.mxu0 0.0
    %1540 = vmatmul.mubr.f32.gmra.mrb[0].mxu0 %v1407
    %v1541 = vpop.f32.mrb[0].mxu0
    %v1542 = vadd.f32 %v115, %v1541
    %v1543 = vpop.f32.mrb[0].mxu0
    %1544 = vmatprep.mubr.f32.mxu0 0.0
    %1545 = vmatmul.mubr.f32.gmra.mrb[0].mxu0 %v1408
    %v1546 = vpop.f32.mrb[0].mxu0
    %v1547 = vadd.f32 %v115, %v1546
    %v1548 = vpop.f32.mrb[0].mxu0
    %1549 = vmatprep.mubr.f32.mxu0 0.0
    %1550 = vmatmul.mubr.f32.gmra.mrb[0].mxu0 %v1409
    %v1551 = vpop.f32.mrb[0].mxu0
    %v1552 = vadd.f32 %v115, %v1551
    %v1553 = vpop.f32.mrb[0].mxu0
    %1554 = vmatprep.mubr.f32.mxu0 0.0
    %1555 = vmatmul.mubr.f32.gmra.mrb[0].mxu0 %v1410
    %v1556 = vpop.f32.mrb[0].mxu0
    %v1557 = vadd.f32 %v115, %v1556
    %v1558 = vpop.f32.mrb[0].mxu0
    %1559 = vmatprep.mubr.f32.mxu0 0.0
    %1560 = vmatmul.mubr.f32.gmra.mrb[0].mxu0 %v1411
    %v1561 = vpop.f32.mrb[0].mxu0
    %v1562 = vadd.f32 %v115, %v1561
    %v1563 = vpop.f32.mrb[0].mxu0
    %1564 = vmatprep.mubr.f32.mxu0 0.0
    %1565 = vmatmul.mubr.f32.gmra.mrb[0].mxu0 %v1412
    %v1566 = vpop.f32.mrb[0].mxu0
    %v1567 = vadd.f32 %v115, %v1566
    %v1568 = vpop.f32.mrb[0].mxu0
    %1569 = vmatprep.mubr.f32.mxu0 0.0
    %1570 = vmatmul.mubr.f32.gmra.mrb[0].mxu0 %v1413
    %v1571 = vpop.f32.mrb[0].mxu0
    %v1572 = vadd.f32 %v115, %v1571
    %v1573 = vpop.f32.mrb[0].mxu0
    %1574 = vmatprep.mubr.f32.mxu0 0.0
    %1575 = vmatmul.mubr.f32.gmra.mrb[0].mxu0 %v1414
    %v1576 = vpop.f32.mrb[0].mxu0
    %v1577 = vadd.f32 %v115, %v1576
    %v1578 = vpop.f32.mrb[0].mxu0
    %1579 = vmatprep.mubr.f32.mxu0 0.0
    %1580 = vmatmul.mubr.f32.gmra.mrb[0].mxu0 %v1415
    %v1581 = vpop.f32.mrb[0].mxu0
    %v1582 = vadd.f32 %v115, %v1581
    %v1583 = vpop.f32.mrb[0].mxu0
    %1584 = vmatprep.mubr.f32.mxu0 0.0
    %1585 = vmatmul.mubr.f32.gmra.mrb[0].mxu0 %v1416
    %v1586 = vpop.f32.mrb[0].mxu0
    %v1587 = vadd.f32 %v115, %v1586
    %v1588 = vpop.f32.mrb[0].mxu0
    %1589 = vmatprep.mubr.f32.mxu0 0.0
    %1590 = vmatmul.mubr.f32.gmra.mrb[0].mxu0 %v1417
    %v1591 = vpop.f32.mrb[0].mxu0
    %v1592 = vadd.f32 %v115, %v1591
    %v1593 = vpop.f32.mrb[0].mxu0
    %1594 = vmatprep.mubr.f32.mxu0 0.0
    %1595 = vmatmul.mubr.f32.gmra.mrb[0].mxu0 %v1418
    %v1596 = vpop.f32.mrb[0].mxu0
    %v1597 = vadd.f32 %v115, %v1596
    %v1598 = vpop.f32.mrb[0].mxu0
    %1599 = vmatprep.mubr.f32.mxu0 0.0
    %1600 = vmatmul.mubr.f32.gmra.mrb[0].mxu0 %v1419
    %v1601 = vpop.f32.mrb[0].mxu0
    %v1602 = vadd.f32 %v115, %v1601
    %v1603 = vpop.f32.mrb[0].mxu0
    %1604 = vmatprep.mubr.f32.mxu0 0.0
    %1605 = vmatmul.mubr.f32.gmra.mrb[0].mxu0 %v1420
    %v1606 = vpop.f32.mrb[0].mxu0
    %v1607 = vadd.f32 %v115, %v1606
    %v1608 = vpop.f32.mrb[0].mxu0
    %1609 = vmatprep.mubr.f32.mxu0 0.0
    %1610 = vmatmul.mubr.f32.gmra.mrb[0].mxu0 %v1421
    %v1611 = vpop.f32.mrb[0].mxu0
    %v1612 = vadd.f32 %v115, %v1611
    %v1613 = vpop.f32.mrb[0].mxu0
    %1614 = vmatprep.mubr.f32.mxu0 0.0
    %1615 = vmatmul.mubr.f32.gmra.mrb[0].mxu0 %v1422
    %v1616 = vpop.f32.mrb[0].mxu0
    %v1617 = vadd.f32 %v115, %v1616
    %v1618 = vpop.f32.mrb[0].mxu0
    %1619 = vmatprep.mubr.f32.mxu0 0.0
    %1620 = vmatmul.mubr.f32.gmra.mrb[0].mxu0 %v1423
    %v1621 = vpop.f32.mrb[0].mxu0
    %v1622 = vadd.f32 %v115, %v1621
    %v1623 = vpop.f32.mrb[0].mxu0
    %1624 = vmatprep.mubr.f32.mxu0 0.0
    %1625 = vmatmul.mubr.f32.gmra.mrb[0].mxu0 %v1424
    %v1626 = vpop.f32.mrb[0].mxu0
    %v1627 = vadd.f32 %v115, %v1626
    %v1628 = vpop.f32.mrb[0].mxu0
    %1629 = vmatprep.mubr.f32.mxu0 0.0
    %1630 = vmatmul.mubr.f32.gmra.mrb[0].mxu0 %v1425
    %v1631 = vpop.f32.mrb[0].mxu0
    %v1632 = vadd.f32 %v115, %v1631
    %v1633 = vpop.f32.mrb[0].mxu0
    %1634 = vmatprep.mubr.f32.mxu0 0.0
    %1635 = vmatmul.mubr.f32.gmra.mrb[0].mxu0 %v1426
    %v1636 = vpop.f32.mrb[0].mxu0
    %v1637 = vadd.f32 %v115, %v1636
    %v1638 = vpop.f32.mrb[0].mxu0
    %1639 = vmatprep.mubr.f32.mxu0 0.0
    %1640 = vmatmul.mubr.f32.gmra.mrb[0].mxu0 %v1427
    %v1641 = vpop.f32.mrb[0].mxu0
    %v1642 = vadd.f32 %v115, %v1641
    %v1643 = vpop.f32.mrb[0].mxu0
    %1644 = vmatprep.mubr.f32.mxu0 0.0
    %1645 = vmatmul.mubr.f32.gmra.mrb[0].mxu0 %v1428
    %v1646 = vpop.f32.mrb[0].mxu0
    %v1647 = vadd.f32 %v115, %v1646
    %v1648 = vpop.f32.mrb[0].mxu0
    %1649 = vmatprep.mubr.f32.mxu0 0.0
    %1650 = vmatmul.mubr.f32.gmra.mrb[0].mxu0 %v1429
    %v1651 = vpop.f32.mrb[0].mxu0
    %v1652 = vadd.f32 %v115, %v1651
    %v1653 = vpop.f32.mrb[0].mxu0
    %1654 = vdwg.mxu0
    %v1655 = vmax.f32 %v1497, 0.0
    %v1656 = vmax.f32 %v1502, 0.0
    %v1657 = vmax.f32 %v1507, 0.0
    %v1658 = vmax.f32 %v1512, 0.0
    %v1659 = vmax.f32 %v1517, 0.0
    %v1660 = vmax.f32 %v1522, 0.0
    %v1661 = vmax.f32 %v1527, 0.0
    %v1662 = vmax.f32 %v1532, 0.0
    %v1663 = vmax.f32 %v1537, 0.0
    %v1664 = vmax.f32 %v1542, 0.0
    %v1665 = vmax.f32 %v1547, 0.0
    %v1666 = vmax.f32 %v1552, 0.0
    %v1667 = vmax.f32 %v1557, 0.0
    %v1668 = vmax.f32 %v1562, 0.0
    %v1669 = vmax.f32 %v1567, 0.0
    %v1670 = vmax.f32 %v1572, 0.0
    %v1671 = vmax.f32 %v1577, 0.0
    %v1672 = vmax.f32 %v1582, 0.0
    %v1673 = vmax.f32 %v1587, 0.0
    %v1674 = vmax.f32 %v1592, 0.0
    %v1675 = vmax.f32 %v1597, 0.0
    %v1676 = vmax.f32 %v1602, 0.0
    %v1677 = vmax.f32 %v1607, 0.0
    %v1678 = vmax.f32 %v1612, 0.0
    %v1679 = vmax.f32 %v1617, 0.0
    %v1680 = vmax.f32 %v1622, 0.0
    %v1681 = vmax.f32 %v1627, 0.0
    %v1682 = vmax.f32 %v1632, 0.0
    %v1683 = vmax.f32 %v1637, 0.0
    %v1684 = vmax.f32 %v1642, 0.0
    %v1685 = vmax.f32 %v1647, 0.0
    %v1686 = vmax.f32 %v1652, 0.0
    %v1687 = vadd.f32 %v1655, %v1656
    %v1688 = vadd.f32 %v1687, %v1657
    %v1689 = vadd.f32 %v1688, %v1658
    %v1690 = vadd.f32 %v1689, %v1659
    %v1691 = vadd.f32 %v1690, %v1660
    %v1692 = vadd.f32 %v1691, %v1661
    %v1693 = vadd.f32 %v1692, %v1662
    %v1694 = vadd.f32 %v1693, %v1663
    %v1695 = vadd.f32 %v1694, %v1664
    %v1696 = vadd.f32 %v1695, %v1665
    %v1697 = vadd.f32 %v1696, %v1666
    %v1698 = vadd.f32 %v1697, %v1667
    %v1699 = vadd.f32 %v1698, %v1668
    %v1700 = vadd.f32 %v1699, %v1669
    %v1701 = vadd.f32 %v1700, %v1670
    %v1702 = vadd.f32 %v1701, %v1671
    %v1703 = vadd.f32 %v1702, %v1672
    %v1704 = vadd.f32 %v1703, %v1673
    %v1705 = vadd.f32 %v1704, %v1674
    %v1706 = vadd.f32 %v1705, %v1675
    %v1707 = vadd.f32 %v1706, %v1676
    %v1708 = vadd.f32 %v1707, %v1677
    %v1709 = vadd.f32 %v1708, %v1678
    %v1710 = vadd.f32 %v1709, %v1679
    %v1711 = vadd.f32 %v1710, %v1680
    %v1712 = vadd.f32 %v1711, %v1681
    %v1713 = vadd.f32 %v1712, %v1682
    %v1714 = vadd.f32 %v1713, %v1683
    %v1715 = vadd.f32 %v1714, %v1684
    %v1716 = vadd.f32 %v1715, %v1685
    %v1717 = vadd.f32 %v1716, %v1686
    %v1718 = vrot.slane %v1717, 4
    %v1719 = vadd.f32 %v1717, %v1718
    %v1720 = vrot.slane %v1719, 2
    %v1721 = vadd.f32 %v1719, %v1720
    %v1722 = vrot.slane %v1721, 1
    %v1723 = vadd.f32 %v1721, %v1722
    %v1724 = vmul.f32 %v1723, %v411
    %s1725 = scalar_lea.vmem [#allocation2], 1280
    %v1726 = vld [vmem:[%s1725] sm:$0xff]
    %v1727 = vld [vmem:[%s1725 + $0x8] sm:$0xff]
    %v1728 = vld [vmem:[%s1725 + $0x10] sm:$0xff]
    %v1729 = vld [vmem:[%s1725 + $0x18] sm:$0xff]
    %v1730 = vld [vmem:[%s1725 + $0x20] sm:$0xff]
    %v1731 = vld [vmem:[%s1725 + $0x28] sm:$0xff]
    %v1732 = vld [vmem:[%s1725 + $0x30] sm:$0xff]
    %v1733 = vld [vmem:[%s1725 + $0x38] sm:$0xff]
    %v1734 = vld [vmem:[%s1725 + $0x40] sm:$0xff]
    %v1735 = vld [vmem:[%s1725 + $0x48] sm:$0xff]
    %v1736 = vld [vmem:[%s1725 + $0x50] sm:$0xff]
    %v1737 = vld [vmem:[%s1725 + $0x58] sm:$0xff]
    %v1738 = vld [vmem:[%s1725 + $0x60] sm:$0xff]
    %v1739 = vld [vmem:[%s1725 + $0x68] sm:$0xff]
    %v1740 = vld [vmem:[%s1725 + $0x70] sm:$0xff]
    %v1741 = vld [vmem:[%s1725 + $0x78] sm:$0xff]
    %v1742 = vld [vmem:[%s1725 + $0x80] sm:$0xff]
    %v1743 = vld [vmem:[%s1725 + $0x88] sm:$0xff]
    %v1744 = vld [vmem:[%s1725 + $0x90] sm:$0xff]
    %v1745 = vld [vmem:[%s1725 + $0x98] sm:$0xff]
    %v1746 = vld [vmem:[%s1725 + $0xa0] sm:$0xff]
    %v1747 = vld [vmem:[%s1725 + $0xa8] sm:$0xff]
    %v1748 = vld [vmem:[%s1725 + $0xb0] sm:$0xff]
    %v1749 = vld [vmem:[%s1725 + $0xb8] sm:$0xff]
    %v1750 = vld [vmem:[%s1725 + $0xc0] sm:$0xff]
    %v1751 = vld [vmem:[%s1725 + $0xc8] sm:$0xff]
    %v1752 = vld [vmem:[%s1725 + $0xd0] sm:$0xff]
    %v1753 = vld [vmem:[%s1725 + $0xd8] sm:$0xff]
    %v1754 = vld [vmem:[%s1725 + $0xe0] sm:$0xff]
    %v1755 = vld [vmem:[%s1725 + $0xe8] sm:$0xff]
    %v1756 = vld [vmem:[%s1725 + $0xf0] sm:$0xff]
    %v1757 = vld [vmem:[%s1725 + $0xf8] sm:$0xff]
    %1758 = vmatprep.subr.mxu0 0.0
    %1759 = vmatpush1.msra.mxu0 %v62
    %1760 = vmatprep.subr.mxu0 0.0
    %1761 = vmatpush1.msra.mxu0 %v63
    %1762 = vmatprep.subr.mxu0 0.0
    %1763 = vmatpush1.msra.mxu0 %v64
    %1764 = vmatprep.subr.mxu0 0.0
    %1765 = vmatpush1.msra.mxu0 %v65
    %1766 = vmatprep.subr.mxu0 0.0
    %1767 = vmatpush1.msra.mxu0 %v66
    %1768 = vmatprep.subr.mxu0 0.0
    %1769 = vmatpush1.msra.mxu0 %v67
    %1770 = vmatprep.subr.mxu0 0.0
    %1771 = vmatpush1.msra.mxu0 %v68
    %1772 = vmatprep.subr.mxu0 0.0
    %1773 = vmatpush1.msra.mxu0 %v69
    %1774 = vmatprep.subr.mxu0 0.0
    %1775 = vmatpush1.msra.mxu0 %v70
    %1776 = vmatprep.subr.mxu0 0.0
    %1777 = vmatpush1.msra.mxu0 %v71
    %1778 = vmatprep.subr.mxu0 0.0
    %1779 = vmatpush1.msra.mxu0 %v72
    %1780 = vmatprep.subr.mxu0 0.0
    %1781 = vmatpush1.msra.mxu0 %v73
    %1782 = vmatprep.subr.mxu0 0.0
    %1783 = vmatpush1.msra.mxu0 %v74
    %1784 = vmatprep.subr.mxu0 0.0
    %1785 = vmatpush1.msra.mxu0 %v75
    %1786 = vmatprep.subr.mxu0 0.0
    %1787 = vmatpush1.msra.mxu0 %v76
    %1788 = vmatprep.subr.mxu0 0.0
    %1789 = vmatpush1.msra.mxu0 %v77
    %1790 = vmatprep.subr.mxu0 0.0
    %1791 = vmatpush1.msra.mxu0 0.0
    %1792 = vmatprep.subr.mxu0 0.0
    %1793 = vmatpush1.msra.mxu0 0.0
    %1794 = vmatprep.subr.mxu0 0.0
    %1795 = vmatpush1.msra.mxu0 0.0
    %1796 = vmatprep.subr.mxu0 0.0
    %1797 = vmatpush1.msra.mxu0 0.0
    %1798 = vmatprep.subr.mxu0 0.0
    %1799 = vmatpush1.msra.mxu0 0.0
    %1800 = vmatprep.subr.mxu0 0.0
    %1801 = vmatpush1.msra.mxu0 0.0
    %1802 = vmatprep.subr.mxu0 0.0
    %1803 = vmatpush1.msra.mxu0 0.0
    %1804 = vmatprep.subr.mxu0 0.0
    %1805 = vmatpush1.msra.mxu0 0.0
    %1806 = vmatprep.subr.mxu0 0.0
    %1807 = vmatpush1.msra.mxu0 0.0
    %1808 = vmatprep.subr.mxu0 0.0
    %1809 = vmatpush1.msra.mxu0 0.0
    %1810 = vmatprep.subr.mxu0 0.0
    %1811 = vmatpush1.msra.mxu0 0.0
    %1812 = vmatprep.subr.mxu0 0.0
    %1813 = vmatpush1.msra.mxu0 0.0
    %1814 = vmatprep.subr.mxu0 0.0
    %1815 = vmatpush1.msra.mxu0 0.0
    %1816 = vmatprep.subr.mxu0 0.0
    %1817 = vmatpush1.msra.mxu0 0.0
    %1818 = vmatprep.subr.mxu0 0.0
    %1819 = vmatpush1.msra.mxu0 0.0
    %1820 = vmatprep.subr.mxu0 0.0
    %1821 = vmatpush1.msra.mxu0 0.0
    %1822 = vmatprep.mubr.f32.mxu0 0.0
    %1823 = vmatmul.mubr.f32.gmra.mrb[0].mxu0 %v1726
    %v1824 = vpop.f32.mrb[0].mxu0
    %v1825 = vadd.f32 %v115, %v1824
    %v1826 = vpop.f32.mrb[0].mxu0
    %1827 = vmatprep.mubr.f32.mxu0 0.0
    %1828 = vmatmul.mubr.f32.gmra.mrb[0].mxu0 %v1727
    %v1829 = vpop.f32.mrb[0].mxu0
    %v1830 = vadd.f32 %v115, %v1829
    %v1831 = vpop.f32.mrb[0].mxu0
    %1832 = vmatprep.mubr.f32.mxu0 0.0
    %1833 = vmatmul.mubr.f32.gmra.mrb[0].mxu0 %v1728
    %v1834 = vpop.f32.mrb[0].mxu0
    %v1835 = vadd.f32 %v115, %v1834
    %v1836 = vpop.f32.mrb[0].mxu0
    %1837 = vmatprep.mubr.f32.mxu0 0.0
    %1838 = vmatmul.mubr.f32.gmra.mrb[0].mxu0 %v1729
    %v1839 = vpop.f32.mrb[0].mxu0
    %v1840 = vadd.f32 %v115, %v1839
    %v1841 = vpop.f32.mrb[0].mxu0
    %1842 = vmatprep.mubr.f32.mxu0 0.0
    %1843 = vmatmul.mubr.f32.gmra.mrb[0].mxu0 %v1730
    %v1844 = vpop.f32.mrb[0].mxu0
    %v1845 = vadd.f32 %v115, %v1844
    %v1846 = vpop.f32.mrb[0].mxu0
    %1847 = vmatprep.mubr.f32.mxu0 0.0
    %1848 = vmatmul.mubr.f32.gmra.mrb[0].mxu0 %v1731
    %v1849 = vpop.f32.mrb[0].mxu0
    %v1850 = vadd.f32 %v115, %v1849
    %v1851 = vpop.f32.mrb[0].mxu0
    %1852 = vmatprep.mubr.f32.mxu0 0.0
    %1853 = vmatmul.mubr.f32.gmra.mrb[0].mxu0 %v1732
    %v1854 = vpop.f32.mrb[0].mxu0
    %v1855 = vadd.f32 %v115, %v1854
    %v1856 = vpop.f32.mrb[0].mxu0
    %1857 = vmatprep.mubr.f32.mxu0 0.0
    %1858 = vmatmul.mubr.f32.gmra.mrb[0].mxu0 %v1733
    %v1859 = vpop.f32.mrb[0].mxu0
    %v1860 = vadd.f32 %v115, %v1859
    %v1861 = vpop.f32.mrb[0].mxu0
    %1862 = vmatprep.mubr.f32.mxu0 0.0
    %1863 = vmatmul.mubr.f32.gmra.mrb[0].mxu0 %v1734
    %v1864 = vpop.f32.mrb[0].mxu0
    %v1865 = vadd.f32 %v115, %v1864
    %v1866 = vpop.f32.mrb[0].mxu0
    %1867 = vmatprep.mubr.f32.mxu0 0.0
    %1868 = vmatmul.mubr.f32.gmra.mrb[0].mxu0 %v1735
    %v1869 = vpop.f32.mrb[0].mxu0
    %v1870 = vadd.f32 %v115, %v1869
    %v1871 = vpop.f32.mrb[0].mxu0
    %1872 = vmatprep.mubr.f32.mxu0 0.0
    %1873 = vmatmul.mubr.f32.gmra.mrb[0].mxu0 %v1736
    %v1874 = vpop.f32.mrb[0].mxu0
    %v1875 = vadd.f32 %v115, %v1874
    %v1876 = vpop.f32.mrb[0].mxu0
    %1877 = vmatprep.mubr.f32.mxu0 0.0
    %1878 = vmatmul.mubr.f32.gmra.mrb[0].mxu0 %v1737
    %v1879 = vpop.f32.mrb[0].mxu0
    %v1880 = vadd.f32 %v115, %v1879
    %v1881 = vpop.f32.mrb[0].mxu0
    %1882 = vmatprep.mubr.f32.mxu0 0.0
    %1883 = vmatmul.mubr.f32.gmra.mrb[0].mxu0 %v1738
    %v1884 = vpop.f32.mrb[0].mxu0
    %v1885 = vadd.f32 %v115, %v1884
    %v1886 = vpop.f32.mrb[0].mxu0
    %1887 = vmatprep.mubr.f32.mxu0 0.0
    %1888 = vmatmul.mubr.f32.gmra.mrb[0].mxu0 %v1739
    %v1889 = vpop.f32.mrb[0].mxu0
    %v1890 = vadd.f32 %v115, %v1889
    %v1891 = vpop.f32.mrb[0].mxu0
    %1892 = vmatprep.mubr.f32.mxu0 0.0
    %1893 = vmatmul.mubr.f32.gmra.mrb[0].mxu0 %v1740
    %v1894 = vpop.f32.mrb[0].mxu0
    %v1895 = vadd.f32 %v115, %v1894
    %v1896 = vpop.f32.mrb[0].mxu0
    %1897 = vmatprep.mubr.f32.mxu0 0.0
    %1898 = vmatmul.mubr.f32.gmra.mrb[0].mxu0 %v1741
    %v1899 = vpop.f32.mrb[0].mxu0
    %v1900 = vadd.f32 %v115, %v1899
    %v1901 = vpop.f32.mrb[0].mxu0
    %1902 = vmatprep.mubr.f32.mxu0 0.0
    %1903 = vmatmul.mubr.f32.gmra.mrb[0].mxu0 %v1742
    %v1904 = vpop.f32.mrb[0].mxu0
    %v1905 = vadd.f32 %v115, %v1904
    %v1906 = vpop.f32.mrb[0].mxu0
    %1907 = vmatprep.mubr.f32.mxu0 0.0
    %1908 = vmatmul.mubr.f32.gmra.mrb[0].mxu0 %v1743
    %v1909 = vpop.f32.mrb[0].mxu0
    %v1910 = vadd.f32 %v115, %v1909
    %v1911 = vpop.f32.mrb[0].mxu0
    %1912 = vmatprep.mubr.f32.mxu0 0.0
    %1913 = vmatmul.mubr.f32.gmra.mrb[0].mxu0 %v1744
    %v1914 = vpop.f32.mrb[0].mxu0
    %v1915 = vadd.f32 %v115, %v1914
    %v1916 = vpop.f32.mrb[0].mxu0
    %1917 = vmatprep.mubr.f32.mxu0 0.0
    %1918 = vmatmul.mubr.f32.gmra.mrb[0].mxu0 %v1745
    %v1919 = vpop.f32.mrb[0].mxu0
    %v1920 = vadd.f32 %v115, %v1919
    %v1921 = vpop.f32.mrb[0].mxu0
    %1922 = vmatprep.mubr.f32.mxu0 0.0
    %1923 = vmatmul.mubr.f32.gmra.mrb[0].mxu0 %v1746
    %v1924 = vpop.f32.mrb[0].mxu0
    %v1925 = vadd.f32 %v115, %v1924
    %v1926 = vpop.f32.mrb[0].mxu0
    %1927 = vmatprep.mubr.f32.mxu0 0.0
    %1928 = vmatmul.mubr.f32.gmra.mrb[0].mxu0 %v1747
    %v1929 = vpop.f32.mrb[0].mxu0
    %v1930 = vadd.f32 %v115, %v1929
    %v1931 = vpop.f32.mrb[0].mxu0
    %1932 = vmatprep.mubr.f32.mxu0 0.0
    %1933 = vmatmul.mubr.f32.gmra.mrb[0].mxu0 %v1748
    %v1934 = vpop.f32.mrb[0].mxu0
    %v1935 = vadd.f32 %v115, %v1934
    %v1936 = vpop.f32.mrb[0].mxu0
    %1937 = vmatprep.mubr.f32.mxu0 0.0
    %1938 = vmatmul.mubr.f32.gmra.mrb[0].mxu0 %v1749
    %v1939 = vpop.f32.mrb[0].mxu0
    %v1940 = vadd.f32 %v115, %v1939
    %v1941 = vpop.f32.mrb[0].mxu0
    %1942 = vmatprep.mubr.f32.mxu0 0.0
    %1943 = vmatmul.mubr.f32.gmra.mrb[0].mxu0 %v1750
    %v1944 = vpop.f32.mrb[0].mxu0
    %v1945 = vadd.f32 %v115, %v1944
    %v1946 = vpop.f32.mrb[0].mxu0
    %1947 = vmatprep.mubr.f32.mxu0 0.0
    %1948 = vmatmul.mubr.f32.gmra.mrb[0].mxu0 %v1751
    %v1949 = vpop.f32.mrb[0].mxu0
    %v1950 = vadd.f32 %v115, %v1949
    %v1951 = vpop.f32.mrb[0].mxu0
    %1952 = vmatprep.mubr.f32.mxu0 0.0
    %1953 = vmatmul.mubr.f32.gmra.mrb[0].mxu0 %v1752
    %v1954 = vpop.f32.mrb[0].mxu0
    %v1955 = vadd.f32 %v115, %v1954
    %v1956 = vpop.f32.mrb[0].mxu0
    %1957 = vmatprep.mubr.f32.mxu0 0.0
    %1958 = vmatmul.mubr.f32.gmra.mrb[0].mxu0 %v1753
    %v1959 = vpop.f32.mrb[0].mxu0
    %v1960 = vadd.f32 %v115, %v1959
    %v1961 = vpop.f32.mrb[0].mxu0
    %1962 = vmatprep.mubr.f32.mxu0 0.0
    %1963 = vmatmul.mubr.f32.gmra.mrb[0].mxu0 %v1754
    %v1964 = vpop.f32.mrb[0].mxu0
    %v1965 = vadd.f32 %v115, %v1964
    %v1966 = vpop.f32.mrb[0].mxu0
    %1967 = vmatprep.mubr.f32.mxu0 0.0
    %1968 = vmatmul.mubr.f32.gmra.mrb[0].mxu0 %v1755
    %v1969 = vpop.f32.mrb[0].mxu0
    %v1970 = vadd.f32 %v115, %v1969
    %v1971 = vpop.f32.mrb[0].mxu0
    %1972 = vmatprep.mubr.f32.mxu0 0.0
    %1973 = vmatmul.mubr.f32.gmra.mrb[0].mxu0 %v1756
    %v1974 = vpop.f32.mrb[0].mxu0
    %v1975 = vadd.f32 %v115, %v1974
    %v1976 = vpop.f32.mrb[0].mxu0
    %1977 = vmatprep.mubr.f32.mxu0 0.0
    %1978 = vmatmul.mubr.f32.gmra.mrb[0].mxu0 %v1757
    %v1979 = vpop.f32.mrb[0].mxu0
    %v1980 = vadd.f32 %v115, %v1979
    %v1981 = vpop.f32.mrb[0].mxu0
    %1982 = vdwg.mxu0
    %v1983 = vmax.f32 %v1825, 0.0
    %v1984 = vmax.f32 %v1830, 0.0
    %v1985 = vmax.f32 %v1835, 0.0
    %v1986 = vmax.f32 %v1840, 0.0
    %v1987 = vmax.f32 %v1845, 0.0
    %v1988 = vmax.f32 %v1850, 0.0
    %v1989 = vmax.f32 %v1855, 0.0
    %v1990 = vmax.f32 %v1860, 0.0
    %v1991 = vmax.f32 %v1865, 0.0
    %v1992 = vmax.f32 %v1870, 0.0
    %v1993 = vmax.f32 %v1875, 0.0
    %v1994 = vmax.f32 %v1880, 0.0
    %v1995 = vmax.f32 %v1885, 0.0
    %v1996 = vmax.f32 %v1890, 0.0
    %v1997 = vmax.f32 %v1895, 0.0
    %v1998 = vmax.f32 %v1900, 0.0
    %v1999 = vmax.f32 %v1905, 0.0
    %v2000 = vmax.f32 %v1910, 0.0
    %v2001 = vmax.f32 %v1915, 0.0
    %v2002 = vmax.f32 %v1920, 0.0
    %v2003 = vmax.f32 %v1925, 0.0
    %v2004 = vmax.f32 %v1930, 0.0
    %v2005 = vmax.f32 %v1935, 0.0
    %v2006 = vmax.f32 %v1940, 0.0
    %v2007 = vmax.f32 %v1945, 0.0
    %v2008 = vmax.f32 %v1950, 0.0
    %v2009 = vmax.f32 %v1955, 0.0
    %v2010 = vmax.f32 %v1960, 0.0
    %v2011 = vmax.f32 %v1965, 0.0
    %v2012 = vmax.f32 %v1970, 0.0
    %v2013 = vmax.f32 %v1975, 0.0
    %v2014 = vmax.f32 %v1980, 0.0
    %v2015 = vadd.f32 %v1983, %v1984
    %v2016 = vadd.f32 %v2015, %v1985
    %v2017 = vadd.f32 %v2016, %v1986
    %v2018 = vadd.f32 %v2017, %v1987
    %v2019 = vadd.f32 %v2018, %v1988
    %v2020 = vadd.f32 %v2019, %v1989
    %v2021 = vadd.f32 %v2020, %v1990
    %v2022 = vadd.f32 %v2021, %v1991
    %v2023 = vadd.f32 %v2022, %v1992
    %v2024 = vadd.f32 %v2023, %v1993
    %v2025 = vadd.f32 %v2024, %v1994
    %v2026 = vadd.f32 %v2025, %v1995
    %v2027 = vadd.f32 %v2026, %v1996
    %v2028 = vadd.f32 %v2027, %v1997
    %v2029 = vadd.f32 %v2028, %v1998
    %v2030 = vadd.f32 %v2029, %v1999
    %v2031 = vadd.f32 %v2030, %v2000
    %v2032 = vadd.f32 %v2031, %v2001
    %v2033 = vadd.f32 %v2032, %v2002
    %v2034 = vadd.f32 %v2033, %v2003
    %v2035 = vadd.f32 %v2034, %v2004
    %v2036 = vadd.f32 %v2035, %v2005
    %v2037 = vadd.f32 %v2036, %v2006
    %v2038 = vadd.f32 %v2037, %v2007
    %v2039 = vadd.f32 %v2038, %v2008
    %v2040 = vadd.f32 %v2039, %v2009
    %v2041 = vadd.f32 %v2040, %v2010
    %v2042 = vadd.f32 %v2041, %v2011
    %v2043 = vadd.f32 %v2042, %v2012
    %v2044 = vadd.f32 %v2043, %v2013
    %v2045 = vadd.f32 %v2044, %v2014
    %v2046 = vrot.slane %v2045, 4
    %v2047 = vadd.f32 %v2045, %v2046
    %v2048 = vrot.slane %v2047, 2
    %v2049 = vadd.f32 %v2047, %v2048
    %v2050 = vrot.slane %v2049, 1
    %v2051 = vadd.f32 %v2049, %v2050
    %v2052 = vmul.f32 %v2051, %v411
    %s2053 = scalar_lea.vmem [#allocation2], 1536
    %v2054 = vld [vmem:[%s2053] sm:$0xff]
    %v2055 = vld [vmem:[%s2053 + $0x8] sm:$0xff]
    %v2056 = vld [vmem:[%s2053 + $0x10] sm:$0xff]
    %v2057 = vld [vmem:[%s2053 + $0x18] sm:$0xff]
    %v2058 = vld [vmem:[%s2053 + $0x20] sm:$0xff]
    %v2059 = vld [vmem:[%s2053 + $0x28] sm:$0xff]
    %v2060 = vld [vmem:[%s2053 + $0x30] sm:$0xff]
    %v2061 = vld [vmem:[%s2053 + $0x38] sm:$0xff]
    %v2062 = vld [vmem:[%s2053 + $0x40] sm:$0xff]
    %v2063 = vld [vmem:[%s2053 + $0x48] sm:$0xff]
    %v2064 = vld [vmem:[%s2053 + $0x50] sm:$0xff]
    %v2065 = vld [vmem:[%s2053 + $0x58] sm:$0xff]
    %v2066 = vld [vmem:[%s2053 + $0x60] sm:$0xff]
    %v2067 = vld [vmem:[%s2053 + $0x68] sm:$0xff]
    %v2068 = vld [vmem:[%s2053 + $0x70] sm:$0xff]
    %v2069 = vld [vmem:[%s2053 + $0x78] sm:$0xff]
    %v2070 = vld [vmem:[%s2053 + $0x80] sm:$0xff]
    %v2071 = vld [vmem:[%s2053 + $0x88] sm:$0xff]
    %v2072 = vld [vmem:[%s2053 + $0x90] sm:$0xff]
    %v2073 = vld [vmem:[%s2053 + $0x98] sm:$0xff]
    %v2074 = vld [vmem:[%s2053 + $0xa0] sm:$0xff]
    %v2075 = vld [vmem:[%s2053 + $0xa8] sm:$0xff]
    %v2076 = vld [vmem:[%s2053 + $0xb0] sm:$0xff]
    %v2077 = vld [vmem:[%s2053 + $0xb8] sm:$0xff]
    %v2078 = vld [vmem:[%s2053 + $0xc0] sm:$0xff]
    %v2079 = vld [vmem:[%s2053 + $0xc8] sm:$0xff]
    %v2080 = vld [vmem:[%s2053 + $0xd0] sm:$0xff]
    %v2081 = vld [vmem:[%s2053 + $0xd8] sm:$0xff]
    %v2082 = vld [vmem:[%s2053 + $0xe0] sm:$0xff]
    %v2083 = vld [vmem:[%s2053 + $0xe8] sm:$0xff]
    %v2084 = vld [vmem:[%s2053 + $0xf0] sm:$0xff]
    %v2085 = vld [vmem:[%s2053 + $0xf8] sm:$0xff]
    %2086 = vmatprep.subr.mxu0 0.0
    %2087 = vmatpush1.msra.mxu0 %v62
    %2088 = vmatprep.subr.mxu0 0.0
    %2089 = vmatpush1.msra.mxu0 %v63
    %2090 = vmatprep.subr.mxu0 0.0
    %2091 = vmatpush1.msra.mxu0 %v64
    %2092 = vmatprep.subr.mxu0 0.0
    %2093 = vmatpush1.msra.mxu0 %v65
    %2094 = vmatprep.subr.mxu0 0.0
    %2095 = vmatpush1.msra.mxu0 %v66
    %2096 = vmatprep.subr.mxu0 0.0
    %2097 = vmatpush1.msra.mxu0 %v67
    %2098 = vmatprep.subr.mxu0 0.0
    %2099 = vmatpush1.msra.mxu0 %v68
    %2100 = vmatprep.subr.mxu0 0.0
    %2101 = vmatpush1.msra.mxu0 %v69
    %2102 = vmatprep.subr.mxu0 0.0
    %2103 = vmatpush1.msra.mxu0 %v70
    %2104 = vmatprep.subr.mxu0 0.0
    %2105 = vmatpush1.msra.mxu0 %v71
    %2106 = vmatprep.subr.mxu0 0.0
    %2107 = vmatpush1.msra.mxu0 %v72
    %2108 = vmatprep.subr.mxu0 0.0
    %2109 = vmatpush1.msra.mxu0 %v73
    %2110 = vmatprep.subr.mxu0 0.0
    %2111 = vmatpush1.msra.mxu0 %v74
    %2112 = vmatprep.subr.mxu0 0.0
    %2113 = vmatpush1.msra.mxu0 %v75
    %2114 = vmatprep.subr.mxu0 0.0
    %2115 = vmatpush1.msra.mxu0 %v76
    %2116 = vmatprep.subr.mxu0 0.0
    %2117 = vmatpush1.msra.mxu0 %v77
    %2118 = vmatprep.subr.mxu0 0.0
    %2119 = vmatpush1.msra.mxu0 0.0
    %2120 = vmatprep.subr.mxu0 0.0
    %2121 = vmatpush1.msra.mxu0 0.0
    %2122 = vmatprep.subr.mxu0 0.0
    %2123 = vmatpush1.msra.mxu0 0.0
    %2124 = vmatprep.subr.mxu0 0.0
    %2125 = vmatpush1.msra.mxu0 0.0
    %2126 = vmatprep.subr.mxu0 0.0
    %2127 = vmatpush1.msra.mxu0 0.0
    %2128 = vmatprep.subr.mxu0 0.0
    %2129 = vmatpush1.msra.mxu0 0.0
    %2130 = vmatprep.subr.mxu0 0.0
    %2131 = vmatpush1.msra.mxu0 0.0
    %2132 = vmatprep.subr.mxu0 0.0
    %2133 = vmatpush1.msra.mxu0 0.0
    %2134 = vmatprep.subr.mxu0 0.0
    %2135 = vmatpush1.msra.mxu0 0.0
    %2136 = vmatprep.subr.mxu0 0.0
    %2137 = vmatpush1.msra.mxu0 0.0
    %2138 = vmatprep.subr.mxu0 0.0
    %2139 = vmatpush1.msra.mxu0 0.0
    %2140 = vmatprep.subr.mxu0 0.0
    %2141 = vmatpush1.msra.mxu0 0.0
    %2142 = vmatprep.subr.mxu0 0.0
    %2143 = vmatpush1.msra.mxu0 0.0
    %2144 = vmatprep.subr.mxu0 0.0
    %2145 = vmatpush1.msra.mxu0 0.0
    %2146 = vmatprep.subr.mxu0 0.0
    %2147 = vmatpush1.msra.mxu0 0.0
    %2148 = vmatprep.subr.mxu0 0.0
    %2149 = vmatpush1.msra.mxu0 0.0
    %2150 = vmatprep.mubr.f32.mxu0 0.0
    %2151 = vmatmul.mubr.f32.gmra.mrb[0].mxu0 %v2054
    %v2152 = vpop.f32.mrb[0].mxu0
    %v2153 = vadd.f32 %v115, %v2152
    %v2154 = vpop.f32.mrb[0].mxu0
    %2155 = vmatprep.mubr.f32.mxu0 0.0
    %2156 = vmatmul.mubr.f32.gmra.mrb[0].mxu0 %v2055
    %v2157 = vpop.f32.mrb[0].mxu0
    %v2158 = vadd.f32 %v115, %v2157
    %v2159 = vpop.f32.mrb[0].mxu0
    %2160 = vmatprep.mubr.f32.mxu0 0.0
    %2161 = vmatmul.mubr.f32.gmra.mrb[0].mxu0 %v2056
    %v2162 = vpop.f32.mrb[0].mxu0
    %v2163 = vadd.f32 %v115, %v2162
    %v2164 = vpop.f32.mrb[0].mxu0
    %2165 = vmatprep.mubr.f32.mxu0 0.0
    %2166 = vmatmul.mubr.f32.gmra.mrb[0].mxu0 %v2057
    %v2167 = vpop.f32.mrb[0].mxu0
    %v2168 = vadd.f32 %v115, %v2167
    %v2169 = vpop.f32.mrb[0].mxu0
    %2170 = vmatprep.mubr.f32.mxu0 0.0
    %2171 = vmatmul.mubr.f32.gmra.mrb[0].mxu0 %v2058
    %v2172 = vpop.f32.mrb[0].mxu0
    %v2173 = vadd.f32 %v115, %v2172
    %v2174 = vpop.f32.mrb[0].mxu0
    %2175 = vmatprep.mubr.f32.mxu0 0.0
    %2176 = vmatmul.mubr.f32.gmra.mrb[0].mxu0 %v2059
    %v2177 = vpop.f32.mrb[0].mxu0
    %v2178 = vadd.f32 %v115, %v2177
    %v2179 = vpop.f32.mrb[0].mxu0
    %2180 = vmatprep.mubr.f32.mxu0 0.0
    %2181 = vmatmul.mubr.f32.gmra.mrb[0].mxu0 %v2060
    %v2182 = vpop.f32.mrb[0].mxu0
    %v2183 = vadd.f32 %v115, %v2182
    %v2184 = vpop.f32.mrb[0].mxu0
    %2185 = vmatprep.mubr.f32.mxu0 0.0
    %2186 = vmatmul.mubr.f32.gmra.mrb[0].mxu0 %v2061
    %v2187 = vpop.f32.mrb[0].mxu0
    %v2188 = vadd.f32 %v115, %v2187
    %v2189 = vpop.f32.mrb[0].mxu0
    %2190 = vmatprep.mubr.f32.mxu0 0.0
    %2191 = vmatmul.mubr.f32.gmra.mrb[0].mxu0 %v2062
    %v2192 = vpop.f32.mrb[0].mxu0
    %v2193 = vadd.f32 %v115, %v2192
    %v2194 = vpop.f32.mrb[0].mxu0
    %2195 = vmatprep.mubr.f32.mxu0 0.0
    %2196 = vmatmul.mubr.f32.gmra.mrb[0].mxu0 %v2063
    %v2197 = vpop.f32.mrb[0].mxu0
    %v2198 = vadd.f32 %v115, %v2197
    %v2199 = vpop.f32.mrb[0].mxu0
    %2200 = vmatprep.mubr.f32.mxu0 0.0
    %2201 = vmatmul.mubr.f32.gmra.mrb[0].mxu0 %v2064
    %v2202 = vpop.f32.mrb[0].mxu0
    %v2203 = vadd.f32 %v115, %v2202
    %v2204 = vpop.f32.mrb[0].mxu0
    %2205 = vmatprep.mubr.f32.mxu0 0.0
    %2206 = vmatmul.mubr.f32.gmra.mrb[0].mxu0 %v2065
    %v2207 = vpop.f32.mrb[0].mxu0
    %v2208 = vadd.f32 %v115, %v2207
    %v2209 = vpop.f32.mrb[0].mxu0
    %2210 = vmatprep.mubr.f32.mxu0 0.0
    %2211 = vmatmul.mubr.f32.gmra.mrb[0].mxu0 %v2066
    %v2212 = vpop.f32.mrb[0].mxu0
    %v2213 = vadd.f32 %v115, %v2212
    %v2214 = vpop.f32.mrb[0].mxu0
    %2215 = vmatprep.mubr.f32.mxu0 0.0
    %2216 = vmatmul.mubr.f32.gmra.mrb[0].mxu0 %v2067
    %v2217 = vpop.f32.mrb[0].mxu0
    %v2218 = vadd.f32 %v115, %v2217
    %v2219 = vpop.f32.mrb[0].mxu0
    %2220 = vmatprep.mubr.f32.mxu0 0.0
    %2221 = vmatmul.mubr.f32.gmra.mrb[0].mxu0 %v2068
    %v2222 = vpop.f32.mrb[0].mxu0
    %v2223 = vadd.f32 %v115, %v2222
    %v2224 = vpop.f32.mrb[0].mxu0
    %2225 = vmatprep.mubr.f32.mxu0 0.0
    %2226 = vmatmul.mubr.f32.gmra.mrb[0].mxu0 %v2069
    %v2227 = vpop.f32.mrb[0].mxu0
    %v2228 = vadd.f32 %v115, %v2227
    %v2229 = vpop.f32.mrb[0].mxu0
    %2230 = vmatprep.mubr.f32.mxu0 0.0
    %2231 = vmatmul.mubr.f32.gmra.mrb[0].mxu0 %v2070
    %v2232 = vpop.f32.mrb[0].mxu0
    %v2233 = vadd.f32 %v115, %v2232
    %v2234 = vpop.f32.mrb[0].mxu0
    %2235 = vmatprep.mubr.f32.mxu0 0.0
    %2236 = vmatmul.mubr.f32.gmra.mrb[0].mxu0 %v2071
    %v2237 = vpop.f32.mrb[0].mxu0
    %v2238 = vadd.f32 %v115, %v2237
    %v2239 = vpop.f32.mrb[0].mxu0
    %2240 = vmatprep.mubr.f32.mxu0 0.0
    %2241 = vmatmul.mubr.f32.gmra.mrb[0].mxu0 %v2072
    %v2242 = vpop.f32.mrb[0].mxu0
    %v2243 = vadd.f32 %v115, %v2242
    %v2244 = vpop.f32.mrb[0].mxu0
    %2245 = vmatprep.mubr.f32.mxu0 0.0
    %2246 = vmatmul.mubr.f32.gmra.mrb[0].mxu0 %v2073
    %v2247 = vpop.f32.mrb[0].mxu0
    %v2248 = vadd.f32 %v115, %v2247
    %v2249 = vpop.f32.mrb[0].mxu0
    %2250 = vmatprep.mubr.f32.mxu0 0.0
    %2251 = vmatmul.mubr.f32.gmra.mrb[0].mxu0 %v2074
    %v2252 = vpop.f32.mrb[0].mxu0
    %v2253 = vadd.f32 %v115, %v2252
    %v2254 = vpop.f32.mrb[0].mxu0
    %2255 = vmatprep.mubr.f32.mxu0 0.0
    %2256 = vmatmul.mubr.f32.gmra.mrb[0].mxu0 %v2075
    %v2257 = vpop.f32.mrb[0].mxu0
    %v2258 = vadd.f32 %v115, %v2257
    %v2259 = vpop.f32.mrb[0].mxu0
    %2260 = vmatprep.mubr.f32.mxu0 0.0
    %2261 = vmatmul.mubr.f32.gmra.mrb[0].mxu0 %v2076
    %v2262 = vpop.f32.mrb[0].mxu0
    %v2263 = vadd.f32 %v115, %v2262
    %v2264 = vpop.f32.mrb[0].mxu0
    %2265 = vmatprep.mubr.f32.mxu0 0.0
    %2266 = vmatmul.mubr.f32.gmra.mrb[0].mxu0 %v2077
    %v2267 = vpop.f32.mrb[0].mxu0
    %v2268 = vadd.f32 %v115, %v2267
    %v2269 = vpop.f32.mrb[0].mxu0
    %2270 = vmatprep.mubr.f32.mxu0 0.0
    %2271 = vmatmul.mubr.f32.gmra.mrb[0].mxu0 %v2078
    %v2272 = vpop.f32.mrb[0].mxu0
    %v2273 = vadd.f32 %v115, %v2272
    %v2274 = vpop.f32.mrb[0].mxu0
    %2275 = vmatprep.mubr.f32.mxu0 0.0
    %2276 = vmatmul.mubr.f32.gmra.mrb[0].mxu0 %v2079
    %v2277 = vpop.f32.mrb[0].mxu0
    %v2278 = vadd.f32 %v115, %v2277
    %v2279 = vpop.f32.mrb[0].mxu0
    %2280 = vmatprep.mubr.f32.mxu0 0.0
    %2281 = vmatmul.mubr.f32.gmra.mrb[0].mxu0 %v2080
    %v2282 = vpop.f32.mrb[0].mxu0
    %v2283 = vadd.f32 %v115, %v2282
    %v2284 = vpop.f32.mrb[0].mxu0
    %2285 = vmatprep.mubr.f32.mxu0 0.0
    %2286 = vmatmul.mubr.f32.gmra.mrb[0].mxu0 %v2081
    %v2287 = vpop.f32.mrb[0].mxu0
    %v2288 = vadd.f32 %v115, %v2287
    %v2289 = vpop.f32.mrb[0].mxu0
    %2290 = vmatprep.mubr.f32.mxu0 0.0
    %2291 = vmatmul.mubr.f32.gmra.mrb[0].mxu0 %v2082
    %v2292 = vpop.f32.mrb[0].mxu0
    %v2293 = vadd.f32 %v115, %v2292
    %v2294 = vpop.f32.mrb[0].mxu0
    %2295 = vmatprep.mubr.f32.mxu0 0.0
    %2296 = vmatmul.mubr.f32.gmra.mrb[0].mxu0 %v2083
    %v2297 = vpop.f32.mrb[0].mxu0
    %v2298 = vadd.f32 %v115, %v2297
    %v2299 = vpop.f32.mrb[0].mxu0
    %2300 = vmatprep.mubr.f32.mxu0 0.0
    %2301 = vmatmul.mubr.f32.gmra.mrb[0].mxu0 %v2084
    %v2302 = vpop.f32.mrb[0].mxu0
    %v2303 = vadd.f32 %v115, %v2302
    %v2304 = vpop.f32.mrb[0].mxu0
    %2305 = vmatprep.mubr.f32.mxu0 0.0
    %2306 = vmatmul.mubr.f32.gmra.mrb[0].mxu0 %v2085
    %v2307 = vpop.f32.mrb[0].mxu0
    %v2308 = vadd.f32 %v115, %v2307
    %v2309 = vpop.f32.mrb[0].mxu0
    %2310 = vdwg.mxu0
    %v2311 = vmax.f32 %v2153, 0.0
    %v2312 = vmax.f32 %v2158, 0.0
    %v2313 = vmax.f32 %v2163, 0.0
    %v2314 = vmax.f32 %v2168, 0.0
    %v2315 = vmax.f32 %v2173, 0.0
    %v2316 = vmax.f32 %v2178, 0.0
    %v2317 = vmax.f32 %v2183, 0.0
    %v2318 = vmax.f32 %v2188, 0.0
    %v2319 = vmax.f32 %v2193, 0.0
    %v2320 = vmax.f32 %v2198, 0.0
    %v2321 = vmax.f32 %v2203, 0.0
    %v2322 = vmax.f32 %v2208, 0.0
    %v2323 = vmax.f32 %v2213, 0.0
    %v2324 = vmax.f32 %v2218, 0.0
    %v2325 = vmax.f32 %v2223, 0.0
    %v2326 = vmax.f32 %v2228, 0.0
    %v2327 = vmax.f32 %v2233, 0.0
    %v2328 = vmax.f32 %v2238, 0.0
    %v2329 = vmax.f32 %v2243, 0.0
    %v2330 = vmax.f32 %v2248, 0.0
    %v2331 = vmax.f32 %v2253, 0.0
    %v2332 = vmax.f32 %v2258, 0.0
    %v2333 = vmax.f32 %v2263, 0.0
    %v2334 = vmax.f32 %v2268, 0.0
    %v2335 = vmax.f32 %v2273, 0.0
    %v2336 = vmax.f32 %v2278, 0.0
    %v2337 = vmax.f32 %v2283, 0.0
    %v2338 = vmax.f32 %v2288, 0.0
    %v2339 = vmax.f32 %v2293, 0.0
    %v2340 = vmax.f32 %v2298, 0.0
    %v2341 = vmax.f32 %v2303, 0.0
    %v2342 = vmax.f32 %v2308, 0.0
    %v2343 = vadd.f32 %v2311, %v2312
    %v2344 = vadd.f32 %v2343, %v2313
    %v2345 = vadd.f32 %v2344, %v2314
    %v2346 = vadd.f32 %v2345, %v2315
    %v2347 = vadd.f32 %v2346, %v2316
    %v2348 = vadd.f32 %v2347, %v2317
    %v2349 = vadd.f32 %v2348, %v2318
    %v2350 = vadd.f32 %v2349, %v2319
    %v2351 = vadd.f32 %v2350, %v2320
    %v2352 = vadd.f32 %v2351, %v2321
    %v2353 = vadd.f32 %v2352, %v2322
    %v2354 = vadd.f32 %v2353, %v2323
    %v2355 = vadd.f32 %v2354, %v2324
    %v2356 = vadd.f32 %v2355, %v2325
    %v2357 = vadd.f32 %v2356, %v2326
    %v2358 = vadd.f32 %v2357, %v2327
    %v2359 = vadd.f32 %v2358, %v2328
    %v2360 = vadd.f32 %v2359, %v2329
    %v2361 = vadd.f32 %v2360, %v2330
    %v2362 = vadd.f32 %v2361, %v2331
    %v2363 = vadd.f32 %v2362, %v2332
    %v2364 = vadd.f32 %v2363, %v2333
    %v2365 = vadd.f32 %v2364, %v2334
    %v2366 = vadd.f32 %v2365, %v2335
    %v2367 = vadd.f32 %v2366, %v2336
    %v2368 = vadd.f32 %v2367, %v2337
    %v2369 = vadd.f32 %v2368, %v2338
    %v2370 = vadd.f32 %v2369, %v2339
    %v2371 = vadd.f32 %v2370, %v2340
    %v2372 = vadd.f32 %v2371, %v2341
    %v2373 = vadd.f32 %v2372, %v2342
    %v2374 = vrot.slane %v2373, 4
    %v2375 = vadd.f32 %v2373, %v2374
    %v2376 = vrot.slane %v2375, 2
    %v2377 = vadd.f32 %v2375, %v2376
    %v2378 = vrot.slane %v2377, 1
    %v2379 = vadd.f32 %v2377, %v2378
    %v2380 = vmul.f32 %v2379, %v411
    %s2381 = scalar_lea.vmem [#allocation2], 1792
    %v2382 = vld [vmem:[%s2381] sm:$0xff]
    %v2383 = vld [vmem:[%s2381 + $0x8] sm:$0xff]
    %v2384 = vld [vmem:[%s2381 + $0x10] sm:$0xff]
    %v2385 = vld [vmem:[%s2381 + $0x18] sm:$0xff]
    %v2386 = vld [vmem:[%s2381 + $0x20] sm:$0xff]
    %v2387 = vld [vmem:[%s2381 + $0x28] sm:$0xff]
    %v2388 = vld [vmem:[%s2381 + $0x30] sm:$0xff]
    %v2389 = vld [vmem:[%s2381 + $0x38] sm:$0xff]
    %v2390 = vld [vmem:[%s2381 + $0x40] sm:$0xff]
    %v2391 = vld [vmem:[%s2381 + $0x48] sm:$0xff]
    %v2392 = vld [vmem:[%s2381 + $0x50] sm:$0xff]
    %v2393 = vld [vmem:[%s2381 + $0x58] sm:$0xff]
    %v2394 = vld [vmem:[%s2381 + $0x60] sm:$0xff]
    %v2395 = vld [vmem:[%s2381 + $0x68] sm:$0xff]
    %v2396 = vld [vmem:[%s2381 + $0x70] sm:$0xff]
    %v2397 = vld [vmem:[%s2381 + $0x78] sm:$0xff]
    %v2398 = vld [vmem:[%s2381 + $0x80] sm:$0xff]
    %v2399 = vld [vmem:[%s2381 + $0x88] sm:$0xff]
    %v2400 = vld [vmem:[%s2381 + $0x90] sm:$0xff]
    %v2401 = vld [vmem:[%s2381 + $0x98] sm:$0xff]
    %v2402 = vld [vmem:[%s2381 + $0xa0] sm:$0xff]
    %v2403 = vld [vmem:[%s2381 + $0xa8] sm:$0xff]
    %v2404 = vld [vmem:[%s2381 + $0xb0] sm:$0xff]
    %v2405 = vld [vmem:[%s2381 + $0xb8] sm:$0xff]
    %v2406 = vld [vmem:[%s2381 + $0xc0] sm:$0xff]
    %v2407 = vld [vmem:[%s2381 + $0xc8] sm:$0xff]
    %v2408 = vld [vmem:[%s2381 + $0xd0] sm:$0xff]
    %v2409 = vld [vmem:[%s2381 + $0xd8] sm:$0xff]
    %v2410 = vld [vmem:[%s2381 + $0xe0] sm:$0xff]
    %v2411 = vld [vmem:[%s2381 + $0xe8] sm:$0xff]
    %v2412 = vld [vmem:[%s2381 + $0xf0] sm:$0xff]
    %v2413 = vld [vmem:[%s2381 + $0xf8] sm:$0xff]
    %2414 = vmatprep.subr.mxu0 0.0
    %2415 = vmatpush1.msra.mxu0 %v62
    %2416 = vmatprep.subr.mxu0 0.0
    %2417 = vmatpush1.msra.mxu0 %v63
    %2418 = vmatprep.subr.mxu0 0.0
    %2419 = vmatpush1.msra.mxu0 %v64
    %2420 = vmatprep.subr.mxu0 0.0
    %2421 = vmatpush1.msra.mxu0 %v65
    %2422 = vmatprep.subr.mxu0 0.0
    %2423 = vmatpush1.msra.mxu0 %v66
    %2424 = vmatprep.subr.mxu0 0.0
    %2425 = vmatpush1.msra.mxu0 %v67
    %2426 = vmatprep.subr.mxu0 0.0
    %2427 = vmatpush1.msra.mxu0 %v68
    %2428 = vmatprep.subr.mxu0 0.0
    %2429 = vmatpush1.msra.mxu0 %v69
    %2430 = vmatprep.subr.mxu0 0.0
    %2431 = vmatpush1.msra.mxu0 %v70
    %2432 = vmatprep.subr.mxu0 0.0
    %2433 = vmatpush1.msra.mxu0 %v71
    %2434 = vmatprep.subr.mxu0 0.0
    %2435 = vmatpush1.msra.mxu0 %v72
    %2436 = vmatprep.subr.mxu0 0.0
    %2437 = vmatpush1.msra.mxu0 %v73
    %2438 = vmatprep.subr.mxu0 0.0
    %2439 = vmatpush1.msra.mxu0 %v74
    %2440 = vmatprep.subr.mxu0 0.0
    %2441 = vmatpush1.msra.mxu0 %v75
    %2442 = vmatprep.subr.mxu0 0.0
    %2443 = vmatpush1.msra.mxu0 %v76
    %2444 = vmatprep.subr.mxu0 0.0
    %2445 = vmatpush1.msra.mxu0 %v77
    %2446 = vmatprep.subr.mxu0 0.0
    %2447 = vmatpush1.msra.mxu0 0.0
    %2448 = vmatprep.subr.mxu0 0.0
    %2449 = vmatpush1.msra.mxu0 0.0
    %2450 = vmatprep.subr.mxu0 0.0
    %2451 = vmatpush1.msra.mxu0 0.0
    %2452 = vmatprep.subr.mxu0 0.0
    %2453 = vmatpush1.msra.mxu0 0.0
    %2454 = vmatprep.subr.mxu0 0.0
    %2455 = vmatpush1.msra.mxu0 0.0
    %2456 = vmatprep.subr.mxu0 0.0
    %2457 = vmatpush1.msra.mxu0 0.0
    %2458 = vmatprep.subr.mxu0 0.0
    %2459 = vmatpush1.msra.mxu0 0.0
    %2460 = vmatprep.subr.mxu0 0.0
    %2461 = vmatpush1.msra.mxu0 0.0
    %2462 = vmatprep.subr.mxu0 0.0
    %2463 = vmatpush1.msra.mxu0 0.0
    %2464 = vmatprep.subr.mxu0 0.0
    %2465 = vmatpush1.msra.mxu0 0.0
    %2466 = vmatprep.subr.mxu0 0.0
    %2467 = vmatpush1.msra.mxu0 0.0
    %2468 = vmatprep.subr.mxu0 0.0
    %2469 = vmatpush1.msra.mxu0 0.0
    %2470 = vmatprep.subr.mxu0 0.0
    %2471 = vmatpush1.msra.mxu0 0.0
    %2472 = vmatprep.subr.mxu0 0.0
    %2473 = vmatpush1.msra.mxu0 0.0
    %2474 = vmatprep.subr.mxu0 0.0
    %2475 = vmatpush1.msra.mxu0 0.0
    %2476 = vmatprep.subr.mxu0 0.0
    %2477 = vmatpush1.msra.mxu0 0.0
    %2478 = vmatprep.mubr.f32.mxu0 0.0
    %2479 = vmatmul.mubr.f32.gmra.mrb[0].mxu0 %v2382
    %v2480 = vpop.f32.mrb[0].mxu0
    %v2481 = vadd.f32 %v115, %v2480
    %v2482 = vpop.f32.mrb[0].mxu0
    %2483 = vmatprep.mubr.f32.mxu0 0.0
    %2484 = vmatmul.mubr.f32.gmra.mrb[0].mxu0 %v2383
    %v2485 = vpop.f32.mrb[0].mxu0
    %v2486 = vadd.f32 %v115, %v2485
    %v2487 = vpop.f32.mrb[0].mxu0
    %2488 = vmatprep.mubr.f32.mxu0 0.0
    %2489 = vmatmul.mubr.f32.gmra.mrb[0].mxu0 %v2384
    %v2490 = vpop.f32.mrb[0].mxu0
    %v2491 = vadd.f32 %v115, %v2490
    %v2492 = vpop.f32.mrb[0].mxu0
    %2493 = vmatprep.mubr.f32.mxu0 0.0
    %2494 = vmatmul.mubr.f32.gmra.mrb[0].mxu0 %v2385
    %v2495 = vpop.f32.mrb[0].mxu0
    %v2496 = vadd.f32 %v115, %v2495
    %v2497 = vpop.f32.mrb[0].mxu0
    %2498 = vmatprep.mubr.f32.mxu0 0.0
    %2499 = vmatmul.mubr.f32.gmra.mrb[0].mxu0 %v2386
    %v2500 = vpop.f32.mrb[0].mxu0
    %v2501 = vadd.f32 %v115, %v2500
    %v2502 = vpop.f32.mrb[0].mxu0
    %2503 = vmatprep.mubr.f32.mxu0 0.0
    %2504 = vmatmul.mubr.f32.gmra.mrb[0].mxu0 %v2387
    %v2505 = vpop.f32.mrb[0].mxu0
    %v2506 = vadd.f32 %v115, %v2505
    %v2507 = vpop.f32.mrb[0].mxu0
    %2508 = vmatprep.mubr.f32.mxu0 0.0
    %2509 = vmatmul.mubr.f32.gmra.mrb[0].mxu0 %v2388
    %v2510 = vpop.f32.mrb[0].mxu0
    %v2511 = vadd.f32 %v115, %v2510
    %v2512 = vpop.f32.mrb[0].mxu0
    %2513 = vmatprep.mubr.f32.mxu0 0.0
    %2514 = vmatmul.mubr.f32.gmra.mrb[0].mxu0 %v2389
    %v2515 = vpop.f32.mrb[0].mxu0
    %v2516 = vadd.f32 %v115, %v2515
    %v2517 = vpop.f32.mrb[0].mxu0
    %2518 = vmatprep.mubr.f32.mxu0 0.0
    %2519 = vmatmul.mubr.f32.gmra.mrb[0].mxu0 %v2390
    %v2520 = vpop.f32.mrb[0].mxu0
    %v2521 = vadd.f32 %v115, %v2520
    %v2522 = vpop.f32.mrb[0].mxu0
    %2523 = vmatprep.mubr.f32.mxu0 0.0
    %2524 = vmatmul.mubr.f32.gmra.mrb[0].mxu0 %v2391
    %v2525 = vpop.f32.mrb[0].mxu0
    %v2526 = vadd.f32 %v115, %v2525
    %v2527 = vpop.f32.mrb[0].mxu0
    %2528 = vmatprep.mubr.f32.mxu0 0.0
    %2529 = vmatmul.mubr.f32.gmra.mrb[0].mxu0 %v2392
    %v2530 = vpop.f32.mrb[0].mxu0
    %v2531 = vadd.f32 %v115, %v2530
    %v2532 = vpop.f32.mrb[0].mxu0
    %2533 = vmatprep.mubr.f32.mxu0 0.0
    %2534 = vmatmul.mubr.f32.gmra.mrb[0].mxu0 %v2393
    %v2535 = vpop.f32.mrb[0].mxu0
    %v2536 = vadd.f32 %v115, %v2535
    %v2537 = vpop.f32.mrb[0].mxu0
    %2538 = vmatprep.mubr.f32.mxu0 0.0
    %2539 = vmatmul.mubr.f32.gmra.mrb[0].mxu0 %v2394
    %v2540 = vpop.f32.mrb[0].mxu0
    %v2541 = vadd.f32 %v115, %v2540
    %v2542 = vpop.f32.mrb[0].mxu0
    %2543 = vmatprep.mubr.f32.mxu0 0.0
    %2544 = vmatmul.mubr.f32.gmra.mrb[0].mxu0 %v2395
    %v2545 = vpop.f32.mrb[0].mxu0
    %v2546 = vadd.f32 %v115, %v2545
    %v2547 = vpop.f32.mrb[0].mxu0
    %2548 = vmatprep.mubr.f32.mxu0 0.0
    %2549 = vmatmul.mubr.f32.gmra.mrb[0].mxu0 %v2396
    %v2550 = vpop.f32.mrb[0].mxu0
    %v2551 = vadd.f32 %v115, %v2550
    %v2552 = vpop.f32.mrb[0].mxu0
    %2553 = vmatprep.mubr.f32.mxu0 0.0
    %2554 = vmatmul.mubr.f32.gmra.mrb[0].mxu0 %v2397
    %v2555 = vpop.f32.mrb[0].mxu0
    %v2556 = vadd.f32 %v115, %v2555
    %v2557 = vpop.f32.mrb[0].mxu0
    %2558 = vmatprep.mubr.f32.mxu0 0.0
    %2559 = vmatmul.mubr.f32.gmra.mrb[0].mxu0 %v2398
    %v2560 = vpop.f32.mrb[0].mxu0
    %v2561 = vadd.f32 %v115, %v2560
    %v2562 = vpop.f32.mrb[0].mxu0
    %2563 = vmatprep.mubr.f32.mxu0 0.0
    %2564 = vmatmul.mubr.f32.gmra.mrb[0].mxu0 %v2399
    %v2565 = vpop.f32.mrb[0].mxu0
    %v2566 = vadd.f32 %v115, %v2565
    %v2567 = vpop.f32.mrb[0].mxu0
    %2568 = vmatprep.mubr.f32.mxu0 0.0
    %2569 = vmatmul.mubr.f32.gmra.mrb[0].mxu0 %v2400
    %v2570 = vpop.f32.mrb[0].mxu0
    %v2571 = vadd.f32 %v115, %v2570
    %v2572 = vpop.f32.mrb[0].mxu0
    %2573 = vmatprep.mubr.f32.mxu0 0.0
    %2574 = vmatmul.mubr.f32.gmra.mrb[0].mxu0 %v2401
    %v2575 = vpop.f32.mrb[0].mxu0
    %v2576 = vadd.f32 %v115, %v2575
    %v2577 = vpop.f32.mrb[0].mxu0
    %2578 = vmatprep.mubr.f32.mxu0 0.0
    %2579 = vmatmul.mubr.f32.gmra.mrb[0].mxu0 %v2402
    %v2580 = vpop.f32.mrb[0].mxu0
    %v2581 = vadd.f32 %v115, %v2580
    %v2582 = vpop.f32.mrb[0].mxu0
    %2583 = vmatprep.mubr.f32.mxu0 0.0
    %2584 = vmatmul.mubr.f32.gmra.mrb[0].mxu0 %v2403
    %v2585 = vpop.f32.mrb[0].mxu0
    %v2586 = vadd.f32 %v115, %v2585
    %v2587 = vpop.f32.mrb[0].mxu0
    %2588 = vmatprep.mubr.f32.mxu0 0.0
    %2589 = vmatmul.mubr.f32.gmra.mrb[0].mxu0 %v2404
    %v2590 = vpop.f32.mrb[0].mxu0
    %v2591 = vadd.f32 %v115, %v2590
    %v2592 = vpop.f32.mrb[0].mxu0
    %2593 = vmatprep.mubr.f32.mxu0 0.0
    %2594 = vmatmul.mubr.f32.gmra.mrb[0].mxu0 %v2405
    %v2595 = vpop.f32.mrb[0].mxu0
    %v2596 = vadd.f32 %v115, %v2595
    %v2597 = vpop.f32.mrb[0].mxu0
    %2598 = vmatprep.mubr.f32.mxu0 0.0
    %2599 = vmatmul.mubr.f32.gmra.mrb[0].mxu0 %v2406
    %v2600 = vpop.f32.mrb[0].mxu0
    %v2601 = vadd.f32 %v115, %v2600
    %v2602 = vpop.f32.mrb[0].mxu0
    %2603 = vmatprep.mubr.f32.mxu0 0.0
    %2604 = vmatmul.mubr.f32.gmra.mrb[0].mxu0 %v2407
    %v2605 = vpop.f32.mrb[0].mxu0
    %v2606 = vadd.f32 %v115, %v2605
    %v2607 = vpop.f32.mrb[0].mxu0
    %2608 = vmatprep.mubr.f32.mxu0 0.0
    %2609 = vmatmul.mubr.f32.gmra.mrb[0].mxu0 %v2408
    %v2610 = vpop.f32.mrb[0].mxu0
    %v2611 = vadd.f32 %v115, %v2610
    %v2612 = vpop.f32.mrb[0].mxu0
    %2613 = vmatprep.mubr.f32.mxu0 0.0
    %2614 = vmatmul.mubr.f32.gmra.mrb[0].mxu0 %v2409
    %v2615 = vpop.f32.mrb[0].mxu0
    %v2616 = vadd.f32 %v115, %v2615
    %v2617 = vpop.f32.mrb[0].mxu0
    %2618 = vmatprep.mubr.f32.mxu0 0.0
    %2619 = vmatmul.mubr.f32.gmra.mrb[0].mxu0 %v2410
    %v2620 = vpop.f32.mrb[0].mxu0
    %v2621 = vadd.f32 %v115, %v2620
    %v2622 = vpop.f32.mrb[0].mxu0
    %2623 = vmatprep.mubr.f32.mxu0 0.0
    %2624 = vmatmul.mubr.f32.gmra.mrb[0].mxu0 %v2411
    %v2625 = vpop.f32.mrb[0].mxu0
    %v2626 = vadd.f32 %v115, %v2625
    %v2627 = vpop.f32.mrb[0].mxu0
    %2628 = vmatprep.mubr.f32.mxu0 0.0
    %2629 = vmatmul.mubr.f32.gmra.mrb[0].mxu0 %v2412
    %v2630 = vpop.f32.mrb[0].mxu0
    %v2631 = vadd.f32 %v115, %v2630
    %v2632 = vpop.f32.mrb[0].mxu0
    %2633 = vmatprep.mubr.f32.mxu0 0.0
    %2634 = vmatmul.mubr.f32.gmra.mrb[0].mxu0 %v2413
    %v2635 = vpop.f32.mrb[0].mxu0
    %v2636 = vadd.f32 %v115, %v2635
    %v2637 = vpop.f32.mrb[0].mxu0
    %2638 = vdwg.mxu0
    %v2639 = vmax.f32 %v2481, 0.0
    %v2640 = vmax.f32 %v2486, 0.0
    %v2641 = vmax.f32 %v2491, 0.0
    %v2642 = vmax.f32 %v2496, 0.0
    %v2643 = vmax.f32 %v2501, 0.0
    %v2644 = vmax.f32 %v2506, 0.0
    %v2645 = vmax.f32 %v2511, 0.0
    %v2646 = vmax.f32 %v2516, 0.0
    %v2647 = vmax.f32 %v2521, 0.0
    %v2648 = vmax.f32 %v2526, 0.0
    %v2649 = vmax.f32 %v2531, 0.0
    %v2650 = vmax.f32 %v2536, 0.0
    %v2651 = vmax.f32 %v2541, 0.0
    %v2652 = vmax.f32 %v2546, 0.0
    %v2653 = vmax.f32 %v2551, 0.0
    %v2654 = vmax.f32 %v2556, 0.0
    %v2655 = vmax.f32 %v2561, 0.0
    %v2656 = vmax.f32 %v2566, 0.0
    %v2657 = vmax.f32 %v2571, 0.0
    %v2658 = vmax.f32 %v2576, 0.0
    %v2659 = vmax.f32 %v2581, 0.0
    %v2660 = vmax.f32 %v2586, 0.0
    %v2661 = vmax.f32 %v2591, 0.0
    %v2662 = vmax.f32 %v2596, 0.0
    %v2663 = vmax.f32 %v2601, 0.0
    %v2664 = vmax.f32 %v2606, 0.0
    %v2665 = vmax.f32 %v2611, 0.0
    %v2666 = vmax.f32 %v2616, 0.0
    %v2667 = vmax.f32 %v2621, 0.0
    %v2668 = vmax.f32 %v2626, 0.0
    %v2669 = vmax.f32 %v2631, 0.0
    %v2670 = vmax.f32 %v2636, 0.0
    %v2671 = vadd.f32 %v2639, %v2640
    %v2672 = vadd.f32 %v2671, %v2641
    %v2673 = vadd.f32 %v2672, %v2642
    %v2674 = vadd.f32 %v2673, %v2643
    %v2675 = vadd.f32 %v2674, %v2644
    %v2676 = vadd.f32 %v2675, %v2645
    %v2677 = vadd.f32 %v2676, %v2646
    %v2678 = vadd.f32 %v2677, %v2647
    %v2679 = vadd.f32 %v2678, %v2648
    %v2680 = vadd.f32 %v2679, %v2649
    %v2681 = vadd.f32 %v2680, %v2650
    %v2682 = vadd.f32 %v2681, %v2651
    %v2683 = vadd.f32 %v2682, %v2652
    %v2684 = vadd.f32 %v2683, %v2653
    %v2685 = vadd.f32 %v2684, %v2654
    %v2686 = vadd.f32 %v2685, %v2655
    %v2687 = vadd.f32 %v2686, %v2656
    %v2688 = vadd.f32 %v2687, %v2657
    %v2689 = vadd.f32 %v2688, %v2658
    %v2690 = vadd.f32 %v2689, %v2659
    %v2691 = vadd.f32 %v2690, %v2660
    %v2692 = vadd.f32 %v2691, %v2661
    %v2693 = vadd.f32 %v2692, %v2662
    %v2694 = vadd.f32 %v2693, %v2663
    %v2695 = vadd.f32 %v2694, %v2664
    %v2696 = vadd.f32 %v2695, %v2665
    %v2697 = vadd.f32 %v2696, %v2666
    %v2698 = vadd.f32 %v2697, %v2667
    %v2699 = vadd.f32 %v2698, %v2668
    %v2700 = vadd.f32 %v2699, %v2669
    %v2701 = vadd.f32 %v2700, %v2670
    %v2702 = vrot.slane %v2701, 4
    %v2703 = vadd.f32 %v2701, %v2702
    %v2704 = vrot.slane %v2703, 2
    %v2705 = vadd.f32 %v2703, %v2704
    %v2706 = vrot.slane %v2705, 1
    %v2707 = vadd.f32 %v2705, %v2706
    %v2708 = vmul.f32 %v2707, %v411
    %vm2709 = vcmask 1040384
    %v2710 = vsel %vm2709, %v412, %v740
    %vm2711 = vcmask 1041408
    %v2712 = vsel %vm2711, %v2710, %v1068
    %vm2713 = vcmask 1042432
    %v2714 = vsel %vm2713, %v2712, %v1396
    %vm2715 = vcmask 1043456
    %v2716 = vsel %vm2715, %v2714, %v1724
    %vm2717 = vcmask 1044480
    %v2718 = vsel %vm2717, %v2716, %v2052
    %vm2719 = vcmask 1045504
    %v2720 = vsel %vm2719, %v2718, %v2380
    %vm2721 = vcmask 1046528
    %v2722 = vsel %vm2721, %v2720, %v2708
    %v2723 = vld [vmem:[#allocation7] sm:$0xff]
    %v2724 = vld [vmem:[#allocation7 + $0x8] sm:$0xff]
    %v2725 = vld [vmem:[#allocation7 + $0x10] sm:$0xff]
    %v2726 = vld [vmem:[#allocation7 + $0x18] sm:$0xff]
    %v2727 = vld [vmem:[#allocation7 + $0x20] sm:$0xff]
    %v2728 = vld [vmem:[#allocation7 + $0x28] sm:$0xff]
    %v2729 = vld [vmem:[#allocation7 + $0x30] sm:$0xff]
    %v2730 = vld [vmem:[#allocation7 + $0x38] sm:$0xff]
    %v2731 = vld [vmem:[#allocation7 + $0x40] sm:$0xff]
    %v2732 = vld [vmem:[#allocation7 + $0x48] sm:$0xff]
    %v2733 = vld [vmem:[#allocation7 + $0x50] sm:$0xff]
    %v2734 = vld [vmem:[#allocation7 + $0x58] sm:$0xff]
    %v2735 = vld [vmem:[#allocation7 + $0x60] sm:$0xff]
    %v2736 = vld [vmem:[#allocation7 + $0x68] sm:$0xff]
    %v2737 = vld [vmem:[#allocation7 + $0x70] sm:$0xff]
    %v2738 = vld [vmem:[#allocation7 + $0x78] sm:$0xff]
    %v2739 = vld [vmem:[%s4] sm:$0x1]
    %v2741 = vlaneseq
    %v2742 = vshrl.u32 %v2741, 7
    %v2743 = vsub.s32 0, %v2742
    %v2744 = vrot.slane %v2739, %v2743
    %2746 = vmatprep.subr.mxu0 0.0
    %2747 = vmatpush1.msra.mxu0 %v2723
    %2748 = vmatprep.subr.mxu0 0.0
    %2749 = vmatpush1.msra.mxu0 %v2724
    %2750 = vmatprep.subr.mxu0 0.0
    %2751 = vmatpush1.msra.mxu0 %v2725
    %2752 = vmatprep.subr.mxu0 0.0
    %2753 = vmatpush1.msra.mxu0 %v2726
    %2754 = vmatprep.subr.mxu0 0.0
    %2755 = vmatpush1.msra.mxu0 %v2727
    %2756 = vmatprep.subr.mxu0 0.0
    %2757 = vmatpush1.msra.mxu0 %v2728
    %2758 = vmatprep.subr.mxu0 0.0
    %2759 = vmatpush1.msra.mxu0 %v2729
    %2760 = vmatprep.subr.mxu0 0.0
    %2761 = vmatpush1.msra.mxu0 %v2730
    %2762 = vmatprep.subr.mxu0 0.0
    %2763 = vmatpush1.msra.mxu0 %v2731
    %2764 = vmatprep.subr.mxu0 0.0
    %2765 = vmatpush1.msra.mxu0 %v2732
    %2766 = vmatprep.subr.mxu0 0.0
    %2767 = vmatpush1.msra.mxu0 %v2733
    %2768 = vmatprep.subr.mxu0 0.0
    %2769 = vmatpush1.msra.mxu0 %v2734
    %2770 = vmatprep.subr.mxu0 0.0
    %2771 = vmatpush1.msra.mxu0 %v2735
    %2772 = vmatprep.subr.mxu0 0.0
    %2773 = vmatpush1.msra.mxu0 %v2736
    %2774 = vmatprep.subr.mxu0 0.0
    %2775 = vmatpush1.msra.mxu0 %v2737
    %2776 = vmatprep.subr.mxu0 0.0
    %2777 = vmatpush1.msra.mxu0 %v2738
    %2778 = vmatprep.subr.mxu0 0.0
    %2779 = vmatpush1.msra.mxu0 0.0
    %2780 = vmatprep.subr.mxu0 0.0
    %2781 = vmatpush1.msra.mxu0 0.0
    %2782 = vmatprep.subr.mxu0 0.0
    %2783 = vmatpush1.msra.mxu0 0.0
    %2784 = vmatprep.subr.mxu0 0.0
    %2785 = vmatpush1.msra.mxu0 0.0
    %2786 = vmatprep.subr.mxu0 0.0
    %2787 = vmatpush1.msra.mxu0 0.0
    %2788 = vmatprep.subr.mxu0 0.0
    %2789 = vmatpush1.msra.mxu0 0.0
    %2790 = vmatprep.subr.mxu0 0.0
    %2791 = vmatpush1.msra.mxu0 0.0
    %2792 = vmatprep.subr.mxu0 0.0
    %2793 = vmatpush1.msra.mxu0 0.0
    %2794 = vmatprep.subr.mxu0 0.0
    %2795 = vmatpush1.msra.mxu0 0.0
    %2796 = vmatprep.subr.mxu0 0.0
    %2797 = vmatpush1.msra.mxu0 0.0
    %2798 = vmatprep.subr.mxu0 0.0
    %2799 = vmatpush1.msra.mxu0 0.0
    %2800 = vmatprep.subr.mxu0 0.0
    %2801 = vmatpush1.msra.mxu0 0.0
    %2802 = vmatprep.subr.mxu0 0.0
    %2803 = vmatpush1.msra.mxu0 0.0
    %2804 = vmatprep.subr.mxu0 0.0
    %2805 = vmatpush1.msra.mxu0 0.0
    %2806 = vmatprep.subr.mxu0 0.0
    %2807 = vmatpush1.msra.mxu0 0.0
    %2808 = vmatprep.subr.mxu0 0.0
    %2809 = vmatpush1.msra.mxu0 0.0
    %2810 = vmatprep.mubr.f32.mxu0 0.0
    %2811 = vmatmul.mubr.f32.gmra.mrb[0].mxu0 %v2722
    %v2812 = vpop.f32.mrb[0].mxu0
    %v2813 = vadd.f32 %v2744, %v2812
    %v2814 = vpop.f32.mrb[0].mxu0
    %2815 = vdwg.mxu0
    %2816 = vst [vmem:[#allocation8] sm:$0xff] %v2813
    // Predicated region
    $region34: #{tpu_custom_call.1} parent=1 // pred_check
      _
    $region35: #{tpu_custom_call.1} parent=1 // pred_check_branch
      %2818 = sbr.rel (0) target = $region37
    $region36: #{tpu_custom_call.1} parent=1 // pred_region
      %s2820 = ssub.s32 128, 128
      %2821 = vsyncadd [#allocation4], %s2820
      %s2823 = sshll.u32 [#allocation8], 4
      %s2824 = int_to_ptr.vmem [resolvable:$true] %s2823
      %2826 = dma.vmem_to_hbm [thread:$0]  %s2824, 128, %s5, [#allocation4]
    $region37: #{tpu_custom_call.1} parent=1 // pred_fallthru
      _
    // Predicated region
    $region38: #{tpu_custom_call.1} parent=1 // pred_check
      _
    $region39: #{tpu_custom_call.1} parent=1 // pred_check_branch
      %2828 = sbr.rel (0) target = $region41
    $region40: #{tpu_custom_call.1} parent=1 // pred_region
      %2829 = dma.done [#allocation4], 128
    $region41: #{tpu_custom_call.1} parent=1 // pred_fallthru
      _
    %2830 = vsyncpa [#allocation3], 1
    %2831 = vsyncpa [#allocation6], 1
    %2832 = vsyncpa [#allocation4], 1

</llo_original>
